<compile_context>
chip_gen: v5e
topology: v5e:2x2
jax: 0.10.0
libtpu: 0.0.40
codegen_flags: <defaults>
</compile_context>

<pallas_src>
import functools

import jax
import jax.numpy as jnp
from jax import lax
from jax.experimental import pallas as pl
from jax.experimental.pallas import tpu as pltpu


INTERMEDIATE_DTYPE = jnp.bfloat16   # HBM dtype for the theta/phi/g conv outputs
_CONV_TILE_MAX = 8192               # max lane tile for the pointwise conv kernel


def _round_up(n, m):
    return ((n + m - 1) // m) * m


# ----------------------------------------------------------------------------
# Kernel 1: stacked pointwise (1x1x1) Conv3d      y = W_stacked @ x + b_stacked
#   x : (B, C, N)  f32   (N = D*H*W, natural spatial order)
#   y : (B, 3C, N) bf16  rows [0:C) = theta, [C:2C) = phi, [2C:3C) = g
# ----------------------------------------------------------------------------
def _pointwise_convs_kernel(x_ref, w_ref, b_ref, y_ref):
    x = x_ref[0]                                                   # (C, TN) f32
    y = jnp.dot(w_ref[...], x, preferred_element_type=jnp.float32) + b_ref[...]
    y_ref[0] = y.astype(y_ref.dtype)


def pointwise_convs(x, w_st, b_st):
    B, C, D, H, W = x.shape
    N = D * H * W
    x3 = x.reshape(B, C, N)                                        # free reshape
    TN = min(_CONV_TILE_MAX, _round_up(N, 128))
    Np = _round_up(N, TN)
    if Np != N:                                                    # padded, never TN = N fallback
        x3 = jnp.pad(x3, ((0, 0), (0, 0), (0, Np - N)))

    y = pl.pallas_call(
        _pointwise_convs_kernel,
        out_shape=jax.ShapeDtypeStruct((B, 3 * C, Np), INTERMEDIATE_DTYPE),
        grid=(B, Np // TN),
        in_specs=[
            pl.BlockSpec((1, C, TN), lambda b, n: (b, 0, n)),
            pl.BlockSpec((3 * C, C), lambda b, n: (0, 0)),
            pl.BlockSpec((3 * C, 1), lambda b, n: (0, 0)),
        ],
        out_specs=pl.BlockSpec((1, 3 * C, TN), lambda b, n: (b, 0, n)),
        compiler_params=pltpu.CompilerParams(
            dimension_semantics=("parallel", "parallel")),
    )(x3, w_st, b_st.reshape(3 * C, 1))
    if Np != N:
        y = y[:, :, :N]
    return y                                                       # (B, 3C, N)


# ----------------------------------------------------------------------------
# Kernel 2a: attention scores  att[b] = softmax( sum_r th_r . ph_r^T )  (L, L)
#   reduction over grid axis r; the output block is the f32 accumulator.
# ----------------------------------------------------------------------------
def _score_kernel(th_ref, ph_ref, att_ref, *, contract_dim):
    r = pl.program_id(1)

    @pl.when(r == 0)
    def _():
        att_ref[...] = jnp.zeros_like(att_ref)

    th = th_ref[0, 0].astype(jnp.float32)                          # (A, Bd)
    ph = ph_ref[0, 0].astype(jnp.float32)                          # (A, Bd)
    att_ref[0] += lax.dot_general(
        th, ph,
        dimension_numbers=(((contract_dim,), (contract_dim,)), ((), ())),
        preferred_element_type=jnp.float32)

    @pl.when(r == pl.num_programs(1) - 1)
    def _():
        s = att_ref[0]
        s = s - jnp.max(s, axis=-1, keepdims=True)
        p = jnp.exp(s)
        att_ref[0] = p * pl.reciprocal(jnp.sum(p, axis=-1, keepdims=True),
                                       approx=True)


# ----------------------------------------------------------------------------
# Kernel 2b: apply + residual    out_tile = x_tile + beta * (att applied to g)
# ----------------------------------------------------------------------------
def _apply_kernel(beta_ref, att_ref, g_ref, x_ref, o_ref, *, right_apply):
    att = att_ref[0]                                               # (L, L) f32 softmaxed
    g = g_ref[0, 0].astype(jnp.float32)                            # (A, Bd)
    if right_apply:   # out[a, w] = sum_{w'} att[w, w'] * g[a, w']   (sagittal)
        out = lax.dot_general(g, att,
                              dimension_numbers=(((1,), (1,)), ((), ())),
                              preferred_element_type=jnp.float32)
    else:             # out = att @ g                                (coronal / axial)
        out = jnp.dot(att, g, preferred_element_type=jnp.float32)
    o_ref[0, 0] = x_ref[0, 0] + beta_ref[0] * out


def axis_attention_residual(x, y, beta, axis):
    """x: (B,C,D,H,W) f32; y: (B,3C,D*H*W) conv output; returns x + beta*sa(...)."""
    B, C, D, H, W = x.shape
    if axis == "axial":        # attend over D, reduce over channels c
        L, R = D, C
        xv = x.reshape(B, C, D, H * W)
        yv = y.reshape(B, 3 * C, D, H * W)
        A, Bd = D, H * W
        contract_dim, right_apply = 1, False
    elif axis == "coronal":    # attend over H, reduce over (c, d)
        L, R = H, C * D
        xv = x.reshape(B, C * D, H, W)
        yv = y.reshape(B, 3 * C * D, H, W)
        A, Bd = H, W
        contract_dim, right_apply = 1, False
    elif axis == "sagittal":   # attend over W, reduce over (c, d)
        L, R = W, C * D
        xv = x.reshape(B, C * D, H, W)
        yv = y.reshape(B, 3 * C * D, H, W)
        A, Bd = H, W
        contract_dim, right_apply = 0, True
    else:
        raise ValueError(axis)

    off = R          # row-group stride inside yv: theta [0,R), phi [R,2R), g [2R,3R)
    tile = (1, 1, A, Bd)

    att = pl.pallas_call(
        functools.partial(_score_kernel, contract_dim=contract_dim),
        out_shape=jax.ShapeDtypeStruct((B, L, L), jnp.float32),
        grid=(B, R),
        in_specs=[
            pl.BlockSpec(tile, lambda b, r: (b, r, 0, 0)),               # theta
            pl.BlockSpec(tile, lambda b, r: (b, off + r, 0, 0)),         # phi
        ],
        out_specs=pl.BlockSpec((1, L, L), lambda b, r: (b, 0, 0)),
        compiler_params=pltpu.CompilerParams(
            dimension_semantics=("parallel", "arbitrary")),
    )(yv, yv)

    beta_arr = jnp.reshape(beta, (1,)).astype(jnp.float32)
    out = pl.pallas_call(
        functools.partial(_apply_kernel, right_apply=right_apply),
        out_shape=jax.ShapeDtypeStruct(xv.shape, x.dtype),
        grid=(B, R),
        in_specs=[
            pl.BlockSpec(memory_space=pltpu.MemorySpace.SMEM),           # beta
            pl.BlockSpec((1, L, L), lambda b, r: (b, 0, 0)),             # att
            pl.BlockSpec(tile, lambda b, r: (b, 2 * off + r, 0, 0)),     # g
            pl.BlockSpec(tile, lambda b, r: (b, r, 0, 0)),               # x
        ],
        out_specs=pl.BlockSpec(tile, lambda b, r: (b, r, 0, 0)),
        compiler_params=pltpu.CompilerParams(
            dimension_semantics=("parallel", "parallel")),
    )(beta_arr, att, yv, xv)

    return out.reshape(B, C, D, H, W)


# ----------------------------------------------------------------------------
# rsaBlock forward: saBlock order in the module is [coronal, sagittal, axial]
# ----------------------------------------------------------------------------
_AXES = ("coronal", "sagittal", "axial")


@jax.jit
def rsa_block_forward(x, params):
    w_st = jnp.concatenate([params["tw"], params["pw"], params["gw"]], axis=0)
    b_st = jnp.concatenate([params["tb"], params["pb"], params["gb"]], axis=0)
    for idx, axis in enumerate(_AXES):
        y = pointwise_convs(x, w_st, b_st)                 # theta/phi/g, stacked
        x = axis_attention_residual(x, y, params["betas"][idx], axis)
    return x


# ----------------------------------------------------------------------------
# Pure-JAX reference (mirrors the PyTorch module) for verification
# ----------------------------------------------------------------------------
_PERMS = ((0, 3, 2, 1, 4),   # coronal
          (0, 4, 2, 3, 1),   # sagittal
          (0, 2, 1, 3, 4))   # axial


def rsa_block_ref(x, params):
    def conv(a, w, b):
        return jnp.einsum("oc,bcdhw->bodhw", w, a) + b[None, :, None, None, None]

    for idx, perm in enumerate(_PERMS):
        th = conv(x, params["tw"], params["tb"])
        ph = conv(x, params["pw"], params["pb"])
        g = conv(x, params["gw"], params["gb"])
        B = x.shape[0]
        L = x.shape[perm[1]]
        thp = jnp.transpose(th, perm).reshape(B, L, -1)
        php = jnp.transpose(ph, perm).reshape(B, L, -1)
        gp = jnp.transpose(g, perm).reshape(B, L, -1)
        att = jax.nn.softmax(jnp.einsum("blm,bkm->blk", thp, php), axis=-1)
        out = jnp.einsum("blk,bkm->blm", att, gp)
        perm_shape = tuple(x.shape[p] for p in perm)
        out5 = jnp.transpose(out.reshape(B, L, *perm_shape[2:]), perm)
        x = x + out5 * params["betas"][idx]
    return x


# ----------------------------------------------------------------------------
if __name__ == "__main__":
    key = jax.random.PRNGKey(0)
    B, C, D, H, W = 2, 4, 8, 8, 8
    ks = jax.random.split(key, 8)

    x = jax.random.normal(ks[0], (B, C, D, H, W), jnp.float32)

    scale = 0.25 / (C ** 0.5)
    params = {
        "tw": jax.random.normal(ks[1], (C, C), jnp.float32) * scale,
        "pw": jax.random.normal(ks[2], (C, C), jnp.float32) * scale,
        "gw": jax.random.normal(ks[3], (C, C), jnp.float32) * scale,
        "tb": jax.random.normal(ks[4], (C,), jnp.float32) * 0.05,
        "pb": jax.random.normal(ks[5], (C,), jnp.float32) * 0.05,
        "gb": jax.random.normal(ks[6], (C,), jnp.float32) * 0.05,
        # NOTE: the PyTorch module initializes betas to 0.0 (identity output);
        # nonzero deterministic values are used here so the kernel path is exercised.
        "betas": jnp.array([0.5, 0.25, 0.125], jnp.float32),
    }

    out = jax.block_until_ready(rsa_block_forward(x, params))
    ref = rsa_block_ref(x, params)

    assert out.shape == x.shape and out.dtype == jnp.float32
    assert jnp.allclose(out, ref, rtol=2e-2, atol=2e-2), (
        float(jnp.max(jnp.abs(out - ref))))
    print("KERNEL_OK")
</pallas_src>

<mosaic_0001>
module attributes {stable_mosaic.version = 11 : i64} {
  func.func @_pointwise_convs_kernel(%arg0: i32, %arg1: i32, %arg2: memref<1x4x512xf32, #tpu.memory_space<vmem>>, %arg3: memref<12x4xf32, #tpu.memory_space<vmem>>, %arg4: memref<12x1xf32, #tpu.memory_space<vmem>>, %arg5: memref<1x12x512xbf16, #tpu.memory_space<vmem>>) attributes {dimension_semantics = [#tpu.dimension_semantics<parallel>, #tpu.dimension_semantics<parallel>], iteration_bounds = array<i64: 2, 1>, scalar_prefetch = 0 : i64, scratch_operands = 0 : i64, tpu.core_type = #tpu.core_type<tc>, window_params = [{transform_indices = @transform_0, window_bounds = array<i64: 1, 4, 512>}, {pipeline_mode = #tpu.pipeline_mode<synchronous>, transform_indices = @transform_1, window_bounds = array<i64: 12, 4>}, {pipeline_mode = #tpu.pipeline_mode<synchronous>, transform_indices = @transform_2, window_bounds = array<i64: 12, 1>}, {transform_indices = @transform_3, window_bounds = array<i64: 1, 12, 512>}]} {
    %c0 = arith.constant 0 : index
    %c0_0 = arith.constant 0 : index
    %c0_1 = arith.constant 0 : index
    %0 = vector.load %arg2[%c0, %c0_0, %c0_1] : memref<1x4x512xf32, #tpu.memory_space<vmem>>, vector<1x4x512xf32>
    %1 = vector.shape_cast %0 : vector<1x4x512xf32> to vector<4x512xf32>
    %c0_2 = arith.constant 0 : index
    %c0_3 = arith.constant 0 : index
    %2 = vector.load %arg3[%c0_2, %c0_3] : memref<12x4xf32, #tpu.memory_space<vmem>>, vector<12x4xf32>
    %cst = arith.constant dense<0.000000e+00> : vector<12x512xf32>
    %3 = tpu.matmul %2, %1, %cst {dimension_numbers = #tpu.dot_dimension_numbers<[1], [0], [0], [1], [0, 0, 1, 1], [], []>} : vector<12x4xf32>, vector<4x512xf32>, vector<12x512xf32> -> vector<12x512xf32>
    %c0_4 = arith.constant 0 : index
    %c0_5 = arith.constant 0 : index
    %4 = vector.load %arg4[%c0_4, %c0_5] : memref<12x1xf32, #tpu.memory_space<vmem>>, vector<12x1xf32>
    %5 = vector.broadcast %4 : vector<12x1xf32> to vector<12x512xf32>
    %6 = arith.addf %3, %5 : vector<12x512xf32>
    %7 = arith.truncf %6 : vector<12x512xf32> to vector<12x512xbf16>
    %c0_6 = arith.constant 0 : index
    %c0_7 = arith.constant 0 : index
    %c0_8 = arith.constant 0 : index
    %8 = vector.load %arg5[%c0_6, %c0_7, %c0_8] : memref<1x12x512xbf16, #tpu.memory_space<vmem>>, vector<1x12x512xbf16>
    %9 = vector.shape_cast %8 : vector<1x12x512xbf16> to vector<12x512xbf16>
    %10 = vector.shape_cast %7 : vector<12x512xbf16> to vector<1x12x512xbf16>
    tpu.vector_store %arg5[%c0_6, %c0_7, %c0_8], %10 {strides = array<i32>} : memref<1x12x512xbf16, #tpu.memory_space<vmem>>, vector<1x12x512xbf16>,
    return
  }
  func.func @transform_0(%arg0: i32, %arg1: i32) -> (i32, i32, i32) {
    %c0_i32 = arith.constant 0 : i32
    %c0_i32_0 = arith.constant 0 : i32
    return %arg0, %c0_i32, %arg1 : i32, i32, i32
  }
  func.func @transform_1(%arg0: i32, %arg1: i32) -> (i32, i32) {
    %c0_i32 = arith.constant 0 : i32
    %c0_i32_0 = arith.constant 0 : i32
    %c0_i32_1 = arith.constant 0 : i32
    return %c0_i32, %c0_i32_0 : i32, i32
  }
  func.func @transform_2(%arg0: i32, %arg1: i32) -> (i32, i32) {
    %c0_i32 = arith.constant 0 : i32
    %c0_i32_0 = arith.constant 0 : i32
    %c0_i32_1 = arith.constant 0 : i32
    return %c0_i32, %c0_i32_0 : i32, i32
  }
  func.func @transform_3(%arg0: i32, %arg1: i32) -> (i32, i32, i32) {
    %c0_i32 = arith.constant 0 : i32
    %c0_i32_0 = arith.constant 0 : i32
    return %arg0, %c0_i32, %arg1 : i32, i32, i32
  }
}

module attributes {stable_mosaic.version = 11 : i64} {
  func.func @_score_kernel(%arg0: i32, %arg1: i32, %arg2: memref<1x1x8x8xbf16, #tpu.memory_space<vmem>>, %arg3: memref<1x1x8x8xbf16, #tpu.memory_space<vmem>>, %arg4: memref<1x8x8xf32, #tpu.memory_space<vmem>>) attributes {dimension_semantics = [#tpu.dimension_semantics<parallel>, #tpu.dimension_semantics<arbitrary>], iteration_bounds = array<i64: 2, 32>, scalar_prefetch = 0 : i64, scratch_operands = 0 : i64, tpu.core_type = #tpu.core_type<tc>, window_params = [{transform_indices = @transform_0, window_bounds = array<i64: 1, 1, 8, 8>}, {transform_indices = @transform_1, window_bounds = array<i64: 1, 1, 8, 8>}, {transform_indices = @transform_2, window_bounds = array<i64: 1, 8, 8>}]} {
    %c0_i32 = arith.constant 0 : i32
    %0 = arith.cmpi eq, %arg1, %c0_i32 : i32
    %1 = arith.extui %0 : i1 to i32
    %c0_i32_0 = arith.constant 0 : i32
    %2 = arith.cmpi ne, %1, %c0_i32_0 : i32
    scf.if %2 {
      %cst_15 = arith.constant 0.000000e+00 : f32
      %19 = vector.broadcast %cst_15 : f32 to vector<1x8x8xf32>
      %c0_16 = arith.constant 0 : index
      %c0_17 = arith.constant 0 : index
      %c0_18 = arith.constant 0 : index
      %20 = vector.load %arg4[%c0_16, %c0_17, %c0_18] : memref<1x8x8xf32, #tpu.memory_space<vmem>>, vector<1x8x8xf32>
      tpu.vector_store %arg4[%c0_16, %c0_17, %c0_18], %19 {strides = array<i32>} : memref<1x8x8xf32, #tpu.memory_space<vmem>>, vector<1x8x8xf32>,
    } else {
    }
    %c0 = arith.constant 0 : index
    %c0_1 = arith.constant 0 : index
    %c0_2 = arith.constant 0 : index
    %c0_3 = arith.constant 0 : index
    %3 = vector.load %arg2[%c0, %c0_1, %c0_2, %c0_3] : memref<1x1x8x8xbf16, #tpu.memory_space<vmem>>, vector<1x1x8x8xbf16>
    %4 = vector.shape_cast %3 : vector<1x1x8x8xbf16> to vector<8x8xbf16>
    %5 = arith.extf %4 : vector<8x8xbf16> to vector<8x8xf32>
    %c0_4 = arith.constant 0 : index
    %c0_5 = arith.constant 0 : index
    %c0_6 = arith.constant 0 : index
    %c0_7 = arith.constant 0 : index
    %6 = vector.load %arg3[%c0_4, %c0_5, %c0_6, %c0_7] : memref<1x1x8x8xbf16, #tpu.memory_space<vmem>>, vector<1x1x8x8xbf16>
    %7 = vector.shape_cast %6 : vector<1x1x8x8xbf16> to vector<8x8xbf16>
    %8 = arith.extf %7 : vector<8x8xbf16> to vector<8x8xf32>
    %c0_8 = arith.constant 0 : index
    %c0_9 = arith.constant 0 : index
    %c0_10 = arith.constant 0 : index
    %9 = vector.load %arg4[%c0_8, %c0_9, %c0_10] : memref<1x8x8xf32, #tpu.memory_space<vmem>>, vector<1x8x8xf32>
    %10 = vector.shape_cast %9 : vector<1x8x8xf32> to vector<8x8xf32>
    %cst = arith.constant dense<0.000000e+00> : vector<8x8xf32>
    %11 = tpu.matmul %5, %8, %cst {dimension_numbers = #tpu.dot_dimension_numbers<[1], [1], [0], [0], [0, 0, 1, 0], [], []>} : vector<8x8xf32>, vector<8x8xf32>, vector<8x8xf32> -> vector<8x8xf32>
    %12 = arith.addf %10, %11 : vector<8x8xf32>
    %c0_11 = arith.constant 0 : index
    %c0_12 = arith.constant 0 : index
    %c0_13 = arith.constant 0 : index
    %13 = vector.load %arg4[%c0_11, %c0_12, %c0_13] : memref<1x8x8xf32, #tpu.memory_space<vmem>>, vector<1x8x8xf32>
    %14 = vector.shape_cast %13 : vector<1x8x8xf32> to vector<8x8xf32>
    %15 = vector.shape_cast %12 : vector<8x8xf32> to vector<1x8x8xf32>
    tpu.vector_store %arg4[%c0_11, %c0_12, %c0_13], %15 {strides = array<i32>} : memref<1x8x8xf32, #tpu.memory_space<vmem>>, vector<1x8x8xf32>,
    %c31_i32 = arith.constant 31 : i32
    %16 = arith.cmpi eq, %arg1, %c31_i32 : i32
    %17 = arith.extui %16 : i1 to i32
    %c0_i32_14 = arith.constant 0 : i32
    %18 = arith.cmpi ne, %17, %c0_i32_14 : i32
    scf.if %18 {
      %c0_15 = arith.constant 0 : index
      %c0_16 = arith.constant 0 : index
      %c0_17 = arith.constant 0 : index
      %19 = vector.load %arg4[%c0_15, %c0_16, %c0_17] : memref<1x8x8xf32, #tpu.memory_space<vmem>>, vector<1x8x8xf32>
      %20 = vector.shape_cast %19 : vector<1x8x8xf32> to vector<8x8xf32>
      %cst_18 = arith.constant dense<0xFF800000> : vector<8xf32>
      %21 = vector.multi_reduction <maximumf>, %20, %cst_18 [1] : vector<8x8xf32> to vector<8xf32>
      %22 = vector.shape_cast %21 : vector<8xf32> to vector<8x1xf32>
      %23 = vector.broadcast %22 : vector<8x1xf32> to vector<8x8xf32>
      %24 = arith.subf %20, %23 : vector<8x8xf32>
      %25 = math.exp %24 : vector<8x8xf32>
      %cst_19 = arith.constant dense<0.000000e+00> : vector<8xf32>
      %26 = vector.multi_reduction <add>, %25, %cst_19 [1] : vector<8x8xf32> to vector<8xf32>
      %27 = vector.shape_cast %26 : vector<8xf32> to vector<8x1xf32>
      %28 = tpu.reciprocal %27 {approx = true} : vector<8x1xf32> -> vector<8x1xf32>
      %29 = vector.broadcast %28 : vector<8x1xf32> to vector<8x8xf32>
      %30 = arith.mulf %25, %29 : vector<8x8xf32>
      %c0_20 = arith.constant 0 : index
      %c0_21 = arith.constant 0 : index
      %c0_22 = arith.constant 0 : index
      %31 = vector.load %arg4[%c0_20, %c0_21, %c0_22] : memref<1x8x8xf32, #tpu.memory_space<vmem>>, vector<1x8x8xf32>
      %32 = vector.shape_cast %31 : vector<1x8x8xf32> to vector<8x8xf32>
      %33 = vector.shape_cast %30 : vector<8x8xf32> to vector<1x8x8xf32>
      tpu.vector_store %arg4[%c0_20, %c0_21, %c0_22], %33 {strides = array<i32>} : memref<1x8x8xf32, #tpu.memory_space<vmem>>, vector<1x8x8xf32>,
    } else {
    }
    return
  }
  func.func @transform_0(%arg0: i32, %arg1: i32) -> (i32, i32, i32, i32) {
    %c0_i32 = arith.constant 0 : i32
    %c0_i32_0 = arith.constant 0 : i32
    %c0_i32_1 = arith.constant 0 : i32
    return %arg0, %arg1, %c0_i32, %c0_i32_0 : i32, i32, i32, i32
  }
  func.func @transform_1(%arg0: i32, %arg1: i32) -> (i32, i32, i32, i32) {
    %c32_i32 = arith.constant 32 : i32
    %0 = arith.addi %c32_i32, %arg1 : i32
    %c0_i32 = arith.constant 0 : i32
    %c0_i32_0 = arith.constant 0 : i32
    %c0_i32_1 = arith.constant 0 : i32
    return %arg0, %0, %c0_i32, %c0_i32_0 : i32, i32, i32, i32
  }
  func.func @transform_2(%arg0: i32, %arg1: i32) -> (i32, i32, i32) {
    %c0_i32 = arith.constant 0 : i32
    %c0_i32_0 = arith.constant 0 : i32
    %c0_i32_1 = arith.constant 0 : i32
    return %arg0, %c0_i32, %c0_i32_0 : i32, i32, i32
  }
}

module attributes {stable_mosaic.version = 11 : i64} {
  func.func @_apply_kernel(%arg0: i32, %arg1: i32, %arg2: memref<1xf32, #tpu.memory_space<smem>>, %arg3: memref<1x8x8xf32, #tpu.memory_space<vmem>>, %arg4: memref<1x1x8x8xbf16, #tpu.memory_space<vmem>>, %arg5: memref<1x1x8x8xf32, #tpu.memory_space<vmem>>, %arg6: memref<1x1x8x8xf32, #tpu.memory_space<vmem>>) attributes {dimension_semantics = [#tpu.dimension_semantics<parallel>, #tpu.dimension_semantics<parallel>], iteration_bounds = array<i64: 2, 32>, scalar_prefetch = 0 : i64, scratch_operands = 0 : i64, tpu.core_type = #tpu.core_type<tc>, window_params = [{transform_indices = @transform_0, window_bounds = array<i64: 1>}, {transform_indices = @transform_1, window_bounds = array<i64: 1, 8, 8>}, {transform_indices = @transform_2, window_bounds = array<i64: 1, 1, 8, 8>}, {transform_indices = @transform_3, window_bounds = array<i64: 1, 1, 8, 8>}, {transform_indices = @transform_4, window_bounds = array<i64: 1, 1, 8, 8>}]} {
    %c0 = arith.constant 0 : index
    %c0_0 = arith.constant 0 : index
    %c0_1 = arith.constant 0 : index
    %0 = vector.load %arg3[%c0, %c0_0, %c0_1] : memref<1x8x8xf32, #tpu.memory_space<vmem>>, vector<1x8x8xf32>
    %1 = vector.shape_cast %0 : vector<1x8x8xf32> to vector<8x8xf32>
    %c0_2 = arith.constant 0 : index
    %c0_3 = arith.constant 0 : index
    %c0_4 = arith.constant 0 : index
    %c0_5 = arith.constant 0 : index
    %2 = vector.load %arg4[%c0_2, %c0_3, %c0_4, %c0_5] : memref<1x1x8x8xbf16, #tpu.memory_space<vmem>>, vector<1x1x8x8xbf16>
    %3 = vector.shape_cast %2 : vector<1x1x8x8xbf16> to vector<8x8xbf16>
    %4 = arith.extf %3 : vector<8x8xbf16> to vector<8x8xf32>
    %cst = arith.constant dense<0.000000e+00> : vector<8x8xf32>
    %5 = tpu.matmul %1, %4, %cst {dimension_numbers = #tpu.dot_dimension_numbers<[1], [0], [0], [1], [0, 0, 1, 1], [], []>} : vector<8x8xf32>, vector<8x8xf32>, vector<8x8xf32> -> vector<8x8xf32>
    %c0_6 = arith.constant 0 : index
    %c0_7 = arith.constant 0 : index
    %c0_8 = arith.constant 0 : index
    %c0_9 = arith.constant 0 : index
    %6 = vector.load %arg5[%c0_6, %c0_7, %c0_8, %c0_9] : memref<1x1x8x8xf32, #tpu.memory_space<vmem>>, vector<1x1x8x8xf32>
    %7 = vector.shape_cast %6 : vector<1x1x8x8xf32> to vector<8x8xf32>
    %c0_10 = arith.constant 0 : index
    %8 = memref.load %arg2[%c0_10] : memref<1xf32, #tpu.memory_space<smem>>
    %9 = vector.broadcast %8 : f32 to vector<8x8xf32>
    %10 = arith.mulf %9, %5 : vector<8x8xf32>
    %11 = arith.addf %7, %10 : vector<8x8xf32>
    %c0_11 = arith.constant 0 : index
    %c0_12 = arith.constant 0 : index
    %c0_13 = arith.constant 0 : index
    %c0_14 = arith.constant 0 : index
    %12 = vector.load %arg6[%c0_11, %c0_12, %c0_13, %c0_14] : memref<1x1x8x8xf32, #tpu.memory_space<vmem>>, vector<1x1x8x8xf32>
    %13 = vector.shape_cast %12 : vector<1x1x8x8xf32> to vector<8x8xf32>
    %14 = vector.shape_cast %11 : vector<8x8xf32> to vector<1x1x8x8xf32>
    tpu.vector_store %arg6[%c0_11, %c0_12, %c0_13, %c0_14], %14 {strides = array<i32>} : memref<1x1x8x8xf32, #tpu.memory_space<vmem>>, vector<1x1x8x8xf32>,
    return
  }
  func.func @transform_0(%arg0: i32, %arg1: i32) -> i32 {
    %c0_i32 = arith.constant 0 : i32
    %c0_i32_0 = arith.constant 0 : i32
    return %c0_i32 : i32
  }
  func.func @transform_1(%arg0: i32, %arg1: i32) -> (i32, i32, i32) {
    %c0_i32 = arith.constant 0 : i32
    %c0_i32_0 = arith.constant 0 : i32
    %c0_i32_1 = arith.constant 0 : i32
    return %arg0, %c0_i32, %c0_i32_0 : i32, i32, i32
  }
  func.func @transform_2(%arg0: i32, %arg1: i32) -> (i32, i32, i32, i32) {
    %c64_i32 = arith.constant 64 : i32
    %0 = arith.addi %c64_i32, %arg1 : i32
    %c0_i32 = arith.constant 0 : i32
    %c0_i32_0 = arith.constant 0 : i32
    %c0_i32_1 = arith.constant 0 : i32
    return %arg0, %0, %c0_i32, %c0_i32_0 : i32, i32, i32, i32
  }
  func.func @transform_3(%arg0: i32, %arg1: i32) -> (i32, i32, i32, i32) {
    %c0_i32 = arith.constant 0 : i32
    %c0_i32_0 = arith.constant 0 : i32
    %c0_i32_1 = arith.constant 0 : i32
    return %arg0, %arg1, %c0_i32, %c0_i32_0 : i32, i32, i32, i32
  }
  func.func @transform_4(%arg0: i32, %arg1: i32) -> (i32, i32, i32, i32) {
    %c0_i32 = arith.constant 0 : i32
    %c0_i32_0 = arith.constant 0 : i32
    %c0_i32_1 = arith.constant 0 : i32
    return %arg0, %arg1, %c0_i32, %c0_i32_0 : i32, i32, i32, i32
  }
}

module attributes {stable_mosaic.version = 11 : i64} {
  func.func @_score_kernel(%arg0: i32, %arg1: i32, %arg2: memref<1x1x8x8xbf16, #tpu.memory_space<vmem>>, %arg3: memref<1x1x8x8xbf16, #tpu.memory_space<vmem>>, %arg4: memref<1x8x8xf32, #tpu.memory_space<vmem>>) attributes {dimension_semantics = [#tpu.dimension_semantics<parallel>, #tpu.dimension_semantics<arbitrary>], iteration_bounds = array<i64: 2, 32>, scalar_prefetch = 0 : i64, scratch_operands = 0 : i64, tpu.core_type = #tpu.core_type<tc>, window_params = [{transform_indices = @transform_0, window_bounds = array<i64: 1, 1, 8, 8>}, {transform_indices = @transform_1, window_bounds = array<i64: 1, 1, 8, 8>}, {transform_indices = @transform_2, window_bounds = array<i64: 1, 8, 8>}]} {
    %c0_i32 = arith.constant 0 : i32
    %0 = arith.cmpi eq, %arg1, %c0_i32 : i32
    %1 = arith.extui %0 : i1 to i32
    %c0_i32_0 = arith.constant 0 : i32
    %2 = arith.cmpi ne, %1, %c0_i32_0 : i32
    scf.if %2 {
      %cst_15 = arith.constant 0.000000e+00 : f32
      %19 = vector.broadcast %cst_15 : f32 to vector<1x8x8xf32>
      %c0_16 = arith.constant 0 : index
      %c0_17 = arith.constant 0 : index
      %c0_18 = arith.constant 0 : index
      %20 = vector.load %arg4[%c0_16, %c0_17, %c0_18] : memref<1x8x8xf32, #tpu.memory_space<vmem>>, vector<1x8x8xf32>
      tpu.vector_store %arg4[%c0_16, %c0_17, %c0_18], %19 {strides = array<i32>} : memref<1x8x8xf32, #tpu.memory_space<vmem>>, vector<1x8x8xf32>,
    } else {
    }
    %c0 = arith.constant 0 : index
    %c0_1 = arith.constant 0 : index
    %c0_2 = arith.constant 0 : index
    %c0_3 = arith.constant 0 : index
    %3 = vector.load %arg2[%c0, %c0_1, %c0_2, %c0_3] : memref<1x1x8x8xbf16, #tpu.memory_space<vmem>>, vector<1x1x8x8xbf16>
    %4 = vector.shape_cast %3 : vector<1x1x8x8xbf16> to vector<8x8xbf16>
    %5 = arith.extf %4 : vector<8x8xbf16> to vector<8x8xf32>
    %c0_4 = arith.constant 0 : index
    %c0_5 = arith.constant 0 : index
    %c0_6 = arith.constant 0 : index
    %c0_7 = arith.constant 0 : index
    %6 = vector.load %arg3[%c0_4, %c0_5, %c0_6, %c0_7] : memref<1x1x8x8xbf16, #tpu.memory_space<vmem>>, vector<1x1x8x8xbf16>
    %7 = vector.shape_cast %6 : vector<1x1x8x8xbf16> to vector<8x8xbf16>
    %8 = arith.extf %7 : vector<8x8xbf16> to vector<8x8xf32>
    %c0_8 = arith.constant 0 : index
    %c0_9 = arith.constant 0 : index
    %c0_10 = arith.constant 0 : index
    %9 = vector.load %arg4[%c0_8, %c0_9, %c0_10] : memref<1x8x8xf32, #tpu.memory_space<vmem>>, vector<1x8x8xf32>
    %10 = vector.shape_cast %9 : vector<1x8x8xf32> to vector<8x8xf32>
    %cst = arith.constant dense<0.000000e+00> : vector<8x8xf32>
    %11 = tpu.matmul %5, %8, %cst {dimension_numbers = #tpu.dot_dimension_numbers<[0], [0], [1], [1], [0, 1, 1, 1], [], []>} : vector<8x8xf32>, vector<8x8xf32>, vector<8x8xf32> -> vector<8x8xf32>
    %12 = arith.addf %10, %11 : vector<8x8xf32>
    %c0_11 = arith.constant 0 : index
    %c0_12 = arith.constant 0 : index
    %c0_13 = arith.constant 0 : index
    %13 = vector.load %arg4[%c0_11, %c0_12, %c0_13] : memref<1x8x8xf32, #tpu.memory_space<vmem>>, vector<1x8x8xf32>
    %14 = vector.shape_cast %13 : vector<1x8x8xf32> to vector<8x8xf32>
    %15 = vector.shape_cast %12 : vector<8x8xf32> to vector<1x8x8xf32>
    tpu.vector_store %arg4[%c0_11, %c0_12, %c0_13], %15 {strides = array<i32>} : memref<1x8x8xf32, #tpu.memory_space<vmem>>, vector<1x8x8xf32>,
    %c31_i32 = arith.constant 31 : i32
    %16 = arith.cmpi eq, %arg1, %c31_i32 : i32
    %17 = arith.extui %16 : i1 to i32
    %c0_i32_14 = arith.constant 0 : i32
    %18 = arith.cmpi ne, %17, %c0_i32_14 : i32
    scf.if %18 {
      %c0_15 = arith.constant 0 : index
      %c0_16 = arith.constant 0 : index
      %c0_17 = arith.constant 0 : index
      %19 = vector.load %arg4[%c0_15, %c0_16, %c0_17] : memref<1x8x8xf32, #tpu.memory_space<vmem>>, vector<1x8x8xf32>
      %20 = vector.shape_cast %19 : vector<1x8x8xf32> to vector<8x8xf32>
      %cst_18 = arith.constant dense<0xFF800000> : vector<8xf32>
      %21 = vector.multi_reduction <maximumf>, %20, %cst_18 [1] : vector<8x8xf32> to vector<8xf32>
      %22 = vector.shape_cast %21 : vector<8xf32> to vector<8x1xf32>
      %23 = vector.broadcast %22 : vector<8x1xf32> to vector<8x8xf32>
      %24 = arith.subf %20, %23 : vector<8x8xf32>
      %25 = math.exp %24 : vector<8x8xf32>
      %cst_19 = arith.constant dense<0.000000e+00> : vector<8xf32>
      %26 = vector.multi_reduction <add>, %25, %cst_19 [1] : vector<8x8xf32> to vector<8xf32>
      %27 = vector.shape_cast %26 : vector<8xf32> to vector<8x1xf32>
      %28 = tpu.reciprocal %27 {approx = true} : vector<8x1xf32> -> vector<8x1xf32>
      %29 = vector.broadcast %28 : vector<8x1xf32> to vector<8x8xf32>
      %30 = arith.mulf %25, %29 : vector<8x8xf32>
      %c0_20 = arith.constant 0 : index
      %c0_21 = arith.constant 0 : index
      %c0_22 = arith.constant 0 : index
      %31 = vector.load %arg4[%c0_20, %c0_21, %c0_22] : memref<1x8x8xf32, #tpu.memory_space<vmem>>, vector<1x8x8xf32>
      %32 = vector.shape_cast %31 : vector<1x8x8xf32> to vector<8x8xf32>
      %33 = vector.shape_cast %30 : vector<8x8xf32> to vector<1x8x8xf32>
      tpu.vector_store %arg4[%c0_20, %c0_21, %c0_22], %33 {strides = array<i32>} : memref<1x8x8xf32, #tpu.memory_space<vmem>>, vector<1x8x8xf32>,
    } else {
    }
    return
  }
  func.func @transform_0(%arg0: i32, %arg1: i32) -> (i32, i32, i32, i32) {
    %c0_i32 = arith.constant 0 : i32
    %c0_i32_0 = arith.constant 0 : i32
    %c0_i32_1 = arith.constant 0 : i32
    return %arg0, %arg1, %c0_i32, %c0_i32_0 : i32, i32, i32, i32
  }
  func.func @transform_1(%arg0: i32, %arg1: i32) -> (i32, i32, i32, i32) {
    %c32_i32 = arith.constant 32 : i32
    %0 = arith.addi %c32_i32, %arg1 : i32
    %c0_i32 = arith.constant 0 : i32
    %c0_i32_0 = arith.constant 0 : i32
    %c0_i32_1 = arith.constant 0 : i32
    return %arg0, %0, %c0_i32, %c0_i32_0 : i32, i32, i32, i32
  }
  func.func @transform_2(%arg0: i32, %arg1: i32) -> (i32, i32, i32) {
    %c0_i32 = arith.constant 0 : i32
    %c0_i32_0 = arith.constant 0 : i32
    %c0_i32_1 = arith.constant 0 : i32
    return %arg0, %c0_i32, %c0_i32_0 : i32, i32, i32
  }
}

module attributes {stable_mosaic.version = 11 : i64} {
  func.func @_apply_kernel(%arg0: i32, %arg1: i32, %arg2: memref<1xf32, #tpu.memory_space<smem>>, %arg3: memref<1x8x8xf32, #tpu.memory_space<vmem>>, %arg4: memref<1x1x8x8xbf16, #tpu.memory_space<vmem>>, %arg5: memref<1x1x8x8xf32, #tpu.memory_space<vmem>>, %arg6: memref<1x1x8x8xf32, #tpu.memory_space<vmem>>) attributes {dimension_semantics = [#tpu.dimension_semantics<parallel>, #tpu.dimension_semantics<parallel>], iteration_bounds = array<i64: 2, 32>, scalar_prefetch = 0 : i64, scratch_operands = 0 : i64, tpu.core_type = #tpu.core_type<tc>, window_params = [{transform_indices = @transform_0, window_bounds = array<i64: 1>}, {transform_indices = @transform_1, window_bounds = array<i64: 1, 8, 8>}, {transform_indices = @transform_2, window_bounds = array<i64: 1, 1, 8, 8>}, {transform_indices = @transform_3, window_bounds = array<i64: 1, 1, 8, 8>}, {transform_indices = @transform_4, window_bounds = array<i64: 1, 1, 8, 8>}]} {
    %c0 = arith.constant 0 : index
    %c0_0 = arith.constant 0 : index
    %c0_1 = arith.constant 0 : index
    %0 = vector.load %arg3[%c0, %c0_0, %c0_1] : memref<1x8x8xf32, #tpu.memory_space<vmem>>, vector<1x8x8xf32>
    %1 = vector.shape_cast %0 : vector<1x8x8xf32> to vector<8x8xf32>
    %c0_2 = arith.constant 0 : index
    %c0_3 = arith.constant 0 : index
    %c0_4 = arith.constant 0 : index
    %c0_5 = arith.constant 0 : index
    %2 = vector.load %arg4[%c0_2, %c0_3, %c0_4, %c0_5] : memref<1x1x8x8xbf16, #tpu.memory_space<vmem>>, vector<1x1x8x8xbf16>
    %3 = vector.shape_cast %2 : vector<1x1x8x8xbf16> to vector<8x8xbf16>
    %4 = arith.extf %3 : vector<8x8xbf16> to vector<8x8xf32>
    %cst = arith.constant dense<0.000000e+00> : vector<8x8xf32>
    %5 = tpu.matmul %4, %1, %cst {dimension_numbers = #tpu.dot_dimension_numbers<[1], [1], [0], [0], [0, 0, 1, 0], [], []>} : vector<8x8xf32>, vector<8x8xf32>, vector<8x8xf32> -> vector<8x8xf32>
    %c0_6 = arith.constant 0 : index
    %c0_7 = arith.constant 0 : index
    %c0_8 = arith.constant 0 : index
    %c0_9 = arith.constant 0 : index
    %6 = vector.load %arg5[%c0_6, %c0_7, %c0_8, %c0_9] : memref<1x1x8x8xf32, #tpu.memory_space<vmem>>, vector<1x1x8x8xf32>
    %7 = vector.shape_cast %6 : vector<1x1x8x8xf32> to vector<8x8xf32>
    %c0_10 = arith.constant 0 : index
    %8 = memref.load %arg2[%c0_10] : memref<1xf32, #tpu.memory_space<smem>>
    %9 = vector.broadcast %8 : f32 to vector<8x8xf32>
    %10 = arith.mulf %9, %5 : vector<8x8xf32>
    %11 = arith.addf %7, %10 : vector<8x8xf32>
    %c0_11 = arith.constant 0 : index
    %c0_12 = arith.constant 0 : index
    %c0_13 = arith.constant 0 : index
    %c0_14 = arith.constant 0 : index
    %12 = vector.load %arg6[%c0_11, %c0_12, %c0_13, %c0_14] : memref<1x1x8x8xf32, #tpu.memory_space<vmem>>, vector<1x1x8x8xf32>
    %13 = vector.shape_cast %12 : vector<1x1x8x8xf32> to vector<8x8xf32>
    %14 = vector.shape_cast %11 : vector<8x8xf32> to vector<1x1x8x8xf32>
    tpu.vector_store %arg6[%c0_11, %c0_12, %c0_13, %c0_14], %14 {strides = array<i32>} : memref<1x1x8x8xf32, #tpu.memory_space<vmem>>, vector<1x1x8x8xf32>,
    return
  }
  func.func @transform_0(%arg0: i32, %arg1: i32) -> i32 {
    %c0_i32 = arith.constant 0 : i32
    %c0_i32_0 = arith.constant 0 : i32
    return %c0_i32 : i32
  }
  func.func @transform_1(%arg0: i32, %arg1: i32) -> (i32, i32, i32) {
    %c0_i32 = arith.constant 0 : i32
    %c0_i32_0 = arith.constant 0 : i32
    %c0_i32_1 = arith.constant 0 : i32
    return %arg0, %c0_i32, %c0_i32_0 : i32, i32, i32
  }
  func.func @transform_2(%arg0: i32, %arg1: i32) -> (i32, i32, i32, i32) {
    %c64_i32 = arith.constant 64 : i32
    %0 = arith.addi %c64_i32, %arg1 : i32
    %c0_i32 = arith.constant 0 : i32
    %c0_i32_0 = arith.constant 0 : i32
    %c0_i32_1 = arith.constant 0 : i32
    return %arg0, %0, %c0_i32, %c0_i32_0 : i32, i32, i32, i32
  }
  func.func @transform_3(%arg0: i32, %arg1: i32) -> (i32, i32, i32, i32) {
    %c0_i32 = arith.constant 0 : i32
    %c0_i32_0 = arith.constant 0 : i32
    %c0_i32_1 = arith.constant 0 : i32
    return %arg0, %arg1, %c0_i32, %c0_i32_0 : i32, i32, i32, i32
  }
  func.func @transform_4(%arg0: i32, %arg1: i32) -> (i32, i32, i32, i32) {
    %c0_i32 = arith.constant 0 : i32
    %c0_i32_0 = arith.constant 0 : i32
    %c0_i32_1 = arith.constant 0 : i32
    return %arg0, %arg1, %c0_i32, %c0_i32_0 : i32, i32, i32, i32
  }
}

module attributes {stable_mosaic.version = 11 : i64} {
  func.func @_score_kernel(%arg0: i32, %arg1: i32, %arg2: memref<1x1x8x64xbf16, #tpu.memory_space<vmem>>, %arg3: memref<1x1x8x64xbf16, #tpu.memory_space<vmem>>, %arg4: memref<1x8x8xf32, #tpu.memory_space<vmem>>) attributes {dimension_semantics = [#tpu.dimension_semantics<parallel>, #tpu.dimension_semantics<arbitrary>], iteration_bounds = array<i64: 2, 4>, scalar_prefetch = 0 : i64, scratch_operands = 0 : i64, tpu.core_type = #tpu.core_type<tc>, window_params = [{transform_indices = @transform_0, window_bounds = array<i64: 1, 1, 8, 64>}, {transform_indices = @transform_1, window_bounds = array<i64: 1, 1, 8, 64>}, {transform_indices = @transform_2, window_bounds = array<i64: 1, 8, 8>}]} {
    %c0_i32 = arith.constant 0 : i32
    %0 = arith.cmpi eq, %arg1, %c0_i32 : i32
    %1 = arith.extui %0 : i1 to i32
    %c0_i32_0 = arith.constant 0 : i32
    %2 = arith.cmpi ne, %1, %c0_i32_0 : i32
    scf.if %2 {
      %cst_15 = arith.constant 0.000000e+00 : f32
      %19 = vector.broadcast %cst_15 : f32 to vector<1x8x8xf32>
      %c0_16 = arith.constant 0 : index
      %c0_17 = arith.constant 0 : index
      %c0_18 = arith.constant 0 : index
      %20 = vector.load %arg4[%c0_16, %c0_17, %c0_18] : memref<1x8x8xf32, #tpu.memory_space<vmem>>, vector<1x8x8xf32>
      tpu.vector_store %arg4[%c0_16, %c0_17, %c0_18], %19 {strides = array<i32>} : memref<1x8x8xf32, #tpu.memory_space<vmem>>, vector<1x8x8xf32>,
    } else {
    }
    %c0 = arith.constant 0 : index
    %c0_1 = arith.constant 0 : index
    %c0_2 = arith.constant 0 : index
    %c0_3 = arith.constant 0 : index
    %3 = vector.load %arg2[%c0, %c0_1, %c0_2, %c0_3] : memref<1x1x8x64xbf16, #tpu.memory_space<vmem>>, vector<1x1x8x64xbf16>
    %4 = vector.shape_cast %3 : vector<1x1x8x64xbf16> to vector<8x64xbf16>
    %5 = arith.extf %4 : vector<8x64xbf16> to vector<8x64xf32>
    %c0_4 = arith.constant 0 : index
    %c0_5 = arith.constant 0 : index
    %c0_6 = arith.constant 0 : index
    %c0_7 = arith.constant 0 : index
    %6 = vector.load %arg3[%c0_4, %c0_5, %c0_6, %c0_7] : memref<1x1x8x64xbf16, #tpu.memory_space<vmem>>, vector<1x1x8x64xbf16>
    %7 = vector.shape_cast %6 : vector<1x1x8x64xbf16> to vector<8x64xbf16>
    %8 = arith.extf %7 : vector<8x64xbf16> to vector<8x64xf32>
    %c0_8 = arith.constant 0 : index
    %c0_9 = arith.constant 0 : index
    %c0_10 = arith.constant 0 : index
    %9 = vector.load %arg4[%c0_8, %c0_9, %c0_10] : memref<1x8x8xf32, #tpu.memory_space<vmem>>, vector<1x8x8xf32>
    %10 = vector.shape_cast %9 : vector<1x8x8xf32> to vector<8x8xf32>
    %cst = arith.constant dense<0.000000e+00> : vector<8x8xf32>
    %11 = tpu.matmul %5, %8, %cst {dimension_numbers = #tpu.dot_dimension_numbers<[1], [1], [0], [0], [0, 0, 1, 0], [], []>} : vector<8x64xf32>, vector<8x64xf32>, vector<8x8xf32> -> vector<8x8xf32>
    %12 = arith.addf %10, %11 : vector<8x8xf32>
    %c0_11 = arith.constant 0 : index
    %c0_12 = arith.constant 0 : index
    %c0_13 = arith.constant 0 : index
    %13 = vector.load %arg4[%c0_11, %c0_12, %c0_13] : memref<1x8x8xf32, #tpu.memory_space<vmem>>, vector<1x8x8xf32>
    %14 = vector.shape_cast %13 : vector<1x8x8xf32> to vector<8x8xf32>
    %15 = vector.shape_cast %12 : vector<8x8xf32> to vector<1x8x8xf32>
    tpu.vector_store %arg4[%c0_11, %c0_12, %c0_13], %15 {strides = array<i32>} : memref<1x8x8xf32, #tpu.memory_space<vmem>>, vector<1x8x8xf32>,
    %c3_i32 = arith.constant 3 : i32
    %16 = arith.cmpi eq, %arg1, %c3_i32 : i32
    %17 = arith.extui %16 : i1 to i32
    %c0_i32_14 = arith.constant 0 : i32
    %18 = arith.cmpi ne, %17, %c0_i32_14 : i32
    scf.if %18 {
      %c0_15 = arith.constant 0 : index
      %c0_16 = arith.constant 0 : index
      %c0_17 = arith.constant 0 : index
      %19 = vector.load %arg4[%c0_15, %c0_16, %c0_17] : memref<1x8x8xf32, #tpu.memory_space<vmem>>, vector<1x8x8xf32>
      %20 = vector.shape_cast %19 : vector<1x8x8xf32> to vector<8x8xf32>
      %cst_18 = arith.constant dense<0xFF800000> : vector<8xf32>
      %21 = vector.multi_reduction <maximumf>, %20, %cst_18 [1] : vector<8x8xf32> to vector<8xf32>
      %22 = vector.shape_cast %21 : vector<8xf32> to vector<8x1xf32>
      %23 = vector.broadcast %22 : vector<8x1xf32> to vector<8x8xf32>
      %24 = arith.subf %20, %23 : vector<8x8xf32>
      %25 = math.exp %24 : vector<8x8xf32>
      %cst_19 = arith.constant dense<0.000000e+00> : vector<8xf32>
      %26 = vector.multi_reduction <add>, %25, %cst_19 [1] : vector<8x8xf32> to vector<8xf32>
      %27 = vector.shape_cast %26 : vector<8xf32> to vector<8x1xf32>
      %28 = tpu.reciprocal %27 {approx = true} : vector<8x1xf32> -> vector<8x1xf32>
      %29 = vector.broadcast %28 : vector<8x1xf32> to vector<8x8xf32>
      %30 = arith.mulf %25, %29 : vector<8x8xf32>
      %c0_20 = arith.constant 0 : index
      %c0_21 = arith.constant 0 : index
      %c0_22 = arith.constant 0 : index
      %31 = vector.load %arg4[%c0_20, %c0_21, %c0_22] : memref<1x8x8xf32, #tpu.memory_space<vmem>>, vector<1x8x8xf32>
      %32 = vector.shape_cast %31 : vector<1x8x8xf32> to vector<8x8xf32>
      %33 = vector.shape_cast %30 : vector<8x8xf32> to vector<1x8x8xf32>
      tpu.vector_store %arg4[%c0_20, %c0_21, %c0_22], %33 {strides = array<i32>} : memref<1x8x8xf32, #tpu.memory_space<vmem>>, vector<1x8x8xf32>,
    } else {
    }
    return
  }
  func.func @transform_0(%arg0: i32, %arg1: i32) -> (i32, i32, i32, i32) {
    %c0_i32 = arith.constant 0 : i32
    %c0_i32_0 = arith.constant 0 : i32
    %c0_i32_1 = arith.constant 0 : i32
    return %arg0, %arg1, %c0_i32, %c0_i32_0 : i32, i32, i32, i32
  }
  func.func @transform_1(%arg0: i32, %arg1: i32) -> (i32, i32, i32, i32) {
    %c4_i32 = arith.constant 4 : i32
    %0 = arith.addi %c4_i32, %arg1 : i32
    %c0_i32 = arith.constant 0 : i32
    %c0_i32_0 = arith.constant 0 : i32
    %c0_i32_1 = arith.constant 0 : i32
    return %arg0, %0, %c0_i32, %c0_i32_0 : i32, i32, i32, i32
  }
  func.func @transform_2(%arg0: i32, %arg1: i32) -> (i32, i32, i32) {
    %c0_i32 = arith.constant 0 : i32
    %c0_i32_0 = arith.constant 0 : i32
    %c0_i32_1 = arith.constant 0 : i32
    return %arg0, %c0_i32, %c0_i32_0 : i32, i32, i32
  }
}

module attributes {stable_mosaic.version = 11 : i64} {
  func.func @_apply_kernel(%arg0: i32, %arg1: i32, %arg2: memref<1xf32, #tpu.memory_space<smem>>, %arg3: memref<1x8x8xf32, #tpu.memory_space<vmem>>, %arg4: memref<1x1x8x64xbf16, #tpu.memory_space<vmem>>, %arg5: memref<1x1x8x64xf32, #tpu.memory_space<vmem>>, %arg6: memref<1x1x8x64xf32, #tpu.memory_space<vmem>>) attributes {dimension_semantics = [#tpu.dimension_semantics<parallel>, #tpu.dimension_semantics<parallel>], iteration_bounds = array<i64: 2, 4>, scalar_prefetch = 0 : i64, scratch_operands = 0 : i64, tpu.core_type = #tpu.core_type<tc>, window_params = [{transform_indices = @transform_0, window_bounds = array<i64: 1>}, {transform_indices = @transform_1, window_bounds = array<i64: 1, 8, 8>}, {transform_indices = @transform_2, window_bounds = array<i64: 1, 1, 8, 64>}, {transform_indices = @transform_3, window_bounds = array<i64: 1, 1, 8, 64>}, {transform_indices = @transform_4, window_bounds = array<i64: 1, 1, 8, 64>}]} {
    %c0 = arith.constant 0 : index
    %c0_0 = arith.constant 0 : index
    %c0_1 = arith.constant 0 : index
    %0 = vector.load %arg3[%c0, %c0_0, %c0_1] : memref<1x8x8xf32, #tpu.memory_space<vmem>>, vector<1x8x8xf32>
    %1 = vector.shape_cast %0 : vector<1x8x8xf32> to vector<8x8xf32>
    %c0_2 = arith.constant 0 : index
    %c0_3 = arith.constant 0 : index
    %c0_4 = arith.constant 0 : index
    %c0_5 = arith.constant 0 : index
    %2 = vector.load %arg4[%c0_2, %c0_3, %c0_4, %c0_5] : memref<1x1x8x64xbf16, #tpu.memory_space<vmem>>, vector<1x1x8x64xbf16>
    %3 = vector.shape_cast %2 : vector<1x1x8x64xbf16> to vector<8x64xbf16>
    %4 = arith.extf %3 : vector<8x64xbf16> to vector<8x64xf32>
    %cst = arith.constant dense<0.000000e+00> : vector<8x64xf32>
    %5 = tpu.matmul %1, %4, %cst {dimension_numbers = #tpu.dot_dimension_numbers<[1], [0], [0], [1], [0, 0, 1, 1], [], []>} : vector<8x8xf32>, vector<8x64xf32>, vector<8x64xf32> -> vector<8x64xf32>
    %c0_6 = arith.constant 0 : index
    %c0_7 = arith.constant 0 : index
    %c0_8 = arith.constant 0 : index
    %c0_9 = arith.constant 0 : index
    %6 = vector.load %arg5[%c0_6, %c0_7, %c0_8, %c0_9] : memref<1x1x8x64xf32, #tpu.memory_space<vmem>>, vector<1x1x8x64xf32>
    %7 = vector.shape_cast %6 : vector<1x1x8x64xf32> to vector<8x64xf32>
    %c0_10 = arith.constant 0 : index
    %8 = memref.load %arg2[%c0_10] : memref<1xf32, #tpu.memory_space<smem>>
    %9 = vector.broadcast %8 : f32 to vector<8x64xf32>
    %10 = arith.mulf %9, %5 : vector<8x64xf32>
    %11 = arith.addf %7, %10 : vector<8x64xf32>
    %c0_11 = arith.constant 0 : index
    %c0_12 = arith.constant 0 : index
    %c0_13 = arith.constant 0 : index
    %c0_14 = arith.constant 0 : index
    %12 = vector.load %arg6[%c0_11, %c0_12, %c0_13, %c0_14] : memref<1x1x8x64xf32, #tpu.memory_space<vmem>>, vector<1x1x8x64xf32>
    %13 = vector.shape_cast %12 : vector<1x1x8x64xf32> to vector<8x64xf32>
    %14 = vector.shape_cast %11 : vector<8x64xf32> to vector<1x1x8x64xf32>
    tpu.vector_store %arg6[%c0_11, %c0_12, %c0_13, %c0_14], %14 {strides = array<i32>} : memref<1x1x8x64xf32, #tpu.memory_space<vmem>>, vector<1x1x8x64xf32>,
    return
  }
  func.func @transform_0(%arg0: i32, %arg1: i32) -> i32 {
    %c0_i32 = arith.constant 0 : i32
    %c0_i32_0 = arith.constant 0 : i32
    return %c0_i32 : i32
  }
  func.func @transform_1(%arg0: i32, %arg1: i32) -> (i32, i32, i32) {
    %c0_i32 = arith.constant 0 : i32
    %c0_i32_0 = arith.constant 0 : i32
    %c0_i32_1 = arith.constant 0 : i32
    return %arg0, %c0_i32, %c0_i32_0 : i32, i32, i32
  }
  func.func @transform_2(%arg0: i32, %arg1: i32) -> (i32, i32, i32, i32) {
    %c8_i32 = arith.constant 8 : i32
    %0 = arith.addi %c8_i32, %arg1 : i32
    %c0_i32 = arith.constant 0 : i32
    %c0_i32_0 = arith.constant 0 : i32
    %c0_i32_1 = arith.constant 0 : i32
    return %arg0, %0, %c0_i32, %c0_i32_0 : i32, i32, i32, i32
  }
  func.func @transform_3(%arg0: i32, %arg1: i32) -> (i32, i32, i32, i32) {
    %c0_i32 = arith.constant 0 : i32
    %c0_i32_0 = arith.constant 0 : i32
    %c0_i32_1 = arith.constant 0 : i32
    return %arg0, %arg1, %c0_i32, %c0_i32_0 : i32, i32, i32, i32
  }
  func.func @transform_4(%arg0: i32, %arg1: i32) -> (i32, i32, i32, i32) {
    %c0_i32 = arith.constant 0 : i32
    %c0_i32_0 = arith.constant 0 : i32
    %c0_i32_1 = arith.constant 0 : i32
    return %arg0, %arg1, %c0_i32, %c0_i32_0 : i32, i32, i32, i32
  }
}

</mosaic_0001>

<llo_original>
// kernel: rsa_block_forward.9
$region0: #{rsa_block_forward.9}
  #allocation0 [shape = 'u32[]', space=smem, size = 0x4, offset = 0x4, fixed_abs, tag = 'smem constant byte address 0x4 - core index']
  #allocation1 [shape = 'u32[72,128]{1,0:T(1,128)}', space=vmem, size = 0x9000, scoped, tag = 'internal scratch']
  %s0 = inlined_call_operand.vmem [shape: f32[2,4,512], index: 0, kind: input, shape index: {}]
  %s1 = inlined_call_operand.vmem [shape: f32[12,4], index: 1, kind: input, shape index: {}]
  %s2 = inlined_call_operand.vmem [shape: f32[12,1], index: 2, kind: input, shape index: {}]
  %s3 = inlined_call_operand.vmem [shape: bf16[2,12,512], index: 3, kind: output, shape index: {}]
  %s4 = sld [smem:[#allocation0]]
  $region45: #{rsa_block_forward.9} parent=0
    _
  %s6 = ssub.s32 1, %s4
  %s7 = scalar_select 0, %s6, %s4
  loop: start=0, step=1, limit=4
  $region2: #{rsa_block_forward.9} parent=0 // loop_pre_header
    _
  $region3: #{rsa_block_forward.9} parent=0 // loop_header
    %s9 = sphi 0, %s13
    %p10 = scmp.ge.s32.totalorder %s9, 4
    %s16 = sphi 0, %s28
    %s17 = sphi 0, %s24
    %s18 = sphi 0, %s16
    %s19 = sphi 0, %s17
    %s20 = sphi 0, %s18
    %s21 = sphi 0, %s19
    %s33 = sphi 0, %s35
    %s36 = sphi 0, %s33
    %s37 = sphi 0, %s36
    %s53 = sphi 0, %s37
    %s57 = sphi 0, %s57
    %s59 = sphi 0, %s57
    %s60 = sphi 0, %s59
    %s74 = sphi 0, %s60
    %s78 = sphi 0, %s78
    %s80 = sphi 0, %s78
    %s81 = sphi 0, %s80
    %s95 = sphi 0, %s81
    %s103 = sphi 0, %s105
    %s106 = sphi 0, %s103
    %s107 = sphi 0, %s106
    %s123 = sphi 0, %s107
  $region4: #{rsa_block_forward.9} parent=0 // loop_header_branch
    %12 = sbr.rel (%p10) target = $region8
  $region5: #{rsa_block_forward.9} parent=0 // loop_body
    %s14 = ssub.s32 %s9, 1
    %s15 = ssub.s32 %s9, 2
    %s22 = sadd.s32 1, %s17
    %p23 = scmp.ge.s32.totalorder %s22, 1
    %s24 = scalar_select %p23, 0, %s22
    %s25 = sadd.s32 1, %s16
    %s26 = scalar_select %p23, %s25, %s16
    %p27 = scmp.ge.s32.totalorder %s26, 2
    %s28 = scalar_select %p27, 0, %s26
    %s29 = ssub.s32 %s16, %s28
    %s30 = ssub.s32 %s17, %s24
    %s31 = sor.u32 %s29, %s30
    %p32 = scmp.eq.s32.totalorder %s31, 0
    %s34 = sadd.s32 %s33, 1
    %s35 = scalar_select %p32, %s33, %s34
    %p38 = pneg %p32
    %p39 = scmp.eq.s32.totalorder %s9, 1
    %p40 = por %p38, %p39
    %p41 = scmp.ne.s32.totalorder %s33, %s36
    %p42 = scmp.eq.s32.totalorder %s9, 0
    %p43 = por %p41, %p42
    %p44 = scmp.ne.s32.totalorder %s33, %s36
    %p45 = scmp.eq.s32.totalorder %s14, 1
    %p46 = por %p44, %p45
    %p47 = scmp.ne.s32.totalorder %s36, %s37
    %p48 = scmp.eq.s32.totalorder %s14, 0
    %p49 = por %p47, %p48
    %p50 = scmp.ne.s32.totalorder %s36, %s37
    %p51 = scmp.eq.s32.totalorder %s15, 1
    %p52 = por %p50, %p51
    %p54 = scmp.ne.s32.totalorder %s37, %s53
    %p55 = scmp.eq.s32.totalorder %s15, 0
    %p56 = por %p54, %p55
    %s58 = sadd.s32 %s57, 1
    %p61 = scmp.eq.s32.totalorder %s9, 1
    %p62 = scmp.ne.s32.totalorder %s57, %s59
    %p63 = scmp.eq.s32.totalorder %s9, 0
    %p64 = por %p62, %p63
    %p65 = scmp.ne.s32.totalorder %s57, %s59
    %p66 = scmp.eq.s32.totalorder %s14, 1
    %p67 = por %p65, %p66
    %p68 = scmp.ne.s32.totalorder %s59, %s60
    %p69 = scmp.eq.s32.totalorder %s14, 0
    %p70 = por %p68, %p69
    %p71 = scmp.ne.s32.totalorder %s59, %s60
    %p72 = scmp.eq.s32.totalorder %s15, 1
    %p73 = por %p71, %p72
    %p75 = scmp.ne.s32.totalorder %s60, %s74
    %p76 = scmp.eq.s32.totalorder %s15, 0
    %p77 = por %p75, %p76
    %s79 = sadd.s32 %s78, 1
    %p82 = scmp.eq.s32.totalorder %s9, 1
    %p83 = scmp.ne.s32.totalorder %s78, %s80
    %p84 = scmp.eq.s32.totalorder %s9, 0
    %p85 = por %p83, %p84
    %p86 = scmp.ne.s32.totalorder %s78, %s80
    %p87 = scmp.eq.s32.totalorder %s14, 1
    %p88 = por %p86, %p87
    %p89 = scmp.ne.s32.totalorder %s80, %s81
    %p90 = scmp.eq.s32.totalorder %s14, 0
    %p91 = por %p89, %p90
    %p92 = scmp.ne.s32.totalorder %s80, %s81
    %p93 = scmp.eq.s32.totalorder %s15, 1
    %p94 = por %p92, %p93
    %p96 = scmp.ne.s32.totalorder %s81, %s95
    %p97 = scmp.eq.s32.totalorder %s15, 0
    %p98 = por %p96, %p97
    %s99 = ssub.s32 %s16, %s28
    %s100 = ssub.s32 %s17, %s24
    %s101 = sor.u32 %s99, %s100
    %p102 = scmp.eq.s32.totalorder %s101, 0
    %s104 = sadd.s32 %s103, 1
    %s105 = scalar_select %p102, %s103, %s104
    %p108 = pneg %p102
    %p109 = scmp.eq.s32.totalorder %s9, 1
    %p110 = por %p108, %p109
    %p111 = scmp.ne.s32.totalorder %s103, %s106
    %p112 = scmp.eq.s32.totalorder %s9, 0
    %p113 = por %p111, %p112
    %p114 = scmp.ne.s32.totalorder %s103, %s106
    %p115 = scmp.eq.s32.totalorder %s14, 1
    %p116 = por %p114, %p115
    %p117 = scmp.ne.s32.totalorder %s106, %s107
    %p118 = scmp.eq.s32.totalorder %s14, 0
    %p119 = por %p117, %p118
    %p120 = scmp.ne.s32.totalorder %s106, %s107
    %p121 = scmp.eq.s32.totalorder %s15, 1
    %p122 = por %p120, %p121
    %p124 = scmp.ne.s32.totalorder %s107, %s123
    %p125 = scmp.eq.s32.totalorder %s15, 0
    %p126 = por %p124, %p125
    %p127 = scmp.le.s32.totalorder 1, %s9
    %p128 = scmp.lt.s32.totalorder %s9, 3
    %p129 = pnand %p127, %p128
    %p130 = pneg %p129
    // Predicated region
    $region9: #{rsa_block_forward.9} parent=5 // pred_check
      _
    $region10: #{rsa_block_forward.9} parent=5 // pred_check_branch
      %132 = sbr.rel (%p129) target = $region12
    $region11: #{rsa_block_forward.9} parent=5 // pred_region
      %s133 = ssub.s32 %s9, 1
      // Predicated region
      $region13: #{rsa_block_forward.9} parent=11 // pred_check
        %p134 = pneg %p70
      $region14: #{rsa_block_forward.9} parent=11 // pred_check_branch
        %136 = sbr.rel (%p134) target = $region16
      $region15: #{rsa_block_forward.9} parent=11 // pred_region
        _
      $region16: #{rsa_block_forward.9} parent=11 // pred_fallthru
        _
      // Predicated region
      $region17: #{rsa_block_forward.9} parent=11 // pred_check
        %p137 = pneg %p91
      $region18: #{rsa_block_forward.9} parent=11 // pred_check_branch
        %139 = sbr.rel (%p137) target = $region20
      $region19: #{rsa_block_forward.9} parent=11 // pred_region
        _
      $region20: #{rsa_block_forward.9} parent=11 // pred_fallthru
        _
    $region12: #{rsa_block_forward.9} parent=5 // pred_fallthru
      _
    %p140 = scmp.lt.s32.totalorder %s9, 2
    // Predicated region
    $region21: #{rsa_block_forward.9} parent=5 // pred_check
      %p141 = pneg %p140
    $region22: #{rsa_block_forward.9} parent=5 // pred_check_branch
      %143 = sbr.rel (%p141) target = $region24
    $region23: #{rsa_block_forward.9} parent=5 // pred_region
      // Predicated region
      $region25: #{rsa_block_forward.9} parent=23 // pred_check
        %p144 = pneg %p43
      $region26: #{rsa_block_forward.9} parent=23 // pred_check_branch
        %146 = sbr.rel (%p144) target = $region28
      $region27: #{rsa_block_forward.9} parent=23 // pred_region
        %s147 = smul.u32 4, %s17
        %p148 = scmp.lt.s32.totalorder %s16, 1
        %s149 = scalar_select %p148, %s16, 1
        %p150 = scmp.lt.s32.totalorder %s147, 3
        %s151 = scalar_select %p150, %s147, 3
        %s152 = smul.addr %s149, 4
        %s153 = sadd.s32 %s151, %s152
        %s154 = smul.addr %s153, 4
        %s155 = scalar_lea.vmem %s0, %s154
        %s156 = smul.u32 4, %s17
      $region28: #{rsa_block_forward.9} parent=23 // pred_fallthru
        _
    $region24: #{rsa_block_forward.9} parent=5 // pred_fallthru
      _
    %p157 = scmp.le.s32.totalorder 1, %s9
    %p158 = scmp.lt.s32.totalorder %s9, 3
    %p159 = pnand %p157, %p158
    %p160 = pneg %p159
    // Predicated region
    $region29: #{rsa_block_forward.9} parent=5 // pred_check
      _
    $region30: #{rsa_block_forward.9} parent=5 // pred_check_branch
      %162 = sbr.rel (%p159) target = $region32
    $region31: #{rsa_block_forward.9} parent=5 // pred_region
      %s163 = ssub.s32 %s9, 1
      %s164 = smul.u32 4, %s19
      %p165 = scmp.lt.s32.totalorder %s18, 1
      %s166 = scalar_select %p165, %s18, 1
      %p167 = scmp.lt.s32.totalorder %s164, 3
      %s168 = scalar_select %p167, %s164, 3
      %s169 = smul.addr %s166, 4
      %s170 = sadd.s32 %s168, %s169
      %s171 = smul.addr %s170, 4
      %s172 = scalar_lea.vmem %s0, %s171
      %p173 = pneg %p49
      %p174 = pneg %p46
      %p175 = pneg %p70
      %p176 = pneg %p67
      %p177 = pneg %p91
      %p178 = pneg %p88
      %p179 = pneg %p119
      %p180 = pneg %p116
      %s181 = smul.u32 4, %s19
      %p182 = scmp.lt.s32.totalorder %s18, 1
      %s183 = scalar_select %p182, %s18, 1
      %p184 = scmp.lt.s32.totalorder %s181, 3
      %s185 = scalar_select %p184, %s181, 3
      %s186 = smul.addr %s183, 8
      %s187 = sadd.s32 %s185, %s186
      %s188 = smul.addr %s187, 4
      %s189 = scalar_lea.vmem %s3, %s188
      %s190 = smul.u32 4, %s19
      %p191 = scmp.lt.s32.totalorder %s18, 1
      %s192 = scalar_select %p191, %s18, 1
      %p193 = scmp.lt.s32.totalorder %s190, 3
      %s194 = scalar_select %p193, %s190, 3
      %s195 = smul.addr %s192, 4
      %s196 = sadd.s32 %s194, %s195
      %s197 = smul.addr %s196, 4
      %s198 = scalar_lea.vmem %s0, %s197
      %s199 = smul.u32 4, %s19
      %s200 = smul.u32 4, %s19
      %p201 = scmp.lt.s32.totalorder %s18, 1
      %s202 = scalar_select %p201, %s18, 1
      %p203 = scmp.lt.s32.totalorder %s200, 3
      %s204 = scalar_select %p203, %s200, 3
      %s205 = smul.addr %s202, 8
      %s206 = sadd.s32 %s204, %s205
      %s207 = smul.addr %s206, 4
      %s208 = scalar_lea.vmem %s3, %s207
      %s209 = smul.u32 4, %s19
      %v210 = vld [vmem:[%s198] sm:$0xff]
      %v211 = vld [vmem:[%s198 + $0x8] sm:$0xff]
      %v212 = vld [vmem:[%s1] sm:$0xff]
      %v213 = vld [vmem:[%s1 + $0x8] sm:$0xf]
      %v214 = vld [vmem:[%s2] sm:$0xff]
      %v215 = vld [vmem:[%s2 + $0x8] sm:$0xf]
      %217 = vset.pattern.permute.xlu0 0
      %218 = vperm.xlu0 %217, %v214
      %v219 = vpop.permute.xlu0 %218
      %222 = vset.pattern.permute.xlu0 0
      %223 = vperm.xlu0 %222, %v215
      %v224 = vpop.permute.xlu0 %223
      %228 = vst [vmem:[#allocation1] ss:$2 sm:$0xff] %v210
      %s229 = scalar_lea.vmem [#allocation1], 16
      %230 = vst [vmem:[%s229] ss:$2 sm:$0xff] %v211
      %v231 = vld.sshfl [vmem:[#allocation1] sm:$0xff pattern:$0x75316420]
      %v232 = vld.sshfl [vmem:[#allocation1 + $0x8] sm:$0xff pattern:$0x75316420]
      %v233 = vld.sshfl [vmem:[#allocation1 + $0x10] sm:$0xff pattern:$0x75316420]
      %v234 = vld.sshfl [vmem:[#allocation1 + $0x18] sm:$0xff pattern:$0x75316420]
      %vm235 = vcmask 31744
      %v237 = vsel %vm235, %v212, 0
      %v240 = vsel %vm235, %v213, 0
      %vm242 = vcmask 1043456
      %v243 = vsel %vm242, %v231, 0
      %v245 = vsel %vm242, %v232, 0
      %v247 = vsel %vm242, %v233, 0
      %v249 = vsel %vm242, %v234, 0
      %251 = vmatpush.msra.mxu0 0.0
      %252 = vmatpush.msra.mxu0 0.0
      %253 = vmatpush.msra.mxu0 0.0
      %254 = vmatpush.msra.mxu0 0.0
      %255 = vmatpush.msra.mxu0 0.0
      %256 = vmatpush.msra.mxu0 0.0
      %257 = vmatpush.msra.mxu0 0.0
      %258 = vmatpush.msra.mxu0 0.0
      %259 = vmatpush.msra.mxu0 0.0
      %260 = vmatpush.msra.mxu0 0.0
      %261 = vmatpush.msra.mxu0 0.0
      %262 = vmatpush.msra.mxu0 0.0
      %263 = vmatpush.msra.mxu0 0.0
      %264 = vmatpush.msra.mxu0 0.0
      %265 = vmatpush.msra.mxu0 0.0
      %266 = vmatpush.msra.mxu0 %v243
      %267 = vmatmul.f32.gmra.mxu0 %v237
      %v268 = vpop.f32.mrf.mxu0
      %v269 = vadd.f32 %v219, %v268
      %270 = vmatmul.f32.gmra.mxu0 %v240
      %v271 = vpop.f32.mrf.mxu0
      %v272 = vadd.f32 %v224, %v271
      %273 = vdwg.mxu0
      %274 = vmatpush.msra.mxu0 0.0
      %275 = vmatpush.msra.mxu0 0.0
      %276 = vmatpush.msra.mxu0 0.0
      %277 = vmatpush.msra.mxu0 0.0
      %278 = vmatpush.msra.mxu0 0.0
      %279 = vmatpush.msra.mxu0 0.0
      %280 = vmatpush.msra.mxu0 0.0
      %281 = vmatpush.msra.mxu0 0.0
      %282 = vmatpush.msra.mxu0 0.0
      %283 = vmatpush.msra.mxu0 0.0
      %284 = vmatpush.msra.mxu0 0.0
      %285 = vmatpush.msra.mxu0 0.0
      %286 = vmatpush.msra.mxu0 0.0
      %287 = vmatpush.msra.mxu0 0.0
      %288 = vmatpush.msra.mxu0 0.0
      %289 = vmatpush.msra.mxu0 %v245
      %290 = vmatmul.f32.gmra.mxu0 %v237
      %v291 = vpop.f32.mrf.mxu0
      %v292 = vadd.f32 %v219, %v291
      %293 = vmatmul.f32.gmra.mxu0 %v240
      %v294 = vpop.f32.mrf.mxu0
      %v295 = vadd.f32 %v224, %v294
      %296 = vdwg.mxu0
      %297 = vmatpush.msra.mxu0 0.0
      %298 = vmatpush.msra.mxu0 0.0
      %299 = vmatpush.msra.mxu0 0.0
      %300 = vmatpush.msra.mxu0 0.0
      %301 = vmatpush.msra.mxu0 0.0
      %302 = vmatpush.msra.mxu0 0.0
      %303 = vmatpush.msra.mxu0 0.0
      %304 = vmatpush.msra.mxu0 0.0
      %305 = vmatpush.msra.mxu0 0.0
      %306 = vmatpush.msra.mxu0 0.0
      %307 = vmatpush.msra.mxu0 0.0
      %308 = vmatpush.msra.mxu0 0.0
      %309 = vmatpush.msra.mxu0 0.0
      %310 = vmatpush.msra.mxu0 0.0
      %311 = vmatpush.msra.mxu0 0.0
      %312 = vmatpush.msra.mxu0 %v247
      %313 = vmatmul.f32.gmra.mxu0 %v237
      %v314 = vpop.f32.mrf.mxu0
      %v315 = vadd.f32 %v219, %v314
      %316 = vmatmul.f32.gmra.mxu0 %v240
      %v317 = vpop.f32.mrf.mxu0
      %v318 = vadd.f32 %v224, %v317
      %319 = vdwg.mxu0
      %320 = vmatpush.msra.mxu0 0.0
      %321 = vmatpush.msra.mxu0 0.0
      %322 = vmatpush.msra.mxu0 0.0
      %323 = vmatpush.msra.mxu0 0.0
      %324 = vmatpush.msra.mxu0 0.0
      %325 = vmatpush.msra.mxu0 0.0
      %326 = vmatpush.msra.mxu0 0.0
      %327 = vmatpush.msra.mxu0 0.0
      %328 = vmatpush.msra.mxu0 0.0
      %329 = vmatpush.msra.mxu0 0.0
      %330 = vmatpush.msra.mxu0 0.0
      %331 = vmatpush.msra.mxu0 0.0
      %332 = vmatpush.msra.mxu0 0.0
      %333 = vmatpush.msra.mxu0 0.0
      %334 = vmatpush.msra.mxu0 0.0
      %335 = vmatpush.msra.mxu0 %v249
      %336 = vmatmul.f32.gmra.mxu0 %v237
      %v337 = vpop.f32.mrf.mxu0
      %v338 = vadd.f32 %v219, %v337
      %339 = vmatmul.f32.gmra.mxu0 %v240
      %v340 = vpop.f32.mrf.mxu0
      %v341 = vadd.f32 %v224, %v340
      %342 = vdwg.mxu0
      %v343 = vpack.c.bf16 %v292, %v269
      %v344 = vpack.c.bf16 %v338, %v315
      %v345 = vpack.c.bf16 %v295, %v272
      %v346 = vpack.c.bf16 %v341, %v318
      %347 = vst [vmem:[%s208] sm:$0xff] %v343
      %348 = vst [vmem:[%s208 + $0x8] sm:$0xff] %v344
      %349 = vst [vmem:[%s208 + $0x10] sm:$0x33] %v345
      %350 = vst [vmem:[%s208 + $0x18] sm:$0x33] %v346
      %s351 = smul.u32 4, %s19
      %p352 = scmp.lt.s32.totalorder %s18, 1
      %s353 = scalar_select %p352, %s18, 1
      %p354 = scmp.lt.s32.totalorder %s351, 3
      %s355 = scalar_select %p354, %s351, 3
      %s356 = smul.addr %s353, 8
      %s357 = sadd.s32 %s355, %s356
      %s358 = smul.addr %s357, 4
      %s359 = scalar_lea.vmem %s3, %s358
      // Predicated region
      $region33: #{rsa_block_forward.9} parent=31 // pred_check
        %p360 = pneg %p116
      $region34: #{rsa_block_forward.9} parent=31 // pred_check_branch
        %362 = sbr.rel (%p360) target = $region36
      $region35: #{rsa_block_forward.9} parent=31 // pred_region
        %s363 = smul.u32 4, %s19
      $region36: #{rsa_block_forward.9} parent=31 // pred_fallthru
        _
    $region32: #{rsa_block_forward.9} parent=5 // pred_fallthru
      _
    %p364 = scmp.le.s32.totalorder 2, %s9
    // Predicated region
    $region37: #{rsa_block_forward.9} parent=5 // pred_check
      %p365 = pneg %p364
    $region38: #{rsa_block_forward.9} parent=5 // pred_check_branch
      %367 = sbr.rel (%p365) target = $region40
    $region39: #{rsa_block_forward.9} parent=5 // pred_region
      %s368 = ssub.s32 %s9, 2
      // Predicated region
      $region41: #{rsa_block_forward.9} parent=39 // pred_check
        %p369 = pneg %p122
      $region42: #{rsa_block_forward.9} parent=39 // pred_check_branch
        %371 = sbr.rel (%p369) target = $region44
      $region43: #{rsa_block_forward.9} parent=39 // pred_region
        %s372 = smul.u32 4, %s21
        %p373 = scmp.lt.s32.totalorder %s20, 1
        %s374 = scalar_select %p373, %s20, 1
        %p375 = scmp.lt.s32.totalorder %s372, 3
        %s376 = scalar_select %p375, %s372, 3
        %s377 = smul.addr %s374, 8
        %s378 = sadd.s32 %s376, %s377
        %s379 = smul.addr %s378, 4
        %s380 = scalar_lea.vmem %s3, %s379
      $region44: #{rsa_block_forward.9} parent=39 // pred_fallthru
        _
    $region40: #{rsa_block_forward.9} parent=5 // pred_fallthru
      _
  $region6: #{rsa_block_forward.9} parent=0 // loop_footer
    %s13 = sadd.s32 1, %s9
  $region7: #{rsa_block_forward.9} parent=0 // loop_footer_branch
    %8 = sbr.rel target = $region3
  $region8: #{rsa_block_forward.9} parent=0 // loop_exit
    _

// kernel: rsa_block_forward.10
$region0: #{rsa_block_forward.10}
  #allocation0 [shape = 'u32[]', space=smem, size = 0x4, offset = 0x4, fixed_abs, tag = 'smem constant byte address 0x4 - core index']
  #allocation1 [shape = 'u32[72,128]{1,0:T(1,128)}', space=vmem, size = 0x9000, scoped, tag = 'internal scratch']
  %s0 = inlined_call_operand.vmem [shape: bf16[2,96,8,8], index: 0, kind: input, shape index: {}, may-alias: {0,1}]
  %s1 = inlined_call_operand.vmem [shape: bf16[2,96,8,8], index: 1, kind: input, shape index: {}, may-alias: {0,1}]
  %s2 = inlined_call_operand.vmem [shape: f32[2,8,8], index: 2, kind: output, shape index: {}]
  %s3 = sld [smem:[#allocation0]]
  $region49: #{rsa_block_forward.10} parent=0
    _
  %s5 = ssub.s32 1, %s3
  %s6 = scalar_select 0, %s5, %s3
  loop: start=0, step=1, limit=66
  $region2: #{rsa_block_forward.10} parent=0 // loop_pre_header
    _
  $region3: #{rsa_block_forward.10} parent=0 // loop_header
    %s8 = sphi 0, %s12
    %p9 = scmp.ge.s32.totalorder %s8, 66
    %s15 = sphi 0, %s27
    %s16 = sphi 0, %s23
    %s17 = sphi 0, %s15
    %s18 = sphi 0, %s16
    %s19 = sphi 0, %s17
    %s20 = sphi 0, %s18
    %s32 = sphi 0, %s34
    %s35 = sphi 0, %s32
    %s36 = sphi 0, %s35
    %s52 = sphi 0, %s36
    %s62 = sphi 0, %s64
    %s65 = sphi 0, %s62
    %s66 = sphi 0, %s65
    %s82 = sphi 0, %s66
    %s88 = sphi 0, %s90
    %s91 = sphi 0, %s88
    %s92 = sphi 0, %s91
    %s108 = sphi 0, %s92
  $region4: #{rsa_block_forward.10} parent=0 // loop_header_branch
    %11 = sbr.rel (%p9) target = $region8
  $region5: #{rsa_block_forward.10} parent=0 // loop_body
    %s13 = ssub.s32 %s8, 1
    %s14 = ssub.s32 %s8, 2
    %s21 = sadd.s32 1, %s16
    %p22 = scmp.ge.s32.totalorder %s21, 32
    %s23 = scalar_select %p22, 0, %s21
    %s24 = sadd.s32 1, %s15
    %s25 = scalar_select %p22, %s24, %s15
    %p26 = scmp.ge.s32.totalorder %s25, 2
    %s27 = scalar_select %p26, 0, %s25
    %s28 = ssub.s32 %s15, %s27
    %s29 = ssub.s32 %s16, %s23
    %s30 = sor.u32 %s28, %s29
    %p31 = scmp.eq.s32.totalorder %s30, 0
    %s33 = sadd.s32 %s32, 1
    %s34 = scalar_select %p31, %s32, %s33
    %p37 = pneg %p31
    %p38 = scmp.eq.s32.totalorder %s8, 63
    %p39 = por %p37, %p38
    %p40 = scmp.ne.s32.totalorder %s32, %s35
    %p41 = scmp.eq.s32.totalorder %s8, 0
    %p42 = por %p40, %p41
    %p43 = scmp.ne.s32.totalorder %s32, %s35
    %p44 = scmp.eq.s32.totalorder %s13, 63
    %p45 = por %p43, %p44
    %p46 = scmp.ne.s32.totalorder %s35, %s36
    %p47 = scmp.eq.s32.totalorder %s13, 0
    %p48 = por %p46, %p47
    %p49 = scmp.ne.s32.totalorder %s35, %s36
    %p50 = scmp.eq.s32.totalorder %s14, 63
    %p51 = por %p49, %p50
    %p53 = scmp.ne.s32.totalorder %s36, %s52
    %p54 = scmp.eq.s32.totalorder %s14, 0
    %p55 = por %p53, %p54
    %s56 = sadd.s32 %s16, 32
    %s57 = sadd.s32 %s23, 32
    %s58 = ssub.s32 %s15, %s27
    %s59 = ssub.s32 %s56, %s57
    %s60 = sor.u32 %s58, %s59
    %p61 = scmp.eq.s32.totalorder %s60, 0
    %s63 = sadd.s32 %s62, 1
    %s64 = scalar_select %p61, %s62, %s63
    %p67 = pneg %p61
    %p68 = scmp.eq.s32.totalorder %s8, 63
    %p69 = por %p67, %p68
    %p70 = scmp.ne.s32.totalorder %s62, %s65
    %p71 = scmp.eq.s32.totalorder %s8, 0
    %p72 = por %p70, %p71
    %p73 = scmp.ne.s32.totalorder %s62, %s65
    %p74 = scmp.eq.s32.totalorder %s13, 63
    %p75 = por %p73, %p74
    %p76 = scmp.ne.s32.totalorder %s65, %s66
    %p77 = scmp.eq.s32.totalorder %s13, 0
    %p78 = por %p76, %p77
    %p79 = scmp.ne.s32.totalorder %s65, %s66
    %p80 = scmp.eq.s32.totalorder %s14, 63
    %p81 = por %p79, %p80
    %p83 = scmp.ne.s32.totalorder %s66, %s82
    %p84 = scmp.eq.s32.totalorder %s14, 0
    %p85 = por %p83, %p84
    %s86 = ssub.s32 %s15, %s27
    %p87 = scmp.eq.s32.totalorder %s86, 0
    %s89 = sadd.s32 %s88, 1
    %s90 = scalar_select %p87, %s88, %s89
    %p93 = pneg %p87
    %p94 = scmp.eq.s32.totalorder %s8, 63
    %p95 = por %p93, %p94
    %p96 = scmp.ne.s32.totalorder %s88, %s91
    %p97 = scmp.eq.s32.totalorder %s8, 0
    %p98 = por %p96, %p97
    %p99 = scmp.ne.s32.totalorder %s88, %s91
    %p100 = scmp.eq.s32.totalorder %s13, 63
    %p101 = por %p99, %p100
    %p102 = scmp.ne.s32.totalorder %s91, %s92
    %p103 = scmp.eq.s32.totalorder %s13, 0
    %p104 = por %p102, %p103
    %p105 = scmp.ne.s32.totalorder %s91, %s92
    %p106 = scmp.eq.s32.totalorder %s14, 63
    %p107 = por %p105, %p106
    %p109 = scmp.ne.s32.totalorder %s92, %s108
    %p110 = scmp.eq.s32.totalorder %s14, 0
    %p111 = por %p109, %p110
    %p112 = scmp.le.s32.totalorder 1, %s8
    %p113 = scmp.lt.s32.totalorder %s8, 65
    %p114 = pnand %p112, %p113
    %p115 = pneg %p114
    // Predicated region
    $region9: #{rsa_block_forward.10} parent=5 // pred_check
      _
    $region10: #{rsa_block_forward.10} parent=5 // pred_check_branch
      %117 = sbr.rel (%p114) target = $region12
    $region11: #{rsa_block_forward.10} parent=5 // pred_region
      %s118 = ssub.s32 %s8, 1
    $region12: #{rsa_block_forward.10} parent=5 // pred_fallthru
      _
    %p119 = scmp.lt.s32.totalorder %s8, 64
    // Predicated region
    $region13: #{rsa_block_forward.10} parent=5 // pred_check
      %p120 = pneg %p119
    $region14: #{rsa_block_forward.10} parent=5 // pred_check_branch
      %122 = sbr.rel (%p120) target = $region16
    $region15: #{rsa_block_forward.10} parent=5 // pred_region
      // Predicated region
      $region17: #{rsa_block_forward.10} parent=15 // pred_check
        %p123 = pneg %p42
      $region18: #{rsa_block_forward.10} parent=15 // pred_check_branch
        %125 = sbr.rel (%p123) target = $region20
      $region19: #{rsa_block_forward.10} parent=15 // pred_region
        %p126 = scmp.lt.s32.totalorder %s15, 1
        %s127 = scalar_select %p126, %s15, 1
        %p128 = scmp.lt.s32.totalorder %s16, 95
        %s129 = scalar_select %p128, %s16, 95
        %s130 = smul.addr %s127, 96
        %s131 = sadd.s32 %s129, %s130
        %s132 = smul.addr %s131, 4
        %s133 = scalar_lea.vmem %s0, %s132
      $region20: #{rsa_block_forward.10} parent=15 // pred_fallthru
        _
      // Predicated region
      $region21: #{rsa_block_forward.10} parent=15 // pred_check
        %p134 = pneg %p72
      $region22: #{rsa_block_forward.10} parent=15 // pred_check_branch
        %136 = sbr.rel (%p134) target = $region24
      $region23: #{rsa_block_forward.10} parent=15 // pred_region
        %s137 = sadd.s32 %s16, 32
        %p138 = scmp.lt.s32.totalorder %s15, 1
        %s139 = scalar_select %p138, %s15, 1
        %p140 = scmp.lt.s32.totalorder %s137, 95
        %s141 = scalar_select %p140, %s137, 95
        %s142 = smul.addr %s139, 96
        %s143 = sadd.s32 %s141, %s142
        %s144 = smul.addr %s143, 4
        %s145 = scalar_lea.vmem %s1, %s144
        %s146 = sadd.s32 %s16, 32
      $region24: #{rsa_block_forward.10} parent=15 // pred_fallthru
        _
    $region16: #{rsa_block_forward.10} parent=5 // pred_fallthru
      _
    %p147 = scmp.le.s32.totalorder 1, %s8
    %p148 = scmp.lt.s32.totalorder %s8, 65
    %p149 = pnand %p147, %p148
    %p150 = pneg %p149
    // Predicated region
    $region25: #{rsa_block_forward.10} parent=5 // pred_check
      _
    $region26: #{rsa_block_forward.10} parent=5 // pred_check_branch
      %152 = sbr.rel (%p149) target = $region28
    $region27: #{rsa_block_forward.10} parent=5 // pred_region
      %s153 = ssub.s32 %s8, 1
      %p154 = scmp.lt.s32.totalorder %s17, 1
      %s155 = scalar_select %p154, %s17, 1
      %p156 = scmp.lt.s32.totalorder %s18, 95
      %s157 = scalar_select %p156, %s18, 95
      %s158 = smul.addr %s155, 96
      %s159 = sadd.s32 %s157, %s158
      %s160 = smul.addr %s159, 4
      %s161 = scalar_lea.vmem %s0, %s160
      %p162 = pneg %p48
      %p163 = pneg %p45
      %s164 = sadd.s32 %s18, 32
      %p165 = scmp.lt.s32.totalorder %s17, 1
      %s166 = scalar_select %p165, %s17, 1
      %p167 = scmp.lt.s32.totalorder %s164, 95
      %s168 = scalar_select %p167, %s164, 95
      %s169 = smul.addr %s166, 96
      %s170 = sadd.s32 %s168, %s169
      %s171 = smul.addr %s170, 4
      %s172 = scalar_lea.vmem %s1, %s171
      %p173 = pneg %p78
      %p174 = pneg %p75
      %p175 = pneg %p104
      %p176 = pneg %p101
      %p177 = scmp.lt.s32.totalorder %s17, 1
      %s178 = scalar_select %p177, %s17, 1
      %s179 = smul.addr %s178, 8
      %s180 = scalar_lea.vmem %s2, %s179
      %p181 = scmp.lt.s32.totalorder %s17, 1
      %s182 = scalar_select %p181, %s17, 1
      %p183 = scmp.lt.s32.totalorder %s18, 95
      %s184 = scalar_select %p183, %s18, 95
      %s185 = smul.addr %s182, 96
      %s186 = sadd.s32 %s184, %s185
      %s187 = smul.addr %s186, 4
      %s188 = scalar_lea.vmem %s0, %s187
      %s189 = sadd.s32 %s18, 32
      %p190 = scmp.lt.s32.totalorder %s17, 1
      %s191 = scalar_select %p190, %s17, 1
      %p192 = scmp.lt.s32.totalorder %s189, 95
      %s193 = scalar_select %p192, %s189, 95
      %s194 = smul.addr %s191, 96
      %s195 = sadd.s32 %s193, %s194
      %s196 = smul.addr %s195, 4
      %s197 = scalar_lea.vmem %s1, %s196
      %s198 = sadd.s32 %s18, 32
      %p199 = scmp.lt.s32.totalorder %s17, 1
      %s200 = scalar_select %p199, %s17, 1
      %s201 = smul.addr %s200, 8
      %s202 = scalar_lea.vmem %s2, %s201
      %p203 = scmp.eq.s32.totalorder %s18, 0
      // Predicated region
      $region29: #{rsa_block_forward.10} parent=27 // pred_check
        %p204 = pneg %p203
      $region30: #{rsa_block_forward.10} parent=27 // pred_check_branch
        %206 = sbr.rel (%p204) target = $region32
      $region31: #{rsa_block_forward.10} parent=27 // pred_region
        %vm207 = vcmask 64512
        %208 = vst.msk [vmem:[%s202] sm:$0xff] %vm207, 0.0
      $region32: #{rsa_block_forward.10} parent=27 // pred_fallthru
        _
      %v209 = vld [vmem:[%s188] sm:$0xf]
      %v210 = vunpack.c.l.bf16 %v209
      %v211 = vld [vmem:[%s197] sm:$0xf]
      %v212 = vunpack.c.l.bf16 %v211
      %v213 = vld [vmem:[%s202] sm:$0xff]
      %vm214 = vcmask 64512
      %v216 = vsel %vm214, %v210, 0
      %v219 = vsel %vm214, %v212, 0
      %221 = vmatpush.xpose.msra.mxu0 0.0
      %222 = vmatpush.xpose.msra.mxu0 0.0
      %223 = vmatpush.xpose.msra.mxu0 0.0
      %224 = vmatpush.xpose.msra.mxu0 0.0
      %225 = vmatpush.xpose.msra.mxu0 0.0
      %226 = vmatpush.xpose.msra.mxu0 0.0
      %227 = vmatpush.xpose.msra.mxu0 0.0
      %228 = vmatpush.xpose.msra.mxu0 0.0
      %229 = vmatpush.xpose.msra.mxu0 0.0
      %230 = vmatpush.xpose.msra.mxu0 0.0
      %231 = vmatpush.xpose.msra.mxu0 0.0
      %232 = vmatpush.xpose.msra.mxu0 0.0
      %233 = vmatpush.xpose.msra.mxu0 0.0
      %234 = vmatpush.xpose.msra.mxu0 0.0
      %235 = vmatpush.xpose.msra.mxu0 0.0
      %236 = vmatpush.xpose.msra.mxu0 %v219
      %237 = vmatmul.f32.gmra.mxu0 %v216
      %v238 = vpop.f32.mrf.mxu0
      %v239 = vadd.f32 0.0, %v238
      %240 = vdwg.mxu0
      %v241 = vadd.f32 %v213, %v239
      %242 = vst.msk [vmem:[%s202] sm:$0xff] %vm214, %v241
      %p243 = scmp.eq.s32.totalorder %s18, 31
      // Predicated region
      $region33: #{rsa_block_forward.10} parent=27 // pred_check
        %p244 = pneg %p243
      $region34: #{rsa_block_forward.10} parent=27 // pred_check_branch
        %246 = sbr.rel (%p244) target = $region36
      $region35: #{rsa_block_forward.10} parent=27 // pred_region
        %v247 = vld [vmem:[%s202] sm:$0xff]
        %v248 = vsel %vm214, %v247, -inf
        %249 = vmax.xlane.f32.xlu0 %v248
        %v250 = vpop.xlane.xlu0 %249
        %v251 = vsub.f32 %v247, %v250
        %v252 = vmul.f32 %v251, 1.442695
        %v253 = vpow.pop %v252
        %v254 = vsel %vm214, %v253, 0.0
        %255 = vadd.xlane.f32.xlu0 %v254
        %v256 = vpop.xlane.xlu0 %255
        %v257 = vrcp.pop %v256
        %v258 = vmul.f32 %v253, %v257
        %259 = vst.msk [vmem:[%s202] sm:$0xff] %vm214, %v258
      $region36: #{rsa_block_forward.10} parent=27 // pred_fallthru
        _
      %p260 = scmp.lt.s32.totalorder %s17, 1
      %s261 = scalar_select %p260, %s17, 1
      %s262 = smul.addr %s261, 8
      %s263 = scalar_lea.vmem %s2, %s262
      // Predicated region
      $region37: #{rsa_block_forward.10} parent=27 // pred_check
        %p264 = pneg %p101
      $region38: #{rsa_block_forward.10} parent=27 // pred_check_branch
        %266 = sbr.rel (%p264) target = $region40
      $region39: #{rsa_block_forward.10} parent=27 // pred_region
        _
      $region40: #{rsa_block_forward.10} parent=27 // pred_fallthru
        _
    $region28: #{rsa_block_forward.10} parent=5 // pred_fallthru
      _
    %p267 = scmp.le.s32.totalorder 2, %s8
    // Predicated region
    $region41: #{rsa_block_forward.10} parent=5 // pred_check
      %p268 = pneg %p267
    $region42: #{rsa_block_forward.10} parent=5 // pred_check_branch
      %270 = sbr.rel (%p268) target = $region44
    $region43: #{rsa_block_forward.10} parent=5 // pred_region
      %s271 = ssub.s32 %s8, 2
      // Predicated region
      $region45: #{rsa_block_forward.10} parent=43 // pred_check
        %p272 = pneg %p107
      $region46: #{rsa_block_forward.10} parent=43 // pred_check_branch
        %274 = sbr.rel (%p272) target = $region48
      $region47: #{rsa_block_forward.10} parent=43 // pred_region
        %p275 = scmp.lt.s32.totalorder %s19, 1
        %s276 = scalar_select %p275, %s19, 1
        %s277 = smul.addr %s276, 8
        %s278 = scalar_lea.vmem %s2, %s277
      $region48: #{rsa_block_forward.10} parent=43 // pred_fallthru
        _
    $region44: #{rsa_block_forward.10} parent=5 // pred_fallthru
      _
  $region6: #{rsa_block_forward.10} parent=0 // loop_footer
    %s12 = sadd.s32 1, %s8
  $region7: #{rsa_block_forward.10} parent=0 // loop_footer_branch
    %7 = sbr.rel target = $region3
  $region8: #{rsa_block_forward.10} parent=0 // loop_exit
    _

// kernel: rsa_block_forward.11
$region0: #{rsa_block_forward.11}
  #allocation0 [shape = 'u32[]', space=smem, size = 0x4, offset = 0x4, fixed_abs, tag = 'smem constant byte address 0x4 - core index']
  #allocation1 [shape = 'u32[72,128]{1,0:T(1,128)}', space=vmem, size = 0x9000, scoped, tag = 'internal scratch']
  #allocation2 [shape = 'f32[1]{0:T(128)S(6)}', space=smem, size = 0x200, scoped, tag = 'scoped memory for rsa_block_forward.11']
  %s0 = inlined_call_operand.<no memory space> [shape: f32[1], index: 0, kind: input, shape index: {}]
  %s1 = inlined_call_operand.vmem [shape: f32[2,8,8], index: 1, kind: input, shape index: {}]
  %s2 = inlined_call_operand.vmem [shape: bf16[2,96,8,8], index: 2, kind: input, shape index: {}]
  %s3 = inlined_call_operand.vmem [shape: f32[2,32,8,8], index: 3, kind: input, shape index: {}]
  %s4 = inlined_call_operand.vmem [shape: f32[2,32,8,8], index: 4, kind: output, shape index: {}]
  %s5 = sld [smem:[#allocation0]]
  $region49: #{rsa_block_forward.11} parent=0
    _
  %s7 = ssub.s32 1, %s5
  %s8 = scalar_select 0, %s7, %s5
  %9 = sst [smem:[#allocation2]] %s0
  loop: start=0, step=1, limit=66
  $region2: #{rsa_block_forward.11} parent=0 // loop_pre_header
    _
  $region3: #{rsa_block_forward.11} parent=0 // loop_header
    %s11 = sphi 0, %s15
    %p12 = scmp.ge.s32.totalorder %s11, 66
    %s18 = sphi 0, %s30
    %s19 = sphi 0, %s26
    %s20 = sphi 0, %s18
    %s21 = sphi 0, %s19
    %s22 = sphi 0, %s20
    %s23 = sphi 0, %s21
    %s31 = sphi 0, %s31
    %s33 = sphi 0, %s31
    %s34 = sphi 0, %s33
    %s48 = sphi 0, %s34
    %s54 = sphi 0, %s56
    %s57 = sphi 0, %s54
    %s58 = sphi 0, %s57
    %s74 = sphi 0, %s58
    %s84 = sphi 0, %s86
    %s87 = sphi 0, %s84
    %s88 = sphi 0, %s87
    %s104 = sphi 0, %s88
    %s112 = sphi 0, %s114
    %s115 = sphi 0, %s112
    %s116 = sphi 0, %s115
    %s132 = sphi 0, %s116
    %s140 = sphi 0, %s142
    %s143 = sphi 0, %s140
    %s144 = sphi 0, %s143
    %s160 = sphi 0, %s144
  $region4: #{rsa_block_forward.11} parent=0 // loop_header_branch
    %14 = sbr.rel (%p12) target = $region8
  $region5: #{rsa_block_forward.11} parent=0 // loop_body
    %s16 = ssub.s32 %s11, 1
    %s17 = ssub.s32 %s11, 2
    %s24 = sadd.s32 1, %s19
    %p25 = scmp.ge.s32.totalorder %s24, 32
    %s26 = scalar_select %p25, 0, %s24
    %s27 = sadd.s32 1, %s18
    %s28 = scalar_select %p25, %s27, %s18
    %p29 = scmp.ge.s32.totalorder %s28, 2
    %s30 = scalar_select %p29, 0, %s28
    %s32 = sadd.s32 %s31, 1
    %p35 = scmp.eq.s32.totalorder %s11, 63
    %p36 = scmp.ne.s32.totalorder %s31, %s33
    %p37 = scmp.eq.s32.totalorder %s11, 0
    %p38 = por %p36, %p37
    %p39 = scmp.ne.s32.totalorder %s31, %s33
    %p40 = scmp.eq.s32.totalorder %s16, 63
    %p41 = por %p39, %p40
    %p42 = scmp.ne.s32.totalorder %s33, %s34
    %p43 = scmp.eq.s32.totalorder %s16, 0
    %p44 = por %p42, %p43
    %p45 = scmp.ne.s32.totalorder %s33, %s34
    %p46 = scmp.eq.s32.totalorder %s17, 63
    %p47 = por %p45, %p46
    %p49 = scmp.ne.s32.totalorder %s34, %s48
    %p50 = scmp.eq.s32.totalorder %s17, 0
    %p51 = por %p49, %p50
    %s52 = ssub.s32 %s18, %s30
    %p53 = scmp.eq.s32.totalorder %s52, 0
    %s55 = sadd.s32 %s54, 1
    %s56 = scalar_select %p53, %s54, %s55
    %p59 = pneg %p53
    %p60 = scmp.eq.s32.totalorder %s11, 63
    %p61 = por %p59, %p60
    %p62 = scmp.ne.s32.totalorder %s54, %s57
    %p63 = scmp.eq.s32.totalorder %s11, 0
    %p64 = por %p62, %p63
    %p65 = scmp.ne.s32.totalorder %s54, %s57
    %p66 = scmp.eq.s32.totalorder %s16, 63
    %p67 = por %p65, %p66
    %p68 = scmp.ne.s32.totalorder %s57, %s58
    %p69 = scmp.eq.s32.totalorder %s16, 0
    %p70 = por %p68, %p69
    %p71 = scmp.ne.s32.totalorder %s57, %s58
    %p72 = scmp.eq.s32.totalorder %s17, 63
    %p73 = por %p71, %p72
    %p75 = scmp.ne.s32.totalorder %s58, %s74
    %p76 = scmp.eq.s32.totalorder %s17, 0
    %p77 = por %p75, %p76
    %s78 = sadd.s32 %s19, 64
    %s79 = sadd.s32 %s26, 64
    %s80 = ssub.s32 %s18, %s30
    %s81 = ssub.s32 %s78, %s79
    %s82 = sor.u32 %s80, %s81
    %p83 = scmp.eq.s32.totalorder %s82, 0
    %s85 = sadd.s32 %s84, 1
    %s86 = scalar_select %p83, %s84, %s85
    %p89 = pneg %p83
    %p90 = scmp.eq.s32.totalorder %s11, 63
    %p91 = por %p89, %p90
    %p92 = scmp.ne.s32.totalorder %s84, %s87
    %p93 = scmp.eq.s32.totalorder %s11, 0
    %p94 = por %p92, %p93
    %p95 = scmp.ne.s32.totalorder %s84, %s87
    %p96 = scmp.eq.s32.totalorder %s16, 63
    %p97 = por %p95, %p96
    %p98 = scmp.ne.s32.totalorder %s87, %s88
    %p99 = scmp.eq.s32.totalorder %s16, 0
    %p100 = por %p98, %p99
    %p101 = scmp.ne.s32.totalorder %s87, %s88
    %p102 = scmp.eq.s32.totalorder %s17, 63
    %p103 = por %p101, %p102
    %p105 = scmp.ne.s32.totalorder %s88, %s104
    %p106 = scmp.eq.s32.totalorder %s17, 0
    %p107 = por %p105, %p106
    %s108 = ssub.s32 %s18, %s30
    %s109 = ssub.s32 %s19, %s26
    %s110 = sor.u32 %s108, %s109
    %p111 = scmp.eq.s32.totalorder %s110, 0
    %s113 = sadd.s32 %s112, 1
    %s114 = scalar_select %p111, %s112, %s113
    %p117 = pneg %p111
    %p118 = scmp.eq.s32.totalorder %s11, 63
    %p119 = por %p117, %p118
    %p120 = scmp.ne.s32.totalorder %s112, %s115
    %p121 = scmp.eq.s32.totalorder %s11, 0
    %p122 = por %p120, %p121
    %p123 = scmp.ne.s32.totalorder %s112, %s115
    %p124 = scmp.eq.s32.totalorder %s16, 63
    %p125 = por %p123, %p124
    %p126 = scmp.ne.s32.totalorder %s115, %s116
    %p127 = scmp.eq.s32.totalorder %s16, 0
    %p128 = por %p126, %p127
    %p129 = scmp.ne.s32.totalorder %s115, %s116
    %p130 = scmp.eq.s32.totalorder %s17, 63
    %p131 = por %p129, %p130
    %p133 = scmp.ne.s32.totalorder %s116, %s132
    %p134 = scmp.eq.s32.totalorder %s17, 0
    %p135 = por %p133, %p134
    %s136 = ssub.s32 %s18, %s30
    %s137 = ssub.s32 %s19, %s26
    %s138 = sor.u32 %s136, %s137
    %p139 = scmp.eq.s32.totalorder %s138, 0
    %s141 = sadd.s32 %s140, 1
    %s142 = scalar_select %p139, %s140, %s141
    %p145 = pneg %p139
    %p146 = scmp.eq.s32.totalorder %s11, 63
    %p147 = por %p145, %p146
    %p148 = scmp.ne.s32.totalorder %s140, %s143
    %p149 = scmp.eq.s32.totalorder %s11, 0
    %p150 = por %p148, %p149
    %p151 = scmp.ne.s32.totalorder %s140, %s143
    %p152 = scmp.eq.s32.totalorder %s16, 63
    %p153 = por %p151, %p152
    %p154 = scmp.ne.s32.totalorder %s143, %s144
    %p155 = scmp.eq.s32.totalorder %s16, 0
    %p156 = por %p154, %p155
    %p157 = scmp.ne.s32.totalorder %s143, %s144
    %p158 = scmp.eq.s32.totalorder %s17, 63
    %p159 = por %p157, %p158
    %p161 = scmp.ne.s32.totalorder %s144, %s160
    %p162 = scmp.eq.s32.totalorder %s17, 0
    %p163 = por %p161, %p162
    %p164 = scmp.le.s32.totalorder 1, %s11
    %p165 = scmp.lt.s32.totalorder %s11, 65
    %p166 = pnand %p164, %p165
    %p167 = pneg %p166
    // Predicated region
    $region9: #{rsa_block_forward.11} parent=5 // pred_check
      _
    $region10: #{rsa_block_forward.11} parent=5 // pred_check_branch
      %169 = sbr.rel (%p166) target = $region12
    $region11: #{rsa_block_forward.11} parent=5 // pred_region
      %s170 = ssub.s32 %s11, 1
      // Predicated region
      $region13: #{rsa_block_forward.11} parent=11 // pred_check
        %p171 = pneg %p44
      $region14: #{rsa_block_forward.11} parent=11 // pred_check_branch
        %173 = sbr.rel (%p171) target = $region16
      $region15: #{rsa_block_forward.11} parent=11 // pred_region
        _
      $region16: #{rsa_block_forward.11} parent=11 // pred_fallthru
        _
    $region12: #{rsa_block_forward.11} parent=5 // pred_fallthru
      _
    %p174 = scmp.lt.s32.totalorder %s11, 64
    // Predicated region
    $region17: #{rsa_block_forward.11} parent=5 // pred_check
      %p175 = pneg %p174
    $region18: #{rsa_block_forward.11} parent=5 // pred_check_branch
      %177 = sbr.rel (%p175) target = $region20
    $region19: #{rsa_block_forward.11} parent=5 // pred_region
      // Predicated region
      $region21: #{rsa_block_forward.11} parent=19 // pred_check
        %p178 = pneg %p64
      $region22: #{rsa_block_forward.11} parent=19 // pred_check_branch
        %180 = sbr.rel (%p178) target = $region24
      $region23: #{rsa_block_forward.11} parent=19 // pred_region
        %p181 = scmp.lt.s32.totalorder %s18, 1
        %s182 = scalar_select %p181, %s18, 1
        %s183 = smul.addr %s182, 8
        %s184 = scalar_lea.vmem %s1, %s183
      $region24: #{rsa_block_forward.11} parent=19 // pred_fallthru
        _
      // Predicated region
      $region25: #{rsa_block_forward.11} parent=19 // pred_check
        %p185 = pneg %p94
      $region26: #{rsa_block_forward.11} parent=19 // pred_check_branch
        %187 = sbr.rel (%p185) target = $region28
      $region27: #{rsa_block_forward.11} parent=19 // pred_region
        %s188 = sadd.s32 %s19, 64
        %p189 = scmp.lt.s32.totalorder %s18, 1
        %s190 = scalar_select %p189, %s18, 1
        %p191 = scmp.lt.s32.totalorder %s188, 95
        %s192 = scalar_select %p191, %s188, 95
        %s193 = smul.addr %s190, 96
        %s194 = sadd.s32 %s192, %s193
        %s195 = smul.addr %s194, 4
        %s196 = scalar_lea.vmem %s2, %s195
        %s197 = sadd.s32 %s19, 64
      $region28: #{rsa_block_forward.11} parent=19 // pred_fallthru
        _
      // Predicated region
      $region29: #{rsa_block_forward.11} parent=19 // pred_check
        %p198 = pneg %p122
      $region30: #{rsa_block_forward.11} parent=19 // pred_check_branch
        %200 = sbr.rel (%p198) target = $region32
      $region31: #{rsa_block_forward.11} parent=19 // pred_region
        %p201 = scmp.lt.s32.totalorder %s18, 1
        %s202 = scalar_select %p201, %s18, 1
        %p203 = scmp.lt.s32.totalorder %s19, 31
        %s204 = scalar_select %p203, %s19, 31
        %s205 = smul.addr %s202, 32
        %s206 = sadd.s32 %s204, %s205
        %s207 = smul.addr %s206, 8
        %s208 = scalar_lea.vmem %s3, %s207
      $region32: #{rsa_block_forward.11} parent=19 // pred_fallthru
        _
    $region20: #{rsa_block_forward.11} parent=5 // pred_fallthru
      _
    %p209 = scmp.le.s32.totalorder 1, %s11
    %p210 = scmp.lt.s32.totalorder %s11, 65
    %p211 = pnand %p209, %p210
    %p212 = pneg %p211
    // Predicated region
    $region33: #{rsa_block_forward.11} parent=5 // pred_check
      _
    $region34: #{rsa_block_forward.11} parent=5 // pred_check_branch
      %214 = sbr.rel (%p211) target = $region36
    $region35: #{rsa_block_forward.11} parent=5 // pred_region
      %s215 = ssub.s32 %s11, 1
      %p216 = pneg %p44
      %p217 = pneg %p41
      %p218 = scmp.lt.s32.totalorder %s20, 1
      %s219 = scalar_select %p218, %s20, 1
      %s220 = smul.addr %s219, 8
      %s221 = scalar_lea.vmem %s1, %s220
      %p222 = pneg %p70
      %p223 = pneg %p67
      %s224 = sadd.s32 %s21, 64
      %p225 = scmp.lt.s32.totalorder %s20, 1
      %s226 = scalar_select %p225, %s20, 1
      %p227 = scmp.lt.s32.totalorder %s224, 95
      %s228 = scalar_select %p227, %s224, 95
      %s229 = smul.addr %s226, 96
      %s230 = sadd.s32 %s228, %s229
      %s231 = smul.addr %s230, 4
      %s232 = scalar_lea.vmem %s2, %s231
      %p233 = pneg %p100
      %p234 = pneg %p97
      %p235 = scmp.lt.s32.totalorder %s20, 1
      %s236 = scalar_select %p235, %s20, 1
      %p237 = scmp.lt.s32.totalorder %s21, 31
      %s238 = scalar_select %p237, %s21, 31
      %s239 = smul.addr %s236, 32
      %s240 = sadd.s32 %s238, %s239
      %s241 = smul.addr %s240, 8
      %s242 = scalar_lea.vmem %s3, %s241
      %p243 = pneg %p128
      %p244 = pneg %p125
      %p245 = pneg %p156
      %p246 = pneg %p153
      %p247 = scmp.lt.s32.totalorder %s20, 1
      %s248 = scalar_select %p247, %s20, 1
      %p249 = scmp.lt.s32.totalorder %s21, 31
      %s250 = scalar_select %p249, %s21, 31
      %s251 = smul.addr %s248, 32
      %s252 = sadd.s32 %s250, %s251
      %s253 = smul.addr %s252, 8
      %s254 = scalar_lea.vmem %s4, %s253
      %p255 = scmp.lt.s32.totalorder %s20, 1
      %s256 = scalar_select %p255, %s20, 1
      %s257 = smul.addr %s256, 8
      %s258 = scalar_lea.vmem %s1, %s257
      %s259 = sadd.s32 %s21, 64
      %p260 = scmp.lt.s32.totalorder %s20, 1
      %s261 = scalar_select %p260, %s20, 1
      %p262 = scmp.lt.s32.totalorder %s259, 95
      %s263 = scalar_select %p262, %s259, 95
      %s264 = smul.addr %s261, 96
      %s265 = sadd.s32 %s263, %s264
      %s266 = smul.addr %s265, 4
      %s267 = scalar_lea.vmem %s2, %s266
      %s268 = sadd.s32 %s21, 64
      %p269 = scmp.lt.s32.totalorder %s20, 1
      %s270 = scalar_select %p269, %s20, 1
      %p271 = scmp.lt.s32.totalorder %s21, 31
      %s272 = scalar_select %p271, %s21, 31
      %s273 = smul.addr %s270, 32
      %s274 = sadd.s32 %s272, %s273
      %s275 = smul.addr %s274, 8
      %s276 = scalar_lea.vmem %s3, %s275
      %p277 = scmp.lt.s32.totalorder %s20, 1
      %s278 = scalar_select %p277, %s20, 1
      %p279 = scmp.lt.s32.totalorder %s21, 31
      %s280 = scalar_select %p279, %s21, 31
      %s281 = smul.addr %s278, 32
      %s282 = sadd.s32 %s280, %s281
      %s283 = smul.addr %s282, 8
      %s284 = scalar_lea.vmem %s4, %s283
      %v285 = vld [vmem:[%s258] sm:$0xff]
      %v286 = vld [vmem:[%s267] sm:$0xf]
      %v287 = vunpack.c.l.bf16 %v286
      %vm288 = vcmask 64512
      %v290 = vsel %vm288, %v285, 0
      %292 = vmatpush.msra.mxu0 0.0
      %293 = vmatpush.msra.mxu0 0.0
      %294 = vmatpush.msra.mxu0 0.0
      %295 = vmatpush.msra.mxu0 0.0
      %296 = vmatpush.msra.mxu0 0.0
      %297 = vmatpush.msra.mxu0 0.0
      %298 = vmatpush.msra.mxu0 0.0
      %299 = vmatpush.msra.mxu0 0.0
      %300 = vmatpush.msra.mxu0 0.0
      %301 = vmatpush.msra.mxu0 0.0
      %302 = vmatpush.msra.mxu0 0.0
      %303 = vmatpush.msra.mxu0 0.0
      %304 = vmatpush.msra.mxu0 0.0
      %305 = vmatpush.msra.mxu0 0.0
      %306 = vmatpush.msra.mxu0 0.0
      %307 = vmatpush.msra.mxu0 %v287
      %308 = vmatmul.f32.gmra.mxu0 %v290
      %v309 = vpop.f32.mrf.mxu0
      %v310 = vadd.f32 0.0, %v309
      %311 = vdwg.mxu0
      %v312 = vld [vmem:[%s276] sm:$0xff]
      %s313 = sld [smem:[#allocation2]]
      %v314 = vstv %s313
      %v315 = vmul.f32 %v314, %v310
      %v316 = vadd.f32 %v312, %v315
      %317 = vst.msk [vmem:[%s284] sm:$0xff] %vm288, %v316
      %p318 = scmp.lt.s32.totalorder %s20, 1
      %s319 = scalar_select %p318, %s20, 1
      %p320 = scmp.lt.s32.totalorder %s21, 31
      %s321 = scalar_select %p320, %s21, 31
      %s322 = smul.addr %s319, 32
      %s323 = sadd.s32 %s321, %s322
      %s324 = smul.addr %s323, 8
      %s325 = scalar_lea.vmem %s4, %s324
      // Predicated region
      $region37: #{rsa_block_forward.11} parent=35 // pred_check
        %p326 = pneg %p153
      $region38: #{rsa_block_forward.11} parent=35 // pred_check_branch
        %328 = sbr.rel (%p326) target = $region40
      $region39: #{rsa_block_forward.11} parent=35 // pred_region
        _
      $region40: #{rsa_block_forward.11} parent=35 // pred_fallthru
        _
    $region36: #{rsa_block_forward.11} parent=5 // pred_fallthru
      _
    %p329 = scmp.le.s32.totalorder 2, %s11
    // Predicated region
    $region41: #{rsa_block_forward.11} parent=5 // pred_check
      %p330 = pneg %p329
    $region42: #{rsa_block_forward.11} parent=5 // pred_check_branch
      %332 = sbr.rel (%p330) target = $region44
    $region43: #{rsa_block_forward.11} parent=5 // pred_region
      %s333 = ssub.s32 %s11, 2
      // Predicated region
      $region45: #{rsa_block_forward.11} parent=43 // pred_check
        %p334 = pneg %p159
      $region46: #{rsa_block_forward.11} parent=43 // pred_check_branch
        %336 = sbr.rel (%p334) target = $region48
      $region47: #{rsa_block_forward.11} parent=43 // pred_region
        %p337 = scmp.lt.s32.totalorder %s22, 1
        %s338 = scalar_select %p337, %s22, 1
        %p339 = scmp.lt.s32.totalorder %s23, 31
        %s340 = scalar_select %p339, %s23, 31
        %s341 = smul.addr %s338, 32
        %s342 = sadd.s32 %s340, %s341
        %s343 = smul.addr %s342, 8
        %s344 = scalar_lea.vmem %s4, %s343
      $region48: #{rsa_block_forward.11} parent=43 // pred_fallthru
        _
    $region44: #{rsa_block_forward.11} parent=5 // pred_fallthru
      _
  $region6: #{rsa_block_forward.11} parent=0 // loop_footer
    %s15 = sadd.s32 1, %s11
  $region7: #{rsa_block_forward.11} parent=0 // loop_footer_branch
    %10 = sbr.rel target = $region3
  $region8: #{rsa_block_forward.11} parent=0 // loop_exit
    _

// kernel: rsa_block_forward.13
$region0: #{rsa_block_forward.13}
  #allocation0 [shape = 'u32[]', space=smem, size = 0x4, offset = 0x4, fixed_abs, tag = 'smem constant byte address 0x4 - core index']
  #allocation1 [shape = 'u32[72,128]{1,0:T(1,128)}', space=vmem, size = 0x9000, scoped, tag = 'internal scratch']
  %s0 = inlined_call_operand.vmem [shape: bf16[2,96,8,8], index: 0, kind: input, shape index: {}, may-alias: {0,1}]
  %s1 = inlined_call_operand.vmem [shape: bf16[2,96,8,8], index: 1, kind: input, shape index: {}, may-alias: {0,1}]
  %s2 = inlined_call_operand.vmem [shape: f32[2,8,8], index: 2, kind: output, shape index: {}]
  %s3 = sld [smem:[#allocation0]]
  $region49: #{rsa_block_forward.13} parent=0
    _
  %s5 = ssub.s32 1, %s3
  %s6 = scalar_select 0, %s5, %s3
  loop: start=0, step=1, limit=66
  $region2: #{rsa_block_forward.13} parent=0 // loop_pre_header
    _
  $region3: #{rsa_block_forward.13} parent=0 // loop_header
    %s8 = sphi 0, %s12
    %p9 = scmp.ge.s32.totalorder %s8, 66
    %s15 = sphi 0, %s27
    %s16 = sphi 0, %s23
    %s17 = sphi 0, %s15
    %s18 = sphi 0, %s16
    %s19 = sphi 0, %s17
    %s20 = sphi 0, %s18
    %s32 = sphi 0, %s34
    %s35 = sphi 0, %s32
    %s36 = sphi 0, %s35
    %s52 = sphi 0, %s36
    %s62 = sphi 0, %s64
    %s65 = sphi 0, %s62
    %s66 = sphi 0, %s65
    %s82 = sphi 0, %s66
    %s88 = sphi 0, %s90
    %s91 = sphi 0, %s88
    %s92 = sphi 0, %s91
    %s108 = sphi 0, %s92
  $region4: #{rsa_block_forward.13} parent=0 // loop_header_branch
    %11 = sbr.rel (%p9) target = $region8
  $region5: #{rsa_block_forward.13} parent=0 // loop_body
    %s13 = ssub.s32 %s8, 1
    %s14 = ssub.s32 %s8, 2
    %s21 = sadd.s32 1, %s16
    %p22 = scmp.ge.s32.totalorder %s21, 32
    %s23 = scalar_select %p22, 0, %s21
    %s24 = sadd.s32 1, %s15
    %s25 = scalar_select %p22, %s24, %s15
    %p26 = scmp.ge.s32.totalorder %s25, 2
    %s27 = scalar_select %p26, 0, %s25
    %s28 = ssub.s32 %s15, %s27
    %s29 = ssub.s32 %s16, %s23
    %s30 = sor.u32 %s28, %s29
    %p31 = scmp.eq.s32.totalorder %s30, 0
    %s33 = sadd.s32 %s32, 1
    %s34 = scalar_select %p31, %s32, %s33
    %p37 = pneg %p31
    %p38 = scmp.eq.s32.totalorder %s8, 63
    %p39 = por %p37, %p38
    %p40 = scmp.ne.s32.totalorder %s32, %s35
    %p41 = scmp.eq.s32.totalorder %s8, 0
    %p42 = por %p40, %p41
    %p43 = scmp.ne.s32.totalorder %s32, %s35
    %p44 = scmp.eq.s32.totalorder %s13, 63
    %p45 = por %p43, %p44
    %p46 = scmp.ne.s32.totalorder %s35, %s36
    %p47 = scmp.eq.s32.totalorder %s13, 0
    %p48 = por %p46, %p47
    %p49 = scmp.ne.s32.totalorder %s35, %s36
    %p50 = scmp.eq.s32.totalorder %s14, 63
    %p51 = por %p49, %p50
    %p53 = scmp.ne.s32.totalorder %s36, %s52
    %p54 = scmp.eq.s32.totalorder %s14, 0
    %p55 = por %p53, %p54
    %s56 = sadd.s32 %s16, 32
    %s57 = sadd.s32 %s23, 32
    %s58 = ssub.s32 %s15, %s27
    %s59 = ssub.s32 %s56, %s57
    %s60 = sor.u32 %s58, %s59
    %p61 = scmp.eq.s32.totalorder %s60, 0
    %s63 = sadd.s32 %s62, 1
    %s64 = scalar_select %p61, %s62, %s63
    %p67 = pneg %p61
    %p68 = scmp.eq.s32.totalorder %s8, 63
    %p69 = por %p67, %p68
    %p70 = scmp.ne.s32.totalorder %s62, %s65
    %p71 = scmp.eq.s32.totalorder %s8, 0
    %p72 = por %p70, %p71
    %p73 = scmp.ne.s32.totalorder %s62, %s65
    %p74 = scmp.eq.s32.totalorder %s13, 63
    %p75 = por %p73, %p74
    %p76 = scmp.ne.s32.totalorder %s65, %s66
    %p77 = scmp.eq.s32.totalorder %s13, 0
    %p78 = por %p76, %p77
    %p79 = scmp.ne.s32.totalorder %s65, %s66
    %p80 = scmp.eq.s32.totalorder %s14, 63
    %p81 = por %p79, %p80
    %p83 = scmp.ne.s32.totalorder %s66, %s82
    %p84 = scmp.eq.s32.totalorder %s14, 0
    %p85 = por %p83, %p84
    %s86 = ssub.s32 %s15, %s27
    %p87 = scmp.eq.s32.totalorder %s86, 0
    %s89 = sadd.s32 %s88, 1
    %s90 = scalar_select %p87, %s88, %s89
    %p93 = pneg %p87
    %p94 = scmp.eq.s32.totalorder %s8, 63
    %p95 = por %p93, %p94
    %p96 = scmp.ne.s32.totalorder %s88, %s91
    %p97 = scmp.eq.s32.totalorder %s8, 0
    %p98 = por %p96, %p97
    %p99 = scmp.ne.s32.totalorder %s88, %s91
    %p100 = scmp.eq.s32.totalorder %s13, 63
    %p101 = por %p99, %p100
    %p102 = scmp.ne.s32.totalorder %s91, %s92
    %p103 = scmp.eq.s32.totalorder %s13, 0
    %p104 = por %p102, %p103
    %p105 = scmp.ne.s32.totalorder %s91, %s92
    %p106 = scmp.eq.s32.totalorder %s14, 63
    %p107 = por %p105, %p106
    %p109 = scmp.ne.s32.totalorder %s92, %s108
    %p110 = scmp.eq.s32.totalorder %s14, 0
    %p111 = por %p109, %p110
    %p112 = scmp.le.s32.totalorder 1, %s8
    %p113 = scmp.lt.s32.totalorder %s8, 65
    %p114 = pnand %p112, %p113
    %p115 = pneg %p114
    // Predicated region
    $region9: #{rsa_block_forward.13} parent=5 // pred_check
      _
    $region10: #{rsa_block_forward.13} parent=5 // pred_check_branch
      %117 = sbr.rel (%p114) target = $region12
    $region11: #{rsa_block_forward.13} parent=5 // pred_region
      %s118 = ssub.s32 %s8, 1
    $region12: #{rsa_block_forward.13} parent=5 // pred_fallthru
      _
    %p119 = scmp.lt.s32.totalorder %s8, 64
    // Predicated region
    $region13: #{rsa_block_forward.13} parent=5 // pred_check
      %p120 = pneg %p119
    $region14: #{rsa_block_forward.13} parent=5 // pred_check_branch
      %122 = sbr.rel (%p120) target = $region16
    $region15: #{rsa_block_forward.13} parent=5 // pred_region
      // Predicated region
      $region17: #{rsa_block_forward.13} parent=15 // pred_check
        %p123 = pneg %p42
      $region18: #{rsa_block_forward.13} parent=15 // pred_check_branch
        %125 = sbr.rel (%p123) target = $region20
      $region19: #{rsa_block_forward.13} parent=15 // pred_region
        %p126 = scmp.lt.s32.totalorder %s15, 1
        %s127 = scalar_select %p126, %s15, 1
        %p128 = scmp.lt.s32.totalorder %s16, 95
        %s129 = scalar_select %p128, %s16, 95
        %s130 = smul.addr %s127, 96
        %s131 = sadd.s32 %s129, %s130
        %s132 = smul.addr %s131, 4
        %s133 = scalar_lea.vmem %s0, %s132
      $region20: #{rsa_block_forward.13} parent=15 // pred_fallthru
        _
      // Predicated region
      $region21: #{rsa_block_forward.13} parent=15 // pred_check
        %p134 = pneg %p72
      $region22: #{rsa_block_forward.13} parent=15 // pred_check_branch
        %136 = sbr.rel (%p134) target = $region24
      $region23: #{rsa_block_forward.13} parent=15 // pred_region
        %s137 = sadd.s32 %s16, 32
        %p138 = scmp.lt.s32.totalorder %s15, 1
        %s139 = scalar_select %p138, %s15, 1
        %p140 = scmp.lt.s32.totalorder %s137, 95
        %s141 = scalar_select %p140, %s137, 95
        %s142 = smul.addr %s139, 96
        %s143 = sadd.s32 %s141, %s142
        %s144 = smul.addr %s143, 4
        %s145 = scalar_lea.vmem %s1, %s144
        %s146 = sadd.s32 %s16, 32
      $region24: #{rsa_block_forward.13} parent=15 // pred_fallthru
        _
    $region16: #{rsa_block_forward.13} parent=5 // pred_fallthru
      _
    %p147 = scmp.le.s32.totalorder 1, %s8
    %p148 = scmp.lt.s32.totalorder %s8, 65
    %p149 = pnand %p147, %p148
    %p150 = pneg %p149
    // Predicated region
    $region25: #{rsa_block_forward.13} parent=5 // pred_check
      _
    $region26: #{rsa_block_forward.13} parent=5 // pred_check_branch
      %152 = sbr.rel (%p149) target = $region28
    $region27: #{rsa_block_forward.13} parent=5 // pred_region
      %s153 = ssub.s32 %s8, 1
      %p154 = scmp.lt.s32.totalorder %s17, 1
      %s155 = scalar_select %p154, %s17, 1
      %p156 = scmp.lt.s32.totalorder %s18, 95
      %s157 = scalar_select %p156, %s18, 95
      %s158 = smul.addr %s155, 96
      %s159 = sadd.s32 %s157, %s158
      %s160 = smul.addr %s159, 4
      %s161 = scalar_lea.vmem %s0, %s160
      %p162 = pneg %p48
      %p163 = pneg %p45
      %s164 = sadd.s32 %s18, 32
      %p165 = scmp.lt.s32.totalorder %s17, 1
      %s166 = scalar_select %p165, %s17, 1
      %p167 = scmp.lt.s32.totalorder %s164, 95
      %s168 = scalar_select %p167, %s164, 95
      %s169 = smul.addr %s166, 96
      %s170 = sadd.s32 %s168, %s169
      %s171 = smul.addr %s170, 4
      %s172 = scalar_lea.vmem %s1, %s171
      %p173 = pneg %p78
      %p174 = pneg %p75
      %p175 = pneg %p104
      %p176 = pneg %p101
      %p177 = scmp.lt.s32.totalorder %s17, 1
      %s178 = scalar_select %p177, %s17, 1
      %s179 = smul.addr %s178, 8
      %s180 = scalar_lea.vmem %s2, %s179
      %p181 = scmp.lt.s32.totalorder %s17, 1
      %s182 = scalar_select %p181, %s17, 1
      %p183 = scmp.lt.s32.totalorder %s18, 95
      %s184 = scalar_select %p183, %s18, 95
      %s185 = smul.addr %s182, 96
      %s186 = sadd.s32 %s184, %s185
      %s187 = smul.addr %s186, 4
      %s188 = scalar_lea.vmem %s0, %s187
      %s189 = sadd.s32 %s18, 32
      %p190 = scmp.lt.s32.totalorder %s17, 1
      %s191 = scalar_select %p190, %s17, 1
      %p192 = scmp.lt.s32.totalorder %s189, 95
      %s193 = scalar_select %p192, %s189, 95
      %s194 = smul.addr %s191, 96
      %s195 = sadd.s32 %s193, %s194
      %s196 = smul.addr %s195, 4
      %s197 = scalar_lea.vmem %s1, %s196
      %s198 = sadd.s32 %s18, 32
      %p199 = scmp.lt.s32.totalorder %s17, 1
      %s200 = scalar_select %p199, %s17, 1
      %s201 = smul.addr %s200, 8
      %s202 = scalar_lea.vmem %s2, %s201
      %p203 = scmp.eq.s32.totalorder %s18, 0
      // Predicated region
      $region29: #{rsa_block_forward.13} parent=27 // pred_check
        %p204 = pneg %p203
      $region30: #{rsa_block_forward.13} parent=27 // pred_check_branch
        %206 = sbr.rel (%p204) target = $region32
      $region31: #{rsa_block_forward.13} parent=27 // pred_region
        %vm207 = vcmask 64512
        %208 = vst.msk [vmem:[%s202] sm:$0xff] %vm207, 0.0
      $region32: #{rsa_block_forward.13} parent=27 // pred_fallthru
        _
      %v209 = vld [vmem:[%s188] sm:$0xf]
      %v210 = vunpack.c.l.bf16 %v209
      %v211 = vld [vmem:[%s197] sm:$0xf]
      %v212 = vunpack.c.l.bf16 %v211
      %v213 = vld [vmem:[%s202] sm:$0xff]
      %214 = vxpose.xlu0.b32.start [1/16] %v210, 128
      %215 = vxpose.xlu0.b32.cont [2/16] 0.0, 128
      %216 = vxpose.xlu0.b32.cont [3/16] 0.0, 128
      %217 = vxpose.xlu0.b32.cont [4/16] 0.0, 128
      %218 = vxpose.xlu0.b32.cont [5/16] 0.0, 128
      %219 = vxpose.xlu0.b32.cont [6/16] 0.0, 128
      %220 = vxpose.xlu0.b32.cont [7/16] 0.0, 128
      %221 = vxpose.xlu0.b32.cont [8/16] 0.0, 128
      %222 = vxpose.xlu0.b32.cont [9/16] 0.0, 128
      %223 = vxpose.xlu0.b32.cont [10/16] 0.0, 128
      %224 = vxpose.xlu0.b32.cont [11/16] 0.0, 128
      %225 = vxpose.xlu0.b32.cont [12/16] 0.0, 128
      %226 = vxpose.xlu0.b32.cont [13/16] 0.0, 128
      %227 = vxpose.xlu0.b32.cont [14/16] 0.0, 128
      %228 = vxpose.xlu0.b32.cont [15/16] 0.0, 128
      %229 = vxpose.xlu0.b32.end [16/16] 0.0, 128
      %v230 = vpop.trf.xlu0
      %v231 = vpop.trf.xlu0
      %v232 = vpop.trf.xlu0
      %v233 = vpop.trf.xlu0
      %v234 = vpop.trf.xlu0
      %v235 = vpop.trf.xlu0
      %v236 = vpop.trf.xlu0
      %v237 = vpop.trf.xlu0
      %v238 = vpop.trf.xlu0
      %v239 = vpop.trf.xlu0
      %v240 = vpop.trf.xlu0
      %v241 = vpop.trf.xlu0
      %v242 = vpop.trf.xlu0
      %v243 = vpop.trf.xlu0
      %v244 = vpop.trf.xlu0
      %v245 = vpop.trf.xlu0
      %vm246 = vcmask 64512
      %v248 = vsel %vm246, %v230, 0
      %250 = vmatpush.msra.mxu0 0.0
      %251 = vmatpush.msra.mxu0 0.0
      %252 = vmatpush.msra.mxu0 0.0
      %253 = vmatpush.msra.mxu0 0.0
      %254 = vmatpush.msra.mxu0 0.0
      %255 = vmatpush.msra.mxu0 0.0
      %256 = vmatpush.msra.mxu0 0.0
      %257 = vmatpush.msra.mxu0 0.0
      %258 = vmatpush.msra.mxu0 0.0
      %259 = vmatpush.msra.mxu0 0.0
      %260 = vmatpush.msra.mxu0 0.0
      %261 = vmatpush.msra.mxu0 0.0
      %262 = vmatpush.msra.mxu0 0.0
      %263 = vmatpush.msra.mxu0 0.0
      %264 = vmatpush.msra.mxu0 0.0
      %265 = vmatpush.msra.mxu0 %v212
      %266 = vmatmul.f32.gmra.mxu0 %v248
      %v267 = vpop.f32.mrf.mxu0
      %v268 = vadd.f32 0.0, %v267
      %269 = vdwg.mxu0
      %v270 = vadd.f32 %v213, %v268
      %271 = vst.msk [vmem:[%s202] sm:$0xff] %vm246, %v270
      %p272 = scmp.eq.s32.totalorder %s18, 31
      // Predicated region
      $region33: #{rsa_block_forward.13} parent=27 // pred_check
        %p273 = pneg %p272
      $region34: #{rsa_block_forward.13} parent=27 // pred_check_branch
        %275 = sbr.rel (%p273) target = $region36
      $region35: #{rsa_block_forward.13} parent=27 // pred_region
        %v276 = vld [vmem:[%s202] sm:$0xff]
        %v277 = vsel %vm246, %v276, -inf
        %278 = vmax.xlane.f32.xlu0 %v277
        %v279 = vpop.xlane.xlu0 %278
        %v280 = vsub.f32 %v276, %v279
        %v281 = vmul.f32 %v280, 1.442695
        %v282 = vpow.pop %v281
        %v283 = vsel %vm246, %v282, 0.0
        %284 = vadd.xlane.f32.xlu0 %v283
        %v285 = vpop.xlane.xlu0 %284
        %v286 = vrcp.pop %v285
        %v287 = vmul.f32 %v282, %v286
        %288 = vst.msk [vmem:[%s202] sm:$0xff] %vm246, %v287
      $region36: #{rsa_block_forward.13} parent=27 // pred_fallthru
        _
      %p289 = scmp.lt.s32.totalorder %s17, 1
      %s290 = scalar_select %p289, %s17, 1
      %s291 = smul.addr %s290, 8
      %s292 = scalar_lea.vmem %s2, %s291
      // Predicated region
      $region37: #{rsa_block_forward.13} parent=27 // pred_check
        %p293 = pneg %p101
      $region38: #{rsa_block_forward.13} parent=27 // pred_check_branch
        %295 = sbr.rel (%p293) target = $region40
      $region39: #{rsa_block_forward.13} parent=27 // pred_region
        _
      $region40: #{rsa_block_forward.13} parent=27 // pred_fallthru
        _
    $region28: #{rsa_block_forward.13} parent=5 // pred_fallthru
      _
    %p296 = scmp.le.s32.totalorder 2, %s8
    // Predicated region
    $region41: #{rsa_block_forward.13} parent=5 // pred_check
      %p297 = pneg %p296
    $region42: #{rsa_block_forward.13} parent=5 // pred_check_branch
      %299 = sbr.rel (%p297) target = $region44
    $region43: #{rsa_block_forward.13} parent=5 // pred_region
      %s300 = ssub.s32 %s8, 2
      // Predicated region
      $region45: #{rsa_block_forward.13} parent=43 // pred_check
        %p301 = pneg %p107
      $region46: #{rsa_block_forward.13} parent=43 // pred_check_branch
        %303 = sbr.rel (%p301) target = $region48
      $region47: #{rsa_block_forward.13} parent=43 // pred_region
        %p304 = scmp.lt.s32.totalorder %s19, 1
        %s305 = scalar_select %p304, %s19, 1
        %s306 = smul.addr %s305, 8
        %s307 = scalar_lea.vmem %s2, %s306
      $region48: #{rsa_block_forward.13} parent=43 // pred_fallthru
        _
    $region44: #{rsa_block_forward.13} parent=5 // pred_fallthru
      _
  $region6: #{rsa_block_forward.13} parent=0 // loop_footer
    %s12 = sadd.s32 1, %s8
  $region7: #{rsa_block_forward.13} parent=0 // loop_footer_branch
    %7 = sbr.rel target = $region3
  $region8: #{rsa_block_forward.13} parent=0 // loop_exit
    _

// kernel: rsa_block_forward.14
$region0: #{rsa_block_forward.14}
  #allocation0 [shape = 'u32[]', space=smem, size = 0x4, offset = 0x4, fixed_abs, tag = 'smem constant byte address 0x4 - core index']
  #allocation1 [shape = 'u32[72,128]{1,0:T(1,128)}', space=vmem, size = 0x9000, scoped, tag = 'internal scratch']
  #allocation2 [shape = 'f32[1]{0:T(128)S(6)}', space=smem, size = 0x200, scoped, tag = 'scoped memory for rsa_block_forward.14']
  %s0 = inlined_call_operand.<no memory space> [shape: f32[1], index: 0, kind: input, shape index: {}]
  %s1 = inlined_call_operand.vmem [shape: f32[2,8,8], index: 1, kind: input, shape index: {}]
  %s2 = inlined_call_operand.vmem [shape: bf16[2,96,8,8], index: 2, kind: input, shape index: {}]
  %s3 = inlined_call_operand.vmem [shape: f32[2,32,8,8], index: 3, kind: input, shape index: {}]
  %s4 = inlined_call_operand.vmem [shape: f32[2,32,8,8], index: 4, kind: output, shape index: {}]
  %s5 = sld [smem:[#allocation0]]
  $region49: #{rsa_block_forward.14} parent=0
    _
  %s7 = ssub.s32 1, %s5
  %s8 = scalar_select 0, %s7, %s5
  %9 = sst [smem:[#allocation2]] %s0
  loop: start=0, step=1, limit=66
  $region2: #{rsa_block_forward.14} parent=0 // loop_pre_header
    _
  $region3: #{rsa_block_forward.14} parent=0 // loop_header
    %s11 = sphi 0, %s15
    %p12 = scmp.ge.s32.totalorder %s11, 66
    %s18 = sphi 0, %s30
    %s19 = sphi 0, %s26
    %s20 = sphi 0, %s18
    %s21 = sphi 0, %s19
    %s22 = sphi 0, %s20
    %s23 = sphi 0, %s21
    %s31 = sphi 0, %s31
    %s33 = sphi 0, %s31
    %s34 = sphi 0, %s33
    %s48 = sphi 0, %s34
    %s54 = sphi 0, %s56
    %s57 = sphi 0, %s54
    %s58 = sphi 0, %s57
    %s74 = sphi 0, %s58
    %s84 = sphi 0, %s86
    %s87 = sphi 0, %s84
    %s88 = sphi 0, %s87
    %s104 = sphi 0, %s88
    %s112 = sphi 0, %s114
    %s115 = sphi 0, %s112
    %s116 = sphi 0, %s115
    %s132 = sphi 0, %s116
    %s140 = sphi 0, %s142
    %s143 = sphi 0, %s140
    %s144 = sphi 0, %s143
    %s160 = sphi 0, %s144
  $region4: #{rsa_block_forward.14} parent=0 // loop_header_branch
    %14 = sbr.rel (%p12) target = $region8
  $region5: #{rsa_block_forward.14} parent=0 // loop_body
    %s16 = ssub.s32 %s11, 1
    %s17 = ssub.s32 %s11, 2
    %s24 = sadd.s32 1, %s19
    %p25 = scmp.ge.s32.totalorder %s24, 32
    %s26 = scalar_select %p25, 0, %s24
    %s27 = sadd.s32 1, %s18
    %s28 = scalar_select %p25, %s27, %s18
    %p29 = scmp.ge.s32.totalorder %s28, 2
    %s30 = scalar_select %p29, 0, %s28
    %s32 = sadd.s32 %s31, 1
    %p35 = scmp.eq.s32.totalorder %s11, 63
    %p36 = scmp.ne.s32.totalorder %s31, %s33
    %p37 = scmp.eq.s32.totalorder %s11, 0
    %p38 = por %p36, %p37
    %p39 = scmp.ne.s32.totalorder %s31, %s33
    %p40 = scmp.eq.s32.totalorder %s16, 63
    %p41 = por %p39, %p40
    %p42 = scmp.ne.s32.totalorder %s33, %s34
    %p43 = scmp.eq.s32.totalorder %s16, 0
    %p44 = por %p42, %p43
    %p45 = scmp.ne.s32.totalorder %s33, %s34
    %p46 = scmp.eq.s32.totalorder %s17, 63
    %p47 = por %p45, %p46
    %p49 = scmp.ne.s32.totalorder %s34, %s48
    %p50 = scmp.eq.s32.totalorder %s17, 0
    %p51 = por %p49, %p50
    %s52 = ssub.s32 %s18, %s30
    %p53 = scmp.eq.s32.totalorder %s52, 0
    %s55 = sadd.s32 %s54, 1
    %s56 = scalar_select %p53, %s54, %s55
    %p59 = pneg %p53
    %p60 = scmp.eq.s32.totalorder %s11, 63
    %p61 = por %p59, %p60
    %p62 = scmp.ne.s32.totalorder %s54, %s57
    %p63 = scmp.eq.s32.totalorder %s11, 0
    %p64 = por %p62, %p63
    %p65 = scmp.ne.s32.totalorder %s54, %s57
    %p66 = scmp.eq.s32.totalorder %s16, 63
    %p67 = por %p65, %p66
    %p68 = scmp.ne.s32.totalorder %s57, %s58
    %p69 = scmp.eq.s32.totalorder %s16, 0
    %p70 = por %p68, %p69
    %p71 = scmp.ne.s32.totalorder %s57, %s58
    %p72 = scmp.eq.s32.totalorder %s17, 63
    %p73 = por %p71, %p72
    %p75 = scmp.ne.s32.totalorder %s58, %s74
    %p76 = scmp.eq.s32.totalorder %s17, 0
    %p77 = por %p75, %p76
    %s78 = sadd.s32 %s19, 64
    %s79 = sadd.s32 %s26, 64
    %s80 = ssub.s32 %s18, %s30
    %s81 = ssub.s32 %s78, %s79
    %s82 = sor.u32 %s80, %s81
    %p83 = scmp.eq.s32.totalorder %s82, 0
    %s85 = sadd.s32 %s84, 1
    %s86 = scalar_select %p83, %s84, %s85
    %p89 = pneg %p83
    %p90 = scmp.eq.s32.totalorder %s11, 63
    %p91 = por %p89, %p90
    %p92 = scmp.ne.s32.totalorder %s84, %s87
    %p93 = scmp.eq.s32.totalorder %s11, 0
    %p94 = por %p92, %p93
    %p95 = scmp.ne.s32.totalorder %s84, %s87
    %p96 = scmp.eq.s32.totalorder %s16, 63
    %p97 = por %p95, %p96
    %p98 = scmp.ne.s32.totalorder %s87, %s88
    %p99 = scmp.eq.s32.totalorder %s16, 0
    %p100 = por %p98, %p99
    %p101 = scmp.ne.s32.totalorder %s87, %s88
    %p102 = scmp.eq.s32.totalorder %s17, 63
    %p103 = por %p101, %p102
    %p105 = scmp.ne.s32.totalorder %s88, %s104
    %p106 = scmp.eq.s32.totalorder %s17, 0
    %p107 = por %p105, %p106
    %s108 = ssub.s32 %s18, %s30
    %s109 = ssub.s32 %s19, %s26
    %s110 = sor.u32 %s108, %s109
    %p111 = scmp.eq.s32.totalorder %s110, 0
    %s113 = sadd.s32 %s112, 1
    %s114 = scalar_select %p111, %s112, %s113
    %p117 = pneg %p111
    %p118 = scmp.eq.s32.totalorder %s11, 63
    %p119 = por %p117, %p118
    %p120 = scmp.ne.s32.totalorder %s112, %s115
    %p121 = scmp.eq.s32.totalorder %s11, 0
    %p122 = por %p120, %p121
    %p123 = scmp.ne.s32.totalorder %s112, %s115
    %p124 = scmp.eq.s32.totalorder %s16, 63
    %p125 = por %p123, %p124
    %p126 = scmp.ne.s32.totalorder %s115, %s116
    %p127 = scmp.eq.s32.totalorder %s16, 0
    %p128 = por %p126, %p127
    %p129 = scmp.ne.s32.totalorder %s115, %s116
    %p130 = scmp.eq.s32.totalorder %s17, 63
    %p131 = por %p129, %p130
    %p133 = scmp.ne.s32.totalorder %s116, %s132
    %p134 = scmp.eq.s32.totalorder %s17, 0
    %p135 = por %p133, %p134
    %s136 = ssub.s32 %s18, %s30
    %s137 = ssub.s32 %s19, %s26
    %s138 = sor.u32 %s136, %s137
    %p139 = scmp.eq.s32.totalorder %s138, 0
    %s141 = sadd.s32 %s140, 1
    %s142 = scalar_select %p139, %s140, %s141
    %p145 = pneg %p139
    %p146 = scmp.eq.s32.totalorder %s11, 63
    %p147 = por %p145, %p146
    %p148 = scmp.ne.s32.totalorder %s140, %s143
    %p149 = scmp.eq.s32.totalorder %s11, 0
    %p150 = por %p148, %p149
    %p151 = scmp.ne.s32.totalorder %s140, %s143
    %p152 = scmp.eq.s32.totalorder %s16, 63
    %p153 = por %p151, %p152
    %p154 = scmp.ne.s32.totalorder %s143, %s144
    %p155 = scmp.eq.s32.totalorder %s16, 0
    %p156 = por %p154, %p155
    %p157 = scmp.ne.s32.totalorder %s143, %s144
    %p158 = scmp.eq.s32.totalorder %s17, 63
    %p159 = por %p157, %p158
    %p161 = scmp.ne.s32.totalorder %s144, %s160
    %p162 = scmp.eq.s32.totalorder %s17, 0
    %p163 = por %p161, %p162
    %p164 = scmp.le.s32.totalorder 1, %s11
    %p165 = scmp.lt.s32.totalorder %s11, 65
    %p166 = pnand %p164, %p165
    %p167 = pneg %p166
    // Predicated region
    $region9: #{rsa_block_forward.14} parent=5 // pred_check
      _
    $region10: #{rsa_block_forward.14} parent=5 // pred_check_branch
      %169 = sbr.rel (%p166) target = $region12
    $region11: #{rsa_block_forward.14} parent=5 // pred_region
      %s170 = ssub.s32 %s11, 1
      // Predicated region
      $region13: #{rsa_block_forward.14} parent=11 // pred_check
        %p171 = pneg %p44
      $region14: #{rsa_block_forward.14} parent=11 // pred_check_branch
        %173 = sbr.rel (%p171) target = $region16
      $region15: #{rsa_block_forward.14} parent=11 // pred_region
        _
      $region16: #{rsa_block_forward.14} parent=11 // pred_fallthru
        _
    $region12: #{rsa_block_forward.14} parent=5 // pred_fallthru
      _
    %p174 = scmp.lt.s32.totalorder %s11, 64
    // Predicated region
    $region17: #{rsa_block_forward.14} parent=5 // pred_check
      %p175 = pneg %p174
    $region18: #{rsa_block_forward.14} parent=5 // pred_check_branch
      %177 = sbr.rel (%p175) target = $region20
    $region19: #{rsa_block_forward.14} parent=5 // pred_region
      // Predicated region
      $region21: #{rsa_block_forward.14} parent=19 // pred_check
        %p178 = pneg %p64
      $region22: #{rsa_block_forward.14} parent=19 // pred_check_branch
        %180 = sbr.rel (%p178) target = $region24
      $region23: #{rsa_block_forward.14} parent=19 // pred_region
        %p181 = scmp.lt.s32.totalorder %s18, 1
        %s182 = scalar_select %p181, %s18, 1
        %s183 = smul.addr %s182, 8
        %s184 = scalar_lea.vmem %s1, %s183
      $region24: #{rsa_block_forward.14} parent=19 // pred_fallthru
        _
      // Predicated region
      $region25: #{rsa_block_forward.14} parent=19 // pred_check
        %p185 = pneg %p94
      $region26: #{rsa_block_forward.14} parent=19 // pred_check_branch
        %187 = sbr.rel (%p185) target = $region28
      $region27: #{rsa_block_forward.14} parent=19 // pred_region
        %s188 = sadd.s32 %s19, 64
        %p189 = scmp.lt.s32.totalorder %s18, 1
        %s190 = scalar_select %p189, %s18, 1
        %p191 = scmp.lt.s32.totalorder %s188, 95
        %s192 = scalar_select %p191, %s188, 95
        %s193 = smul.addr %s190, 96
        %s194 = sadd.s32 %s192, %s193
        %s195 = smul.addr %s194, 4
        %s196 = scalar_lea.vmem %s2, %s195
        %s197 = sadd.s32 %s19, 64
      $region28: #{rsa_block_forward.14} parent=19 // pred_fallthru
        _
      // Predicated region
      $region29: #{rsa_block_forward.14} parent=19 // pred_check
        %p198 = pneg %p122
      $region30: #{rsa_block_forward.14} parent=19 // pred_check_branch
        %200 = sbr.rel (%p198) target = $region32
      $region31: #{rsa_block_forward.14} parent=19 // pred_region
        %p201 = scmp.lt.s32.totalorder %s18, 1
        %s202 = scalar_select %p201, %s18, 1
        %p203 = scmp.lt.s32.totalorder %s19, 31
        %s204 = scalar_select %p203, %s19, 31
        %s205 = smul.addr %s202, 32
        %s206 = sadd.s32 %s204, %s205
        %s207 = smul.addr %s206, 8
        %s208 = scalar_lea.vmem %s3, %s207
      $region32: #{rsa_block_forward.14} parent=19 // pred_fallthru
        _
    $region20: #{rsa_block_forward.14} parent=5 // pred_fallthru
      _
    %p209 = scmp.le.s32.totalorder 1, %s11
    %p210 = scmp.lt.s32.totalorder %s11, 65
    %p211 = pnand %p209, %p210
    %p212 = pneg %p211
    // Predicated region
    $region33: #{rsa_block_forward.14} parent=5 // pred_check
      _
    $region34: #{rsa_block_forward.14} parent=5 // pred_check_branch
      %214 = sbr.rel (%p211) target = $region36
    $region35: #{rsa_block_forward.14} parent=5 // pred_region
      %s215 = ssub.s32 %s11, 1
      %p216 = pneg %p44
      %p217 = pneg %p41
      %p218 = scmp.lt.s32.totalorder %s20, 1
      %s219 = scalar_select %p218, %s20, 1
      %s220 = smul.addr %s219, 8
      %s221 = scalar_lea.vmem %s1, %s220
      %p222 = pneg %p70
      %p223 = pneg %p67
      %s224 = sadd.s32 %s21, 64
      %p225 = scmp.lt.s32.totalorder %s20, 1
      %s226 = scalar_select %p225, %s20, 1
      %p227 = scmp.lt.s32.totalorder %s224, 95
      %s228 = scalar_select %p227, %s224, 95
      %s229 = smul.addr %s226, 96
      %s230 = sadd.s32 %s228, %s229
      %s231 = smul.addr %s230, 4
      %s232 = scalar_lea.vmem %s2, %s231
      %p233 = pneg %p100
      %p234 = pneg %p97
      %p235 = scmp.lt.s32.totalorder %s20, 1
      %s236 = scalar_select %p235, %s20, 1
      %p237 = scmp.lt.s32.totalorder %s21, 31
      %s238 = scalar_select %p237, %s21, 31
      %s239 = smul.addr %s236, 32
      %s240 = sadd.s32 %s238, %s239
      %s241 = smul.addr %s240, 8
      %s242 = scalar_lea.vmem %s3, %s241
      %p243 = pneg %p128
      %p244 = pneg %p125
      %p245 = pneg %p156
      %p246 = pneg %p153
      %p247 = scmp.lt.s32.totalorder %s20, 1
      %s248 = scalar_select %p247, %s20, 1
      %p249 = scmp.lt.s32.totalorder %s21, 31
      %s250 = scalar_select %p249, %s21, 31
      %s251 = smul.addr %s248, 32
      %s252 = sadd.s32 %s250, %s251
      %s253 = smul.addr %s252, 8
      %s254 = scalar_lea.vmem %s4, %s253
      %p255 = scmp.lt.s32.totalorder %s20, 1
      %s256 = scalar_select %p255, %s20, 1
      %s257 = smul.addr %s256, 8
      %s258 = scalar_lea.vmem %s1, %s257
      %s259 = sadd.s32 %s21, 64
      %p260 = scmp.lt.s32.totalorder %s20, 1
      %s261 = scalar_select %p260, %s20, 1
      %p262 = scmp.lt.s32.totalorder %s259, 95
      %s263 = scalar_select %p262, %s259, 95
      %s264 = smul.addr %s261, 96
      %s265 = sadd.s32 %s263, %s264
      %s266 = smul.addr %s265, 4
      %s267 = scalar_lea.vmem %s2, %s266
      %s268 = sadd.s32 %s21, 64
      %p269 = scmp.lt.s32.totalorder %s20, 1
      %s270 = scalar_select %p269, %s20, 1
      %p271 = scmp.lt.s32.totalorder %s21, 31
      %s272 = scalar_select %p271, %s21, 31
      %s273 = smul.addr %s270, 32
      %s274 = sadd.s32 %s272, %s273
      %s275 = smul.addr %s274, 8
      %s276 = scalar_lea.vmem %s3, %s275
      %p277 = scmp.lt.s32.totalorder %s20, 1
      %s278 = scalar_select %p277, %s20, 1
      %p279 = scmp.lt.s32.totalorder %s21, 31
      %s280 = scalar_select %p279, %s21, 31
      %s281 = smul.addr %s278, 32
      %s282 = sadd.s32 %s280, %s281
      %s283 = smul.addr %s282, 8
      %s284 = scalar_lea.vmem %s4, %s283
      %v285 = vld [vmem:[%s258] sm:$0xff]
      %v286 = vld [vmem:[%s267] sm:$0xf]
      %v287 = vunpack.c.l.bf16 %v286
      %vm288 = vcmask 64512
      %v290 = vsel %vm288, %v287, 0
      %v293 = vsel %vm288, %v285, 0
      %295 = vmatpush.xpose.msra.mxu0 0.0
      %296 = vmatpush.xpose.msra.mxu0 0.0
      %297 = vmatpush.xpose.msra.mxu0 0.0
      %298 = vmatpush.xpose.msra.mxu0 0.0
      %299 = vmatpush.xpose.msra.mxu0 0.0
      %300 = vmatpush.xpose.msra.mxu0 0.0
      %301 = vmatpush.xpose.msra.mxu0 0.0
      %302 = vmatpush.xpose.msra.mxu0 0.0
      %303 = vmatpush.xpose.msra.mxu0 0.0
      %304 = vmatpush.xpose.msra.mxu0 0.0
      %305 = vmatpush.xpose.msra.mxu0 0.0
      %306 = vmatpush.xpose.msra.mxu0 0.0
      %307 = vmatpush.xpose.msra.mxu0 0.0
      %308 = vmatpush.xpose.msra.mxu0 0.0
      %309 = vmatpush.xpose.msra.mxu0 0.0
      %310 = vmatpush.xpose.msra.mxu0 %v293
      %311 = vmatmul.f32.gmra.mxu0 %v290
      %v312 = vpop.f32.mrf.mxu0
      %v313 = vadd.f32 0.0, %v312
      %314 = vdwg.mxu0
      %v315 = vld [vmem:[%s276] sm:$0xff]
      %s316 = sld [smem:[#allocation2]]
      %v317 = vstv %s316
      %v318 = vmul.f32 %v317, %v313
      %v319 = vadd.f32 %v315, %v318
      %320 = vst.msk [vmem:[%s284] sm:$0xff] %vm288, %v319
      %p321 = scmp.lt.s32.totalorder %s20, 1
      %s322 = scalar_select %p321, %s20, 1
      %p323 = scmp.lt.s32.totalorder %s21, 31
      %s324 = scalar_select %p323, %s21, 31
      %s325 = smul.addr %s322, 32
      %s326 = sadd.s32 %s324, %s325
      %s327 = smul.addr %s326, 8
      %s328 = scalar_lea.vmem %s4, %s327
      // Predicated region
      $region37: #{rsa_block_forward.14} parent=35 // pred_check
        %p329 = pneg %p153
      $region38: #{rsa_block_forward.14} parent=35 // pred_check_branch
        %331 = sbr.rel (%p329) target = $region40
      $region39: #{rsa_block_forward.14} parent=35 // pred_region
        _
      $region40: #{rsa_block_forward.14} parent=35 // pred_fallthru
        _
    $region36: #{rsa_block_forward.14} parent=5 // pred_fallthru
      _
    %p332 = scmp.le.s32.totalorder 2, %s11
    // Predicated region
    $region41: #{rsa_block_forward.14} parent=5 // pred_check
      %p333 = pneg %p332
    $region42: #{rsa_block_forward.14} parent=5 // pred_check_branch
      %335 = sbr.rel (%p333) target = $region44
    $region43: #{rsa_block_forward.14} parent=5 // pred_region
      %s336 = ssub.s32 %s11, 2
      // Predicated region
      $region45: #{rsa_block_forward.14} parent=43 // pred_check
        %p337 = pneg %p159
      $region46: #{rsa_block_forward.14} parent=43 // pred_check_branch
        %339 = sbr.rel (%p337) target = $region48
      $region47: #{rsa_block_forward.14} parent=43 // pred_region
        %p340 = scmp.lt.s32.totalorder %s22, 1
        %s341 = scalar_select %p340, %s22, 1
        %p342 = scmp.lt.s32.totalorder %s23, 31
        %s343 = scalar_select %p342, %s23, 31
        %s344 = smul.addr %s341, 32
        %s345 = sadd.s32 %s343, %s344
        %s346 = smul.addr %s345, 8
        %s347 = scalar_lea.vmem %s4, %s346
      $region48: #{rsa_block_forward.14} parent=43 // pred_fallthru
        _
    $region44: #{rsa_block_forward.14} parent=5 // pred_fallthru
      _
  $region6: #{rsa_block_forward.14} parent=0 // loop_footer
    %s15 = sadd.s32 1, %s11
  $region7: #{rsa_block_forward.14} parent=0 // loop_footer_branch
    %10 = sbr.rel target = $region3
  $region8: #{rsa_block_forward.14} parent=0 // loop_exit
    _

// kernel: rsa_block_forward.16
$region0: #{rsa_block_forward.16}
  #allocation0 [shape = 'u32[]', space=smem, size = 0x4, offset = 0x4, fixed_abs, tag = 'smem constant byte address 0x4 - core index']
  #allocation1 [shape = 'u32[72,128]{1,0:T(1,128)}', space=vmem, size = 0x9000, scoped, tag = 'internal scratch']
  %s0 = inlined_call_operand.vmem [shape: bf16[2,12,8,64], index: 0, kind: input, shape index: {}, may-alias: {0,1}]
  %s1 = inlined_call_operand.vmem [shape: bf16[2,12,8,64], index: 1, kind: input, shape index: {}, may-alias: {0,1}]
  %s2 = inlined_call_operand.vmem [shape: f32[2,8,8], index: 2, kind: output, shape index: {}]
  %s3 = sld [smem:[#allocation0]]
  $region49: #{rsa_block_forward.16} parent=0
    _
  %s5 = ssub.s32 1, %s3
  %s6 = scalar_select 0, %s5, %s3
  loop: start=0, step=1, limit=10
  $region2: #{rsa_block_forward.16} parent=0 // loop_pre_header
    _
  $region3: #{rsa_block_forward.16} parent=0 // loop_header
    %s8 = sphi 0, %s12
    %p9 = scmp.ge.s32.totalorder %s8, 10
    %s15 = sphi 0, %s27
    %s16 = sphi 0, %s23
    %s17 = sphi 0, %s15
    %s18 = sphi 0, %s16
    %s19 = sphi 0, %s17
    %s20 = sphi 0, %s18
    %s32 = sphi 0, %s34
    %s35 = sphi 0, %s32
    %s36 = sphi 0, %s35
    %s52 = sphi 0, %s36
    %s62 = sphi 0, %s64
    %s65 = sphi 0, %s62
    %s66 = sphi 0, %s65
    %s82 = sphi 0, %s66
    %s88 = sphi 0, %s90
    %s91 = sphi 0, %s88
    %s92 = sphi 0, %s91
    %s108 = sphi 0, %s92
  $region4: #{rsa_block_forward.16} parent=0 // loop_header_branch
    %11 = sbr.rel (%p9) target = $region8
  $region5: #{rsa_block_forward.16} parent=0 // loop_body
    %s13 = ssub.s32 %s8, 1
    %s14 = ssub.s32 %s8, 2
    %s21 = sadd.s32 1, %s16
    %p22 = scmp.ge.s32.totalorder %s21, 4
    %s23 = scalar_select %p22, 0, %s21
    %s24 = sadd.s32 1, %s15
    %s25 = scalar_select %p22, %s24, %s15
    %p26 = scmp.ge.s32.totalorder %s25, 2
    %s27 = scalar_select %p26, 0, %s25
    %s28 = ssub.s32 %s15, %s27
    %s29 = ssub.s32 %s16, %s23
    %s30 = sor.u32 %s28, %s29
    %p31 = scmp.eq.s32.totalorder %s30, 0
    %s33 = sadd.s32 %s32, 1
    %s34 = scalar_select %p31, %s32, %s33
    %p37 = pneg %p31
    %p38 = scmp.eq.s32.totalorder %s8, 7
    %p39 = por %p37, %p38
    %p40 = scmp.ne.s32.totalorder %s32, %s35
    %p41 = scmp.eq.s32.totalorder %s8, 0
    %p42 = por %p40, %p41
    %p43 = scmp.ne.s32.totalorder %s32, %s35
    %p44 = scmp.eq.s32.totalorder %s13, 7
    %p45 = por %p43, %p44
    %p46 = scmp.ne.s32.totalorder %s35, %s36
    %p47 = scmp.eq.s32.totalorder %s13, 0
    %p48 = por %p46, %p47
    %p49 = scmp.ne.s32.totalorder %s35, %s36
    %p50 = scmp.eq.s32.totalorder %s14, 7
    %p51 = por %p49, %p50
    %p53 = scmp.ne.s32.totalorder %s36, %s52
    %p54 = scmp.eq.s32.totalorder %s14, 0
    %p55 = por %p53, %p54
    %s56 = sadd.s32 %s16, 4
    %s57 = sadd.s32 %s23, 4
    %s58 = ssub.s32 %s15, %s27
    %s59 = ssub.s32 %s56, %s57
    %s60 = sor.u32 %s58, %s59
    %p61 = scmp.eq.s32.totalorder %s60, 0
    %s63 = sadd.s32 %s62, 1
    %s64 = scalar_select %p61, %s62, %s63
    %p67 = pneg %p61
    %p68 = scmp.eq.s32.totalorder %s8, 7
    %p69 = por %p67, %p68
    %p70 = scmp.ne.s32.totalorder %s62, %s65
    %p71 = scmp.eq.s32.totalorder %s8, 0
    %p72 = por %p70, %p71
    %p73 = scmp.ne.s32.totalorder %s62, %s65
    %p74 = scmp.eq.s32.totalorder %s13, 7
    %p75 = por %p73, %p74
    %p76 = scmp.ne.s32.totalorder %s65, %s66
    %p77 = scmp.eq.s32.totalorder %s13, 0
    %p78 = por %p76, %p77
    %p79 = scmp.ne.s32.totalorder %s65, %s66
    %p80 = scmp.eq.s32.totalorder %s14, 7
    %p81 = por %p79, %p80
    %p83 = scmp.ne.s32.totalorder %s66, %s82
    %p84 = scmp.eq.s32.totalorder %s14, 0
    %p85 = por %p83, %p84
    %s86 = ssub.s32 %s15, %s27
    %p87 = scmp.eq.s32.totalorder %s86, 0
    %s89 = sadd.s32 %s88, 1
    %s90 = scalar_select %p87, %s88, %s89
    %p93 = pneg %p87
    %p94 = scmp.eq.s32.totalorder %s8, 7
    %p95 = por %p93, %p94
    %p96 = scmp.ne.s32.totalorder %s88, %s91
    %p97 = scmp.eq.s32.totalorder %s8, 0
    %p98 = por %p96, %p97
    %p99 = scmp.ne.s32.totalorder %s88, %s91
    %p100 = scmp.eq.s32.totalorder %s13, 7
    %p101 = por %p99, %p100
    %p102 = scmp.ne.s32.totalorder %s91, %s92
    %p103 = scmp.eq.s32.totalorder %s13, 0
    %p104 = por %p102, %p103
    %p105 = scmp.ne.s32.totalorder %s91, %s92
    %p106 = scmp.eq.s32.totalorder %s14, 7
    %p107 = por %p105, %p106
    %p109 = scmp.ne.s32.totalorder %s92, %s108
    %p110 = scmp.eq.s32.totalorder %s14, 0
    %p111 = por %p109, %p110
    %p112 = scmp.le.s32.totalorder 1, %s8
    %p113 = scmp.lt.s32.totalorder %s8, 9
    %p114 = pnand %p112, %p113
    %p115 = pneg %p114
    // Predicated region
    $region9: #{rsa_block_forward.16} parent=5 // pred_check
      _
    $region10: #{rsa_block_forward.16} parent=5 // pred_check_branch
      %117 = sbr.rel (%p114) target = $region12
    $region11: #{rsa_block_forward.16} parent=5 // pred_region
      %s118 = ssub.s32 %s8, 1
    $region12: #{rsa_block_forward.16} parent=5 // pred_fallthru
      _
    %p119 = scmp.lt.s32.totalorder %s8, 8
    // Predicated region
    $region13: #{rsa_block_forward.16} parent=5 // pred_check
      %p120 = pneg %p119
    $region14: #{rsa_block_forward.16} parent=5 // pred_check_branch
      %122 = sbr.rel (%p120) target = $region16
    $region15: #{rsa_block_forward.16} parent=5 // pred_region
      // Predicated region
      $region17: #{rsa_block_forward.16} parent=15 // pred_check
        %p123 = pneg %p42
      $region18: #{rsa_block_forward.16} parent=15 // pred_check_branch
        %125 = sbr.rel (%p123) target = $region20
      $region19: #{rsa_block_forward.16} parent=15 // pred_region
        %p126 = scmp.lt.s32.totalorder %s15, 1
        %s127 = scalar_select %p126, %s15, 1
        %p128 = scmp.lt.s32.totalorder %s16, 11
        %s129 = scalar_select %p128, %s16, 11
        %s130 = smul.addr %s127, 12
        %s131 = sadd.s32 %s129, %s130
        %s132 = smul.addr %s131, 4
        %s133 = scalar_lea.vmem %s0, %s132
      $region20: #{rsa_block_forward.16} parent=15 // pred_fallthru
        _
      // Predicated region
      $region21: #{rsa_block_forward.16} parent=15 // pred_check
        %p134 = pneg %p72
      $region22: #{rsa_block_forward.16} parent=15 // pred_check_branch
        %136 = sbr.rel (%p134) target = $region24
      $region23: #{rsa_block_forward.16} parent=15 // pred_region
        %s137 = sadd.s32 %s16, 4
        %p138 = scmp.lt.s32.totalorder %s15, 1
        %s139 = scalar_select %p138, %s15, 1
        %p140 = scmp.lt.s32.totalorder %s137, 11
        %s141 = scalar_select %p140, %s137, 11
        %s142 = smul.addr %s139, 12
        %s143 = sadd.s32 %s141, %s142
        %s144 = smul.addr %s143, 4
        %s145 = scalar_lea.vmem %s1, %s144
        %s146 = sadd.s32 %s16, 4
      $region24: #{rsa_block_forward.16} parent=15 // pred_fallthru
        _
    $region16: #{rsa_block_forward.16} parent=5 // pred_fallthru
      _
    %p147 = scmp.le.s32.totalorder 1, %s8
    %p148 = scmp.lt.s32.totalorder %s8, 9
    %p149 = pnand %p147, %p148
    %p150 = pneg %p149
    // Predicated region
    $region25: #{rsa_block_forward.16} parent=5 // pred_check
      _
    $region26: #{rsa_block_forward.16} parent=5 // pred_check_branch
      %152 = sbr.rel (%p149) target = $region28
    $region27: #{rsa_block_forward.16} parent=5 // pred_region
      %s153 = ssub.s32 %s8, 1
      %p154 = scmp.lt.s32.totalorder %s17, 1
      %s155 = scalar_select %p154, %s17, 1
      %p156 = scmp.lt.s32.totalorder %s18, 11
      %s157 = scalar_select %p156, %s18, 11
      %s158 = smul.addr %s155, 12
      %s159 = sadd.s32 %s157, %s158
      %s160 = smul.addr %s159, 4
      %s161 = scalar_lea.vmem %s0, %s160
      %p162 = pneg %p48
      %p163 = pneg %p45
      %s164 = sadd.s32 %s18, 4
      %p165 = scmp.lt.s32.totalorder %s17, 1
      %s166 = scalar_select %p165, %s17, 1
      %p167 = scmp.lt.s32.totalorder %s164, 11
      %s168 = scalar_select %p167, %s164, 11
      %s169 = smul.addr %s166, 12
      %s170 = sadd.s32 %s168, %s169
      %s171 = smul.addr %s170, 4
      %s172 = scalar_lea.vmem %s1, %s171
      %p173 = pneg %p78
      %p174 = pneg %p75
      %p175 = pneg %p104
      %p176 = pneg %p101
      %p177 = scmp.lt.s32.totalorder %s17, 1
      %s178 = scalar_select %p177, %s17, 1
      %s179 = smul.addr %s178, 8
      %s180 = scalar_lea.vmem %s2, %s179
      %p181 = scmp.lt.s32.totalorder %s17, 1
      %s182 = scalar_select %p181, %s17, 1
      %p183 = scmp.lt.s32.totalorder %s18, 11
      %s184 = scalar_select %p183, %s18, 11
      %s185 = smul.addr %s182, 12
      %s186 = sadd.s32 %s184, %s185
      %s187 = smul.addr %s186, 4
      %s188 = scalar_lea.vmem %s0, %s187
      %s189 = sadd.s32 %s18, 4
      %p190 = scmp.lt.s32.totalorder %s17, 1
      %s191 = scalar_select %p190, %s17, 1
      %p192 = scmp.lt.s32.totalorder %s189, 11
      %s193 = scalar_select %p192, %s189, 11
      %s194 = smul.addr %s191, 12
      %s195 = sadd.s32 %s193, %s194
      %s196 = smul.addr %s195, 4
      %s197 = scalar_lea.vmem %s1, %s196
      %s198 = sadd.s32 %s18, 4
      %p199 = scmp.lt.s32.totalorder %s17, 1
      %s200 = scalar_select %p199, %s17, 1
      %s201 = smul.addr %s200, 8
      %s202 = scalar_lea.vmem %s2, %s201
      %p203 = scmp.eq.s32.totalorder %s18, 0
      // Predicated region
      $region29: #{rsa_block_forward.16} parent=27 // pred_check
        %p204 = pneg %p203
      $region30: #{rsa_block_forward.16} parent=27 // pred_check_branch
        %206 = sbr.rel (%p204) target = $region32
      $region31: #{rsa_block_forward.16} parent=27 // pred_region
        %vm207 = vcmask 64512
        %208 = vst.msk [vmem:[%s202] sm:$0xff] %vm207, 0.0
      $region32: #{rsa_block_forward.16} parent=27 // pred_fallthru
        _
      %v209 = vld [vmem:[%s188] sm:$0xf]
      %v210 = vunpack.c.l.bf16 %v209
      %v211 = vld [vmem:[%s197] sm:$0xf]
      %v212 = vunpack.c.l.bf16 %v211
      %v213 = vld [vmem:[%s202] sm:$0xff]
      %vm214 = vcmask 523264
      %v216 = vsel %vm214, %v210, 0
      %v219 = vsel %vm214, %v212, 0
      %221 = vmatpush.xpose.msra.mxu0 0.0
      %222 = vmatpush.xpose.msra.mxu0 0.0
      %223 = vmatpush.xpose.msra.mxu0 0.0
      %224 = vmatpush.xpose.msra.mxu0 0.0
      %225 = vmatpush.xpose.msra.mxu0 0.0
      %226 = vmatpush.xpose.msra.mxu0 0.0
      %227 = vmatpush.xpose.msra.mxu0 0.0
      %228 = vmatpush.xpose.msra.mxu0 0.0
      %229 = vmatpush.xpose.msra.mxu0 0.0
      %230 = vmatpush.xpose.msra.mxu0 0.0
      %231 = vmatpush.xpose.msra.mxu0 0.0
      %232 = vmatpush.xpose.msra.mxu0 0.0
      %233 = vmatpush.xpose.msra.mxu0 0.0
      %234 = vmatpush.xpose.msra.mxu0 0.0
      %235 = vmatpush.xpose.msra.mxu0 0.0
      %236 = vmatpush.xpose.msra.mxu0 %v219
      %237 = vmatmul.f32.gmra.mxu0 %v216
      %v238 = vpop.f32.mrf.mxu0
      %v239 = vadd.f32 0.0, %v238
      %240 = vdwg.mxu0
      %v241 = vadd.f32 %v213, %v239
      %vm242 = vcmask 64512
      %243 = vst.msk [vmem:[%s202] sm:$0xff] %vm242, %v241
      %p244 = scmp.eq.s32.totalorder %s18, 3
      // Predicated region
      $region33: #{rsa_block_forward.16} parent=27 // pred_check
        %p245 = pneg %p244
      $region34: #{rsa_block_forward.16} parent=27 // pred_check_branch
        %247 = sbr.rel (%p245) target = $region36
      $region35: #{rsa_block_forward.16} parent=27 // pred_region
        %v248 = vld [vmem:[%s202] sm:$0xff]
        %v249 = vsel %vm242, %v248, -inf
        %250 = vmax.xlane.f32.xlu0 %v249
        %v251 = vpop.xlane.xlu0 %250
        %v252 = vsub.f32 %v248, %v251
        %v253 = vmul.f32 %v252, 1.442695
        %v254 = vpow.pop %v253
        %v255 = vsel %vm242, %v254, 0.0
        %256 = vadd.xlane.f32.xlu0 %v255
        %v257 = vpop.xlane.xlu0 %256
        %v258 = vrcp.pop %v257
        %v259 = vmul.f32 %v254, %v258
        %260 = vst.msk [vmem:[%s202] sm:$0xff] %vm242, %v259
      $region36: #{rsa_block_forward.16} parent=27 // pred_fallthru
        _
      %p261 = scmp.lt.s32.totalorder %s17, 1
      %s262 = scalar_select %p261, %s17, 1
      %s263 = smul.addr %s262, 8
      %s264 = scalar_lea.vmem %s2, %s263
      // Predicated region
      $region37: #{rsa_block_forward.16} parent=27 // pred_check
        %p265 = pneg %p101
      $region38: #{rsa_block_forward.16} parent=27 // pred_check_branch
        %267 = sbr.rel (%p265) target = $region40
      $region39: #{rsa_block_forward.16} parent=27 // pred_region
        _
      $region40: #{rsa_block_forward.16} parent=27 // pred_fallthru
        _
    $region28: #{rsa_block_forward.16} parent=5 // pred_fallthru
      _
    %p268 = scmp.le.s32.totalorder 2, %s8
    // Predicated region
    $region41: #{rsa_block_forward.16} parent=5 // pred_check
      %p269 = pneg %p268
    $region42: #{rsa_block_forward.16} parent=5 // pred_check_branch
      %271 = sbr.rel (%p269) target = $region44
    $region43: #{rsa_block_forward.16} parent=5 // pred_region
      %s272 = ssub.s32 %s8, 2
      // Predicated region
      $region45: #{rsa_block_forward.16} parent=43 // pred_check
        %p273 = pneg %p107
      $region46: #{rsa_block_forward.16} parent=43 // pred_check_branch
        %275 = sbr.rel (%p273) target = $region48
      $region47: #{rsa_block_forward.16} parent=43 // pred_region
        %p276 = scmp.lt.s32.totalorder %s19, 1
        %s277 = scalar_select %p276, %s19, 1
        %s278 = smul.addr %s277, 8
        %s279 = scalar_lea.vmem %s2, %s278
      $region48: #{rsa_block_forward.16} parent=43 // pred_fallthru
        _
    $region44: #{rsa_block_forward.16} parent=5 // pred_fallthru
      _
  $region6: #{rsa_block_forward.16} parent=0 // loop_footer
    %s12 = sadd.s32 1, %s8
  $region7: #{rsa_block_forward.16} parent=0 // loop_footer_branch
    %7 = sbr.rel target = $region3
  $region8: #{rsa_block_forward.16} parent=0 // loop_exit
    _

// kernel: rsa_block_forward.17
$region0: #{rsa_block_forward.17}
  #allocation0 [shape = 'u32[]', space=smem, size = 0x4, offset = 0x4, fixed_abs, tag = 'smem constant byte address 0x4 - core index']
  #allocation1 [shape = 'u32[72,128]{1,0:T(1,128)}', space=vmem, size = 0x9000, scoped, tag = 'internal scratch']
  #allocation2 [shape = 'f32[1]{0:T(128)S(6)}', space=smem, size = 0x200, scoped, tag = 'scoped memory for rsa_block_forward.17']
  %s0 = inlined_call_operand.<no memory space> [shape: f32[1], index: 0, kind: input, shape index: {}]
  %s1 = inlined_call_operand.vmem [shape: f32[2,8,8], index: 1, kind: input, shape index: {}]
  %s2 = inlined_call_operand.vmem [shape: bf16[2,12,8,64], index: 2, kind: input, shape index: {}]
  %s3 = inlined_call_operand.vmem [shape: f32[2,4,8,64], index: 3, kind: input, shape index: {}]
  %s4 = inlined_call_operand.vmem [shape: f32[2,4,8,64], index: 4, kind: output, shape index: {}]
  %s5 = sld [smem:[#allocation0]]
  $region49: #{rsa_block_forward.17} parent=0
    _
  %s7 = ssub.s32 1, %s5
  %s8 = scalar_select 0, %s7, %s5
  %9 = sst [smem:[#allocation2]] %s0
  loop: start=0, step=1, limit=10
  $region2: #{rsa_block_forward.17} parent=0 // loop_pre_header
    _
  $region3: #{rsa_block_forward.17} parent=0 // loop_header
    %s11 = sphi 0, %s15
    %p12 = scmp.ge.s32.totalorder %s11, 10
    %s18 = sphi 0, %s30
    %s19 = sphi 0, %s26
    %s20 = sphi 0, %s18
    %s21 = sphi 0, %s19
    %s22 = sphi 0, %s20
    %s23 = sphi 0, %s21
    %s31 = sphi 0, %s31
    %s33 = sphi 0, %s31
    %s34 = sphi 0, %s33
    %s48 = sphi 0, %s34
    %s54 = sphi 0, %s56
    %s57 = sphi 0, %s54
    %s58 = sphi 0, %s57
    %s74 = sphi 0, %s58
    %s84 = sphi 0, %s86
    %s87 = sphi 0, %s84
    %s88 = sphi 0, %s87
    %s104 = sphi 0, %s88
    %s112 = sphi 0, %s114
    %s115 = sphi 0, %s112
    %s116 = sphi 0, %s115
    %s132 = sphi 0, %s116
    %s140 = sphi 0, %s142
    %s143 = sphi 0, %s140
    %s144 = sphi 0, %s143
    %s160 = sphi 0, %s144
  $region4: #{rsa_block_forward.17} parent=0 // loop_header_branch
    %14 = sbr.rel (%p12) target = $region8
  $region5: #{rsa_block_forward.17} parent=0 // loop_body
    %s16 = ssub.s32 %s11, 1
    %s17 = ssub.s32 %s11, 2
    %s24 = sadd.s32 1, %s19
    %p25 = scmp.ge.s32.totalorder %s24, 4
    %s26 = scalar_select %p25, 0, %s24
    %s27 = sadd.s32 1, %s18
    %s28 = scalar_select %p25, %s27, %s18
    %p29 = scmp.ge.s32.totalorder %s28, 2
    %s30 = scalar_select %p29, 0, %s28
    %s32 = sadd.s32 %s31, 1
    %p35 = scmp.eq.s32.totalorder %s11, 7
    %p36 = scmp.ne.s32.totalorder %s31, %s33
    %p37 = scmp.eq.s32.totalorder %s11, 0
    %p38 = por %p36, %p37
    %p39 = scmp.ne.s32.totalorder %s31, %s33
    %p40 = scmp.eq.s32.totalorder %s16, 7
    %p41 = por %p39, %p40
    %p42 = scmp.ne.s32.totalorder %s33, %s34
    %p43 = scmp.eq.s32.totalorder %s16, 0
    %p44 = por %p42, %p43
    %p45 = scmp.ne.s32.totalorder %s33, %s34
    %p46 = scmp.eq.s32.totalorder %s17, 7
    %p47 = por %p45, %p46
    %p49 = scmp.ne.s32.totalorder %s34, %s48
    %p50 = scmp.eq.s32.totalorder %s17, 0
    %p51 = por %p49, %p50
    %s52 = ssub.s32 %s18, %s30
    %p53 = scmp.eq.s32.totalorder %s52, 0
    %s55 = sadd.s32 %s54, 1
    %s56 = scalar_select %p53, %s54, %s55
    %p59 = pneg %p53
    %p60 = scmp.eq.s32.totalorder %s11, 7
    %p61 = por %p59, %p60
    %p62 = scmp.ne.s32.totalorder %s54, %s57
    %p63 = scmp.eq.s32.totalorder %s11, 0
    %p64 = por %p62, %p63
    %p65 = scmp.ne.s32.totalorder %s54, %s57
    %p66 = scmp.eq.s32.totalorder %s16, 7
    %p67 = por %p65, %p66
    %p68 = scmp.ne.s32.totalorder %s57, %s58
    %p69 = scmp.eq.s32.totalorder %s16, 0
    %p70 = por %p68, %p69
    %p71 = scmp.ne.s32.totalorder %s57, %s58
    %p72 = scmp.eq.s32.totalorder %s17, 7
    %p73 = por %p71, %p72
    %p75 = scmp.ne.s32.totalorder %s58, %s74
    %p76 = scmp.eq.s32.totalorder %s17, 0
    %p77 = por %p75, %p76
    %s78 = sadd.s32 %s19, 8
    %s79 = sadd.s32 %s26, 8
    %s80 = ssub.s32 %s18, %s30
    %s81 = ssub.s32 %s78, %s79
    %s82 = sor.u32 %s80, %s81
    %p83 = scmp.eq.s32.totalorder %s82, 0
    %s85 = sadd.s32 %s84, 1
    %s86 = scalar_select %p83, %s84, %s85
    %p89 = pneg %p83
    %p90 = scmp.eq.s32.totalorder %s11, 7
    %p91 = por %p89, %p90
    %p92 = scmp.ne.s32.totalorder %s84, %s87
    %p93 = scmp.eq.s32.totalorder %s11, 0
    %p94 = por %p92, %p93
    %p95 = scmp.ne.s32.totalorder %s84, %s87
    %p96 = scmp.eq.s32.totalorder %s16, 7
    %p97 = por %p95, %p96
    %p98 = scmp.ne.s32.totalorder %s87, %s88
    %p99 = scmp.eq.s32.totalorder %s16, 0
    %p100 = por %p98, %p99
    %p101 = scmp.ne.s32.totalorder %s87, %s88
    %p102 = scmp.eq.s32.totalorder %s17, 7
    %p103 = por %p101, %p102
    %p105 = scmp.ne.s32.totalorder %s88, %s104
    %p106 = scmp.eq.s32.totalorder %s17, 0
    %p107 = por %p105, %p106
    %s108 = ssub.s32 %s18, %s30
    %s109 = ssub.s32 %s19, %s26
    %s110 = sor.u32 %s108, %s109
    %p111 = scmp.eq.s32.totalorder %s110, 0
    %s113 = sadd.s32 %s112, 1
    %s114 = scalar_select %p111, %s112, %s113
    %p117 = pneg %p111
    %p118 = scmp.eq.s32.totalorder %s11, 7
    %p119 = por %p117, %p118
    %p120 = scmp.ne.s32.totalorder %s112, %s115
    %p121 = scmp.eq.s32.totalorder %s11, 0
    %p122 = por %p120, %p121
    %p123 = scmp.ne.s32.totalorder %s112, %s115
    %p124 = scmp.eq.s32.totalorder %s16, 7
    %p125 = por %p123, %p124
    %p126 = scmp.ne.s32.totalorder %s115, %s116
    %p127 = scmp.eq.s32.totalorder %s16, 0
    %p128 = por %p126, %p127
    %p129 = scmp.ne.s32.totalorder %s115, %s116
    %p130 = scmp.eq.s32.totalorder %s17, 7
    %p131 = por %p129, %p130
    %p133 = scmp.ne.s32.totalorder %s116, %s132
    %p134 = scmp.eq.s32.totalorder %s17, 0
    %p135 = por %p133, %p134
    %s136 = ssub.s32 %s18, %s30
    %s137 = ssub.s32 %s19, %s26
    %s138 = sor.u32 %s136, %s137
    %p139 = scmp.eq.s32.totalorder %s138, 0
    %s141 = sadd.s32 %s140, 1
    %s142 = scalar_select %p139, %s140, %s141
    %p145 = pneg %p139
    %p146 = scmp.eq.s32.totalorder %s11, 7
    %p147 = por %p145, %p146
    %p148 = scmp.ne.s32.totalorder %s140, %s143
    %p149 = scmp.eq.s32.totalorder %s11, 0
    %p150 = por %p148, %p149
    %p151 = scmp.ne.s32.totalorder %s140, %s143
    %p152 = scmp.eq.s32.totalorder %s16, 7
    %p153 = por %p151, %p152
    %p154 = scmp.ne.s32.totalorder %s143, %s144
    %p155 = scmp.eq.s32.totalorder %s16, 0
    %p156 = por %p154, %p155
    %p157 = scmp.ne.s32.totalorder %s143, %s144
    %p158 = scmp.eq.s32.totalorder %s17, 7
    %p159 = por %p157, %p158
    %p161 = scmp.ne.s32.totalorder %s144, %s160
    %p162 = scmp.eq.s32.totalorder %s17, 0
    %p163 = por %p161, %p162
    %p164 = scmp.le.s32.totalorder 1, %s11
    %p165 = scmp.lt.s32.totalorder %s11, 9
    %p166 = pnand %p164, %p165
    %p167 = pneg %p166
    // Predicated region
    $region9: #{rsa_block_forward.17} parent=5 // pred_check
      _
    $region10: #{rsa_block_forward.17} parent=5 // pred_check_branch
      %169 = sbr.rel (%p166) target = $region12
    $region11: #{rsa_block_forward.17} parent=5 // pred_region
      %s170 = ssub.s32 %s11, 1
      // Predicated region
      $region13: #{rsa_block_forward.17} parent=11 // pred_check
        %p171 = pneg %p44
      $region14: #{rsa_block_forward.17} parent=11 // pred_check_branch
        %173 = sbr.rel (%p171) target = $region16
      $region15: #{rsa_block_forward.17} parent=11 // pred_region
        _
      $region16: #{rsa_block_forward.17} parent=11 // pred_fallthru
        _
    $region12: #{rsa_block_forward.17} parent=5 // pred_fallthru
      _
    %p174 = scmp.lt.s32.totalorder %s11, 8
    // Predicated region
    $region17: #{rsa_block_forward.17} parent=5 // pred_check
      %p175 = pneg %p174
    $region18: #{rsa_block_forward.17} parent=5 // pred_check_branch
      %177 = sbr.rel (%p175) target = $region20
    $region19: #{rsa_block_forward.17} parent=5 // pred_region
      // Predicated region
      $region21: #{rsa_block_forward.17} parent=19 // pred_check
        %p178 = pneg %p64
      $region22: #{rsa_block_forward.17} parent=19 // pred_check_branch
        %180 = sbr.rel (%p178) target = $region24
      $region23: #{rsa_block_forward.17} parent=19 // pred_region
        %p181 = scmp.lt.s32.totalorder %s18, 1
        %s182 = scalar_select %p181, %s18, 1
        %s183 = smul.addr %s182, 8
        %s184 = scalar_lea.vmem %s1, %s183
      $region24: #{rsa_block_forward.17} parent=19 // pred_fallthru
        _
      // Predicated region
      $region25: #{rsa_block_forward.17} parent=19 // pred_check
        %p185 = pneg %p94
      $region26: #{rsa_block_forward.17} parent=19 // pred_check_branch
        %187 = sbr.rel (%p185) target = $region28
      $region27: #{rsa_block_forward.17} parent=19 // pred_region
        %s188 = sadd.s32 %s19, 8
        %p189 = scmp.lt.s32.totalorder %s18, 1
        %s190 = scalar_select %p189, %s18, 1
        %p191 = scmp.lt.s32.totalorder %s188, 11
        %s192 = scalar_select %p191, %s188, 11
        %s193 = smul.addr %s190, 12
        %s194 = sadd.s32 %s192, %s193
        %s195 = smul.addr %s194, 4
        %s196 = scalar_lea.vmem %s2, %s195
        %s197 = sadd.s32 %s19, 8
      $region28: #{rsa_block_forward.17} parent=19 // pred_fallthru
        _
      // Predicated region
      $region29: #{rsa_block_forward.17} parent=19 // pred_check
        %p198 = pneg %p122
      $region30: #{rsa_block_forward.17} parent=19 // pred_check_branch
        %200 = sbr.rel (%p198) target = $region32
      $region31: #{rsa_block_forward.17} parent=19 // pred_region
        %p201 = scmp.lt.s32.totalorder %s18, 1
        %s202 = scalar_select %p201, %s18, 1
        %p203 = scmp.lt.s32.totalorder %s19, 3
        %s204 = scalar_select %p203, %s19, 3
        %s205 = smul.addr %s202, 4
        %s206 = sadd.s32 %s204, %s205
        %s207 = smul.addr %s206, 8
        %s208 = scalar_lea.vmem %s3, %s207
      $region32: #{rsa_block_forward.17} parent=19 // pred_fallthru
        _
    $region20: #{rsa_block_forward.17} parent=5 // pred_fallthru
      _
    %p209 = scmp.le.s32.totalorder 1, %s11
    %p210 = scmp.lt.s32.totalorder %s11, 9
    %p211 = pnand %p209, %p210
    %p212 = pneg %p211
    // Predicated region
    $region33: #{rsa_block_forward.17} parent=5 // pred_check
      _
    $region34: #{rsa_block_forward.17} parent=5 // pred_check_branch
      %214 = sbr.rel (%p211) target = $region36
    $region35: #{rsa_block_forward.17} parent=5 // pred_region
      %s215 = ssub.s32 %s11, 1
      %p216 = pneg %p44
      %p217 = pneg %p41
      %p218 = scmp.lt.s32.totalorder %s20, 1
      %s219 = scalar_select %p218, %s20, 1
      %s220 = smul.addr %s219, 8
      %s221 = scalar_lea.vmem %s1, %s220
      %p222 = pneg %p70
      %p223 = pneg %p67
      %s224 = sadd.s32 %s21, 8
      %p225 = scmp.lt.s32.totalorder %s20, 1
      %s226 = scalar_select %p225, %s20, 1
      %p227 = scmp.lt.s32.totalorder %s224, 11
      %s228 = scalar_select %p227, %s224, 11
      %s229 = smul.addr %s226, 12
      %s230 = sadd.s32 %s228, %s229
      %s231 = smul.addr %s230, 4
      %s232 = scalar_lea.vmem %s2, %s231
      %p233 = pneg %p100
      %p234 = pneg %p97
      %p235 = scmp.lt.s32.totalorder %s20, 1
      %s236 = scalar_select %p235, %s20, 1
      %p237 = scmp.lt.s32.totalorder %s21, 3
      %s238 = scalar_select %p237, %s21, 3
      %s239 = smul.addr %s236, 4
      %s240 = sadd.s32 %s238, %s239
      %s241 = smul.addr %s240, 8
      %s242 = scalar_lea.vmem %s3, %s241
      %p243 = pneg %p128
      %p244 = pneg %p125
      %p245 = pneg %p156
      %p246 = pneg %p153
      %p247 = scmp.lt.s32.totalorder %s20, 1
      %s248 = scalar_select %p247, %s20, 1
      %p249 = scmp.lt.s32.totalorder %s21, 3
      %s250 = scalar_select %p249, %s21, 3
      %s251 = smul.addr %s248, 4
      %s252 = sadd.s32 %s250, %s251
      %s253 = smul.addr %s252, 8
      %s254 = scalar_lea.vmem %s4, %s253
      %p255 = scmp.lt.s32.totalorder %s20, 1
      %s256 = scalar_select %p255, %s20, 1
      %s257 = smul.addr %s256, 8
      %s258 = scalar_lea.vmem %s1, %s257
      %s259 = sadd.s32 %s21, 8
      %p260 = scmp.lt.s32.totalorder %s20, 1
      %s261 = scalar_select %p260, %s20, 1
      %p262 = scmp.lt.s32.totalorder %s259, 11
      %s263 = scalar_select %p262, %s259, 11
      %s264 = smul.addr %s261, 12
      %s265 = sadd.s32 %s263, %s264
      %s266 = smul.addr %s265, 4
      %s267 = scalar_lea.vmem %s2, %s266
      %s268 = sadd.s32 %s21, 8
      %p269 = scmp.lt.s32.totalorder %s20, 1
      %s270 = scalar_select %p269, %s20, 1
      %p271 = scmp.lt.s32.totalorder %s21, 3
      %s272 = scalar_select %p271, %s21, 3
      %s273 = smul.addr %s270, 4
      %s274 = sadd.s32 %s272, %s273
      %s275 = smul.addr %s274, 8
      %s276 = scalar_lea.vmem %s3, %s275
      %p277 = scmp.lt.s32.totalorder %s20, 1
      %s278 = scalar_select %p277, %s20, 1
      %p279 = scmp.lt.s32.totalorder %s21, 3
      %s280 = scalar_select %p279, %s21, 3
      %s281 = smul.addr %s278, 4
      %s282 = sadd.s32 %s280, %s281
      %s283 = smul.addr %s282, 8
      %s284 = scalar_lea.vmem %s4, %s283
      %v285 = vld [vmem:[%s258] sm:$0xff]
      %v286 = vld [vmem:[%s267] sm:$0xf]
      %v287 = vunpack.c.l.bf16 %v286
      %vm288 = vcmask 64512
      %v290 = vsel %vm288, %v285, 0
      %292 = vmatpush.msra.mxu0 0.0
      %293 = vmatpush.msra.mxu0 0.0
      %294 = vmatpush.msra.mxu0 0.0
      %295 = vmatpush.msra.mxu0 0.0
      %296 = vmatpush.msra.mxu0 0.0
      %297 = vmatpush.msra.mxu0 0.0
      %298 = vmatpush.msra.mxu0 0.0
      %299 = vmatpush.msra.mxu0 0.0
      %300 = vmatpush.msra.mxu0 0.0
      %301 = vmatpush.msra.mxu0 0.0
      %302 = vmatpush.msra.mxu0 0.0
      %303 = vmatpush.msra.mxu0 0.0
      %304 = vmatpush.msra.mxu0 0.0
      %305 = vmatpush.msra.mxu0 0.0
      %306 = vmatpush.msra.mxu0 0.0
      %307 = vmatpush.msra.mxu0 %v287
      %308 = vmatmul.f32.gmra.mxu0 %v290
      %v309 = vpop.f32.mrf.mxu0
      %v310 = vadd.f32 0.0, %v309
      %311 = vdwg.mxu0
      %v312 = vld [vmem:[%s276] sm:$0xff]
      %s313 = sld [smem:[#allocation2]]
      %v314 = vstv %s313
      %v315 = vmul.f32 %v314, %v310
      %v316 = vadd.f32 %v312, %v315
      %vm317 = vcmask 523264
      %318 = vst.msk [vmem:[%s284] sm:$0xff] %vm317, %v316
      %p319 = scmp.lt.s32.totalorder %s20, 1
      %s320 = scalar_select %p319, %s20, 1
      %p321 = scmp.lt.s32.totalorder %s21, 3
      %s322 = scalar_select %p321, %s21, 3
      %s323 = smul.addr %s320, 4
      %s324 = sadd.s32 %s322, %s323
      %s325 = smul.addr %s324, 8
      %s326 = scalar_lea.vmem %s4, %s325
      // Predicated region
      $region37: #{rsa_block_forward.17} parent=35 // pred_check
        %p327 = pneg %p153
      $region38: #{rsa_block_forward.17} parent=35 // pred_check_branch
        %329 = sbr.rel (%p327) target = $region40
      $region39: #{rsa_block_forward.17} parent=35 // pred_region
        _
      $region40: #{rsa_block_forward.17} parent=35 // pred_fallthru
        _
    $region36: #{rsa_block_forward.17} parent=5 // pred_fallthru
      _
    %p330 = scmp.le.s32.totalorder 2, %s11
    // Predicated region
    $region41: #{rsa_block_forward.17} parent=5 // pred_check
      %p331 = pneg %p330
    $region42: #{rsa_block_forward.17} parent=5 // pred_check_branch
      %333 = sbr.rel (%p331) target = $region44
    $region43: #{rsa_block_forward.17} parent=5 // pred_region
      %s334 = ssub.s32 %s11, 2
      // Predicated region
      $region45: #{rsa_block_forward.17} parent=43 // pred_check
        %p335 = pneg %p159
      $region46: #{rsa_block_forward.17} parent=43 // pred_check_branch
        %337 = sbr.rel (%p335) target = $region48
      $region47: #{rsa_block_forward.17} parent=43 // pred_region
        %p338 = scmp.lt.s32.totalorder %s22, 1
        %s339 = scalar_select %p338, %s22, 1
        %p340 = scmp.lt.s32.totalorder %s23, 3
        %s341 = scalar_select %p340, %s23, 3
        %s342 = smul.addr %s339, 4
        %s343 = sadd.s32 %s341, %s342
        %s344 = smul.addr %s343, 8
        %s345 = scalar_lea.vmem %s4, %s344
      $region48: #{rsa_block_forward.17} parent=43 // pred_fallthru
        _
    $region44: #{rsa_block_forward.17} parent=5 // pred_fallthru
      _
  $region6: #{rsa_block_forward.17} parent=0 // loop_footer
    %s15 = sadd.s32 1, %s11
  $region7: #{rsa_block_forward.17} parent=0 // loop_footer_branch
    %10 = sbr.rel target = $region3
  $region8: #{rsa_block_forward.17} parent=0 // loop_exit
    _

</llo_original>
